<compile_context>
chip_gen: v5e
topology: v5e:2x2
jax: 0.10.0
libtpu: 0.0.40
codegen_flags: <defaults>
</compile_context>

<pallas_src>
import functools

import jax
import jax.numpy as jnp
from jax.experimental import pallas as pl
from jax.experimental.pallas import tpu as pltpu


# ---------------------------------------------------------------------------
# VMEM budget / tiling helpers (generation-aware)
# ---------------------------------------------------------------------------

@functools.lru_cache(maxsize=None)
def _vmem_limit_bytes():
    """Scoped-VMEM limit: ~3/4 of physical per-core VMEM (64MiB v7x, 128MiB v5e/v6e)."""
    phys = 0
    try:
        info = pltpu.get_tpu_info()
        phys = int(getattr(info, "vmem_capacity_bytes", 0) or 0)
    except Exception:
        phys = 0
    if phys <= 0:
        phys = 64 * 1024 * 1024          # conservative (v7x-sized) fallback
    return (phys * 3) // 4


def _pick_lane_tile(total, bytes_per_lane, frac=0.25):
    """Largest lane tile dividing `total` whose double-buffered blocks fit the budget."""
    cap = int(_vmem_limit_bytes() * frac) // max(2 * bytes_per_lane, 1)
    if total <= max(cap, 128):
        return total
    cap = max(128, (cap // 128) * 128)
    t = cap
    while t >= 128:                       # prefer lane-aligned (128-multiple) tiles
        if total % t == 0:
            return t
        t -= 128
    for t in range(min(cap, total, 8192), 0, -1):   # fallback: any divisor (VMEM-safe)
        if total % t == 0:
            return t
    return total


def _pick_c_tile(C, HW, Lx, Lp, Cout):
    """Channel-tile for the fused spatial+conv2 kernel (multiple of 8 dividing C)."""
    budget = _vmem_limit_bytes() // 2
    fixed = (2 * Lp * 4 + 8 * HW * 4 + 2 * 2 * HW * 4
             + 3 * Cout * HW * 4 + 2 * HW * 4)
    per_c = 2 * HW * 2 + Lx * 2 + 2 * 9 * Cout * 2 + HW * 4
    if fixed + C * per_c <= budget:
        return C
    best = C
    ct = (C // 8) * 8
    while ct >= 8:
        if C % ct == 0:
            best = ct
            if fixed + ct * per_c <= budget:
                return ct
        ct -= 8
    return best


# ---------------------------------------------------------------------------
# out[b] = W @ X[b] + bias      (ConvTranspose2d k=2,s=2 as one matmul / image)
# ---------------------------------------------------------------------------

def _wx_bias_kernel(w_ref, b_ref, x_ref, o_ref):
    # w: (M, K) bf16, b: (M, 1) f32, x block: (1, K, T) bf16 -> o block: (1, M, T)
    o_ref[0] = (
        jnp.dot(w_ref[...], x_ref[0], preferred_element_type=jnp.float32)
        + b_ref[...]
    ).astype(o_ref.dtype)


def wx_bias(w, bias, x, *, out_dtype=jnp.bfloat16):
    """w: (M, K) bf16, bias: (M, 1) f32, x: (B, K, HW) bf16 -> (B, M, HW)."""
    B, K, HW = x.shape
    M = w.shape[0]
    out_bytes = jnp.dtype(out_dtype).itemsize
    t = _pick_lane_tile(HW, K * 2 + M * out_bytes)
    return pl.pallas_call(
        _wx_bias_kernel,
        out_shape=jax.ShapeDtypeStruct((B, M, HW), out_dtype),
        grid=(B, HW // t),
        in_specs=[
            pl.BlockSpec((M, K), lambda b, h: (0, 0)),
            pl.BlockSpec((M, 1), lambda b, h: (0, 0)),
            pl.BlockSpec((1, K, t), lambda b, h: (b, 0, h)),
        ],
        out_specs=pl.BlockSpec((1, M, t), lambda b, h: (b, 0, h)),
        compiler_params=pltpu.CompilerParams(
            dimension_semantics=("parallel", "parallel"),
            vmem_limit_bytes=_vmem_limit_bytes(),
        ),
        cost_estimate=pl.CostEstimate(
            flops=2 * B * M * K * HW, transcendentals=0,
            bytes_accessed=(w.size * 2 + x.size * 2 + bias.size * 4
                            + B * M * HW * out_bytes)),
    )(w, bias, x)


# ---------------------------------------------------------------------------
# CBAM channel attention, pass 1: tiled per-channel mean/max stats -> MLP -> att
# ---------------------------------------------------------------------------

def _ca_stats_kernel(x2_ref, x1_ref, w12_ref, w11_ref, w2_ref, att_ref,
                     s2_sc, m2_sc, s1_sc, m1_sc, *, inv_hw):
    h = pl.program_id(1)
    x2 = x2_ref[...]                                    # (1, C2, t) f32
    x1 = x1_ref[...].astype(jnp.float32)                # (1, C1, t)
    ts2 = jnp.sum(x2, axis=-1, keepdims=True)[0]        # (C2, 1)
    tm2 = jnp.max(x2, axis=-1, keepdims=True)[0]
    ts1 = jnp.sum(x1, axis=-1, keepdims=True)[0]
    tm1 = jnp.max(x1, axis=-1, keepdims=True)[0]

    @pl.when(h == 0)
    def _():
        s2_sc[...] = ts2; m2_sc[...] = tm2
        s1_sc[...] = ts1; m1_sc[...] = tm1

    @pl.when(h > 0)
    def _():
        s2_sc[...] += ts2; m2_sc[...] = jnp.maximum(m2_sc[...], tm2)
        s1_sc[...] += ts1; m1_sc[...] = jnp.maximum(m1_sc[...], tm1)

    @pl.when(h == pl.num_programs(1) - 1)
    def _():
        # shared MLP (no bias): sigmoid(W2 @ (relu(W1@avg) + relu(W1@max)))
        # W1 arrives pre-split as (Cr,C2)/(Cr,C1) -> no in-kernel lane slicing.
        avg2 = s2_sc[...] * inv_hw
        avg1 = s1_sc[...] * inv_hw
        hid_a = (jnp.dot(w12_ref[...], avg2, preferred_element_type=jnp.float32)
                 + jnp.dot(w11_ref[...], avg1, preferred_element_type=jnp.float32))
        hid_m = (jnp.dot(w12_ref[...], m2_sc[...], preferred_element_type=jnp.float32)
                 + jnp.dot(w11_ref[...], m1_sc[...], preferred_element_type=jnp.float32))
        hvec = jnp.maximum(hid_a, 0.0) + jnp.maximum(hid_m, 0.0)      # (Cr, 1)
        att_ref[0] = jax.nn.sigmoid(
            jnp.dot(w2_ref[...], hvec, preferred_element_type=jnp.float32))


def ca_stats(x2, x1u, w1_2, w1_1, w2):
    """x2: (B,C2,HW) f32, x1u: (B,C1,HW) bf16 -> channel attention (B, C, 1) f32."""
    B, C2, HW = x2.shape
    C1 = x1u.shape[1]
    C = C2 + C1
    Cr = w2.shape[1]
    t = _pick_lane_tile(HW, C2 * 4 + C1 * 2)
    kernel = functools.partial(_ca_stats_kernel, inv_hw=1.0 / HW)
    return pl.pallas_call(
        kernel,
        out_shape=jax.ShapeDtypeStruct((B, C, 1), jnp.float32),
        grid=(B, HW // t),
        in_specs=[
            pl.BlockSpec((1, C2, t), lambda b, h: (b, 0, h)),
            pl.BlockSpec((1, C1, t), lambda b, h: (b, 0, h)),
            pl.BlockSpec((Cr, C2), lambda b, h: (0, 0)),
            pl.BlockSpec((Cr, C1), lambda b, h: (0, 0)),
            pl.BlockSpec((C, Cr), lambda b, h: (0, 0)),
        ],
        out_specs=pl.BlockSpec((1, C, 1), lambda b, h: (b, 0, 0)),
        scratch_shapes=[pltpu.VMEM((C2, 1), jnp.float32),
                        pltpu.VMEM((C2, 1), jnp.float32),
                        pltpu.VMEM((C1, 1), jnp.float32),
                        pltpu.VMEM((C1, 1), jnp.float32)],
        compiler_params=pltpu.CompilerParams(
            dimension_semantics=("parallel", "arbitrary"),
            vmem_limit_bytes=_vmem_limit_bytes(),
        ),
    )(x2, x1u, w1_2, w1_1, w2)


# ---------------------------------------------------------------------------
# CBAM channel attention, pass 2: apply attention (in-kernel channel concat of
# [x2, x1_up]) + channel mean/max pooling.  Tiled over HW, fully parallel.
# ---------------------------------------------------------------------------

def _ca_apply_kernel(att_ref, x2_ref, x1_ref, o_ref, pool_ref, *, C2, inv_c):
    att = att_ref[...]                                  # (1, C, 1) f32
    x2 = x2_ref[...]                                    # (1, C2, t) f32
    x1 = x1_ref[...].astype(jnp.float32)                # (1, C1, t)
    out2 = x2 * att[:, 0:C2, :]
    out1 = x1 * att[:, C2:, :]
    o_ref[:, 0:C2, :] = out2.astype(o_ref.dtype)
    o_ref[:, C2:, :] = out1.astype(o_ref.dtype)
    ssum = jnp.sum(out2, axis=1, keepdims=True) + jnp.sum(out1, axis=1, keepdims=True)
    smax = jnp.maximum(jnp.max(out2, axis=1, keepdims=True),
                       jnp.max(out1, axis=1, keepdims=True))
    pool_ref[:, 0:1, :] = ssum * inv_c
    pool_ref[:, 1:2, :] = smax


def ca_apply(att, x2, x1u):
    B, C2, HW = x2.shape
    C1 = x1u.shape[1]
    C = C2 + C1
    t = _pick_lane_tile(HW, C2 * 4 + C1 * 2 + C * 2 + 2 * 4)
    kernel = functools.partial(_ca_apply_kernel, C2=C2, inv_c=1.0 / C)
    return pl.pallas_call(
        kernel,
        out_shape=(jax.ShapeDtypeStruct((B, C, HW), jnp.bfloat16),
                   jax.ShapeDtypeStruct((B, 2, HW), jnp.float32)),
        grid=(B, HW // t),
        in_specs=[
            pl.BlockSpec((1, C, 1), lambda b, h: (b, 0, 0)),
            pl.BlockSpec((1, C2, t), lambda b, h: (b, 0, h)),
            pl.BlockSpec((1, C1, t), lambda b, h: (b, 0, h)),
        ],
        out_specs=(pl.BlockSpec((1, C, t), lambda b, h: (b, 0, h)),
                   pl.BlockSpec((1, 2, t), lambda b, h: (b, 0, h))),
        compiler_params=pltpu.CompilerParams(
            dimension_semantics=("parallel", "parallel"),
            vmem_limit_bytes=_vmem_limit_bytes(),
        ),
    )(att, x2, x1u)


# ---------------------------------------------------------------------------
# CBAM spatial attention (7x7 conv on pooled maps) FUSED with conv2 (3x3, pad=1).
# All blocks are lane-flattened over HW.  H-direction zero padding lives in
# flattened VMEM scratch; W-direction padding is handled with column masks
# (jcol = p % Wc, precomputed on the host).  Grid: (B, C-tiles).
# ---------------------------------------------------------------------------

def _sa_conv2_kernel(col_ref, pooled_ref, x_ref, w9_ref, cb_ref, saw_ref, sab_ref,
                     o_ref, att_sc, ppool_sc, pact_sc, *, Hc, Wc, Cout, F0, F1):
    HW = Hc * Wc
    c_idx = pl.program_id(1)
    jcol = col_ref[...]                                 # (1, HW) int32

    @pl.when(c_idx == 0)
    def _():
        # (Re)zero padded scratches once per batch (interiors are rewritten,
        # borders must read as zero), then build the spatial-attention map.
        ppool_sc[...] = jnp.zeros(ppool_sc.shape, jnp.float32)
        pact_sc[...] = jnp.zeros(pact_sc.shape, jnp.bfloat16)
        ppool_sc[:, F1:F1 + HW] = pooled_ref[0]         # (2, HW) at aligned offset

        logits = jnp.zeros((1, HW), jnp.float32)
        for kj in range(7):                             # one column mask per kj group
            acc = jnp.zeros((1, HW), jnp.float32)
            for c in range(2):
                for ki in range(7):
                    start = F1 + (ki - 3) * Wc + (kj - 3)
                    acc = acc + (saw_ref[c * 49 + ki * 7 + kj]
                                 * ppool_sc[c:c + 1, start:start + HW])
            if kj != 3:
                lo = max(0, 3 - kj)
                hi = min(Wc - 1, Wc + 2 - kj)
                acc = jnp.where((jcol >= lo) & (jcol <= hi), acc, 0.0)
            logits = logits + acc
        att_sc[...] = jax.nn.sigmoid(logits + sab_ref[0])

    # scale this channel tile by the spatial attention map (f32 math, bf16 store)
    att = att_sc[...]                                   # (1, HW) f32
    xs = x_ref[0].astype(jnp.float32) * att             # (ct, HW) f32
    pact_sc[:, F0:F0 + HW] = xs.astype(jnp.bfloat16)

    # conv2 3x3: nine shifted matmuls on the padded scratch, grouped by kj
    w9 = w9_ref[...]                                    # (ct, 9*Cout) bf16
    part = jnp.zeros((Cout, HW), jnp.float32)
    for kj in range(3):
        acc = jnp.zeros((Cout, HW), jnp.float32)
        for ki in range(3):
            k = ki * 3 + kj
            start = F0 + (ki - 1) * Wc + (kj - 1)
            sl = pact_sc[:, start:start + HW]           # (ct, HW) bf16
            wk = w9[:, k * Cout:(k + 1) * Cout]         # (ct, Cout) bf16
            acc = acc + jax.lax.dot_general(
                wk, sl, (((0,), (0,)), ((), ())),
                preferred_element_type=jnp.float32)     # (Cout, HW)
        if kj == 0:
            acc = jnp.where(jcol >= 1, acc, 0.0)
        elif kj == 2:
            acc = jnp.where(jcol <= Wc - 2, acc, 0.0)
        part = part + acc

    @pl.when(c_idx == 0)
    def _():
        o_ref[0] = jnp.broadcast_to(cb_ref[...], (Cout, HW))   # bias init
    o_ref[0] = o_ref[0] + part                                 # accumulate over C tiles


def sa_conv2(out_ca, pooled, sa_w, sa_b, c2_w9, c2_b, *, Hc, Wc):
    """out_ca: (B,C,HW) bf16, pooled: (B,2,HW) f32 -> conv2(spatial_att * out_ca)."""
    B, C, HW = out_ca.shape
    Cout = c2_b.shape[0]
    F0 = pl.cdiv(Wc + 1, 128) * 128                     # lane-aligned data offsets
    F1 = pl.cdiv(3 * Wc + 3, 128) * 128
    Lx = F0 + HW + Wc + 1
    Lp = F1 + HW + 3 * Wc + 3
    ct = _pick_c_tile(C, HW, Lx, Lp, Cout)
    jcol = (jnp.arange(HW, dtype=jnp.int32) % Wc).reshape(1, HW)
    kernel = functools.partial(_sa_conv2_kernel, Hc=Hc, Wc=Wc, Cout=Cout, F0=F0, F1=F1)
    flops = 2 * B * 9 * C * Cout * HW + B * (98 + 2 * C) * HW
    bytes_accessed = (out_ca.size * 2 + pooled.size * 4 + c2_w9.size * 2
                      + Cout * 4 + B * Cout * HW * 4 + HW * 4)
    return pl.pallas_call(
        kernel,
        out_shape=jax.ShapeDtypeStruct((B, Cout, HW), jnp.float32),
        grid=(B, C // ct),
        in_specs=[
            pl.BlockSpec((1, HW), lambda b, c: (0, 0)),
            pl.BlockSpec((1, 2, HW), lambda b, c: (b, 0, 0)),
            pl.BlockSpec((1, ct, HW), lambda b, c: (b, c, 0)),
            pl.BlockSpec((ct, 9 * Cout), lambda b, c: (c, 0)),
            pl.BlockSpec((Cout, 1), lambda b, c: (0, 0)),
            pl.BlockSpec(memory_space=pltpu.MemorySpace.SMEM),
            pl.BlockSpec(memory_space=pltpu.MemorySpace.SMEM),
        ],
        out_specs=pl.BlockSpec((1, Cout, HW), lambda b, c: (b, 0, 0)),
        scratch_shapes=[pltpu.VMEM((1, HW), jnp.float32),
                        pltpu.VMEM((2, Lp), jnp.float32),
                        pltpu.VMEM((ct, Lx), jnp.bfloat16)],
        compiler_params=pltpu.CompilerParams(
            dimension_semantics=("parallel", "arbitrary"),
            vmem_limit_bytes=_vmem_limit_bytes(),
        ),
        cost_estimate=pl.CostEstimate(
            flops=flops, transcendentals=B * (HW + C),
            bytes_accessed=bytes_accessed),
    )(jcol, pooled, out_ca, c2_w9, c2_b, sa_w, sa_b)


# ---------------------------------------------------------------------------
# Parameters + forward (mirrors the PyTorch `up` module)
# ---------------------------------------------------------------------------

def init_params(key, in_channels, out_channels):
    C = 2 * out_channels
    Cr = max(C // 16, 1)
    ks = jax.random.split(key, 8)

    def rn(k, shape, scale=0.1):
        return scale * jax.random.normal(k, shape, jnp.float32)

    return {
        # ConvTranspose2d(in, in//2, kernel=2, stride=2)
        "ct_w": rn(ks[0], (in_channels, in_channels // 2, 2, 2)),
        "ct_b": rn(ks[1], (in_channels // 2,)),
        # ChannelAttention shared MLP (1x1 convs, no bias)
        "ca_w1": rn(ks[2], (Cr, C, 1, 1)),
        "ca_w2": rn(ks[3], (C, Cr, 1, 1)),
        # SpatialAttention Conv2d(2, 1, 7, padding=3)
        "sa_w": rn(ks[4], (1, 2, 7, 7)),
        "sa_b": rn(ks[5], (1,)),
        # conv2: Conv2d(2*out, out, 3, padding=1)
        "c2_w": rn(ks[6], (out_channels, C, 3, 3)),
        "c2_b": rn(ks[7], (out_channels,)),
    }


def up_forward(params, x1, x2):
    B, Cin, H, W = x1.shape
    Cmid = Cin // 2

    # --- ConvTranspose2d(k=2, s=2): (Cmid*4, Cin) @ (Cin, H*W) matmul / image ---
    wt = (params["ct_w"].transpose(1, 2, 3, 0)            # (Cmid, 2, 2, Cin)
          .reshape(Cmid * 4, Cin).astype(jnp.bfloat16))
    bias4 = jnp.repeat(params["ct_b"], 4)[:, None]         # (Cmid*4, 1) f32
    x1s = x1.reshape(B, Cin, H * W).astype(jnp.bfloat16)
    y = wx_bias(wt, bias4, x1s, out_dtype=jnp.bfloat16)    # (B, Cmid*4, H*W) bf16
    # 2x2 sub-pixel interleave (XLA, bf16). TODO(synk): fold into the consumer.
    x1u = (y.reshape(B, Cmid, 2, 2, H, W)
           .transpose(0, 1, 4, 2, 5, 3)
           .reshape(B, Cmid, 2 * H, 2 * W))

    # --- pad upsampled map to x2 spatial size (F.pad semantics) -----------------
    Hc, Wc = x2.shape[2], x2.shape[3]
    diffY, diffX = Hc - x1u.shape[2], Wc - x1u.shape[3]
    if diffY or diffX:
        x1u = jnp.pad(x1u, ((0, 0), (0, 0),
                            (diffY // 2, diffY - diffY // 2),
                            (diffX // 2, diffX - diffX // 2)))

    C2, C1 = x2.shape[1], Cmid
    C = C2 + C1
    HW = Hc * Wc
    x2f = x2.reshape(B, C2, HW)
    x1f = x1u.reshape(B, C1, HW)

    # --- CBAM channel attention: tiled stats pass + tiled apply/pool pass -------
    w1c = params["ca_w1"][:, :, 0, 0]                      # (Cr, C)
    w2c = params["ca_w2"][:, :, 0, 0]                      # (C, Cr)
    att = ca_stats(x2f, x1f, w1c[:, :C2], w1c[:, C2:], w2c)   # (B, C, 1) f32
    out_ca, pooled = ca_apply(att, x2f, x1f)               # (B,C,HW) bf16, (B,2,HW) f32

    # --- CBAM spatial attention fused with conv2 (3x3, pad=1, bias) -------------
    Cout = params["c2_w"].shape[0]
    c2_w9 = (params["c2_w"].transpose(1, 2, 3, 0)          # (C, 3, 3, Cout)
             .reshape(C, 9 * Cout).astype(jnp.bfloat16))
    c2_b = params["c2_b"][:, None]                         # (Cout, 1) f32
    sa_w = params["sa_w"].reshape(-1)                      # (98,) ordered (c, ki, kj)
    sa_b = params["sa_b"].reshape(1)
    y2 = sa_conv2(out_ca, pooled, sa_w, sa_b, c2_w9, c2_b, Hc=Hc, Wc=Wc)
    return y2.reshape(B, Cout, Hc, Wc)


if __name__ == "__main__":
    key = jax.random.PRNGKey(0)
    in_channels, out_channels = 32, 16   # CBAM channel = 2*out = 32, ratio 16 -> hidden 2
    B, H, W = 2, 8, 8
    k1, k2, k3 = jax.random.split(key, 3)
    x1 = jax.random.normal(k1, (B, in_channels, H, W), jnp.float32)
    x2 = jax.random.normal(k2, (B, in_channels // 2, 2 * H, 2 * W), jnp.float32)
    params = init_params(k3, in_channels, out_channels)

    fwd = jax.jit(functools.partial(up_forward, params))
    y = fwd(x1, x2)
    jax.block_until_ready(y)
    assert y.shape == (B, out_channels, 2 * H, 2 * W), y.shape
    assert bool(jnp.all(jnp.isfinite(y)))
    print("KERNEL_OK")
</pallas_src>

<mosaic_0001>
module attributes {stable_mosaic.version = 11 : i64} {
  func.func @_wx_bias_kernel(%arg0: i32, %arg1: i32, %arg2: memref<64x32xbf16, #tpu.memory_space<vmem>>, %arg3: memref<64x1xf32, #tpu.memory_space<vmem>>, %arg4: memref<1x32x64xbf16, #tpu.memory_space<vmem>>, %arg5: memref<1x64x64xbf16, #tpu.memory_space<vmem>>) attributes {dimension_semantics = [#tpu.dimension_semantics<parallel>, #tpu.dimension_semantics<parallel>], iteration_bounds = array<i64: 2, 1>, scalar_prefetch = 0 : i64, scratch_operands = 0 : i64, tpu.core_type = #tpu.core_type<tc>, window_params = [{pipeline_mode = #tpu.pipeline_mode<synchronous>, transform_indices = @transform_0, window_bounds = array<i64: 64, 32>}, {pipeline_mode = #tpu.pipeline_mode<synchronous>, transform_indices = @transform_1, window_bounds = array<i64: 64, 1>}, {transform_indices = @transform_2, window_bounds = array<i64: 1, 32, 64>}, {transform_indices = @transform_3, window_bounds = array<i64: 1, 64, 64>}]} {
    %c0 = arith.constant 0 : index
    %c0_0 = arith.constant 0 : index
    %0 = vector.load %arg2[%c0, %c0_0] : memref<64x32xbf16, #tpu.memory_space<vmem>>, vector<64x32xbf16>
    %c0_1 = arith.constant 0 : index
    %c0_2 = arith.constant 0 : index
    %c0_3 = arith.constant 0 : index
    %1 = vector.load %arg4[%c0_1, %c0_2, %c0_3] : memref<1x32x64xbf16, #tpu.memory_space<vmem>>, vector<1x32x64xbf16>
    %2 = vector.shape_cast %1 : vector<1x32x64xbf16> to vector<32x64xbf16>
    %cst = arith.constant dense<0.000000e+00> : vector<64x64xf32>
    %3 = tpu.matmul %0, %2, %cst {dimension_numbers = #tpu.dot_dimension_numbers<[1], [0], [0], [1], [0, 0, 1, 1], [], []>} : vector<64x32xbf16>, vector<32x64xbf16>, vector<64x64xf32> -> vector<64x64xf32>
    %c0_4 = arith.constant 0 : index
    %c0_5 = arith.constant 0 : index
    %4 = vector.load %arg3[%c0_4, %c0_5] : memref<64x1xf32, #tpu.memory_space<vmem>>, vector<64x1xf32>
    %5 = vector.broadcast %4 : vector<64x1xf32> to vector<64x64xf32>
    %6 = arith.addf %3, %5 : vector<64x64xf32>
    %7 = arith.truncf %6 : vector<64x64xf32> to vector<64x64xbf16>
    %c0_6 = arith.constant 0 : index
    %c0_7 = arith.constant 0 : index
    %c0_8 = arith.constant 0 : index
    %8 = vector.load %arg5[%c0_6, %c0_7, %c0_8] : memref<1x64x64xbf16, #tpu.memory_space<vmem>>, vector<1x64x64xbf16>
    %9 = vector.shape_cast %8 : vector<1x64x64xbf16> to vector<64x64xbf16>
    %10 = vector.shape_cast %7 : vector<64x64xbf16> to vector<1x64x64xbf16>
    tpu.vector_store %arg5[%c0_6, %c0_7, %c0_8], %10 {strides = array<i32>} : memref<1x64x64xbf16, #tpu.memory_space<vmem>>, vector<1x64x64xbf16>,
    return
  }
  func.func @transform_0(%arg0: i32, %arg1: i32) -> (i32, i32) {
    %c0_i32 = arith.constant 0 : i32
    %c0_i32_0 = arith.constant 0 : i32
    %c0_i32_1 = arith.constant 0 : i32
    return %c0_i32, %c0_i32_0 : i32, i32
  }
  func.func @transform_1(%arg0: i32, %arg1: i32) -> (i32, i32) {
    %c0_i32 = arith.constant 0 : i32
    %c0_i32_0 = arith.constant 0 : i32
    %c0_i32_1 = arith.constant 0 : i32
    return %c0_i32, %c0_i32_0 : i32, i32
  }
  func.func @transform_2(%arg0: i32, %arg1: i32) -> (i32, i32, i32) {
    %c0_i32 = arith.constant 0 : i32
    %c0_i32_0 = arith.constant 0 : i32
    return %arg0, %c0_i32, %arg1 : i32, i32, i32
  }
  func.func @transform_3(%arg0: i32, %arg1: i32) -> (i32, i32, i32) {
    %c0_i32 = arith.constant 0 : i32
    %c0_i32_0 = arith.constant 0 : i32
    return %arg0, %c0_i32, %arg1 : i32, i32, i32
  }
}

module attributes {stable_mosaic.version = 11 : i64} {
  func.func @_ca_stats_kernel(%arg0: i32, %arg1: i32, %arg2: memref<1x16x256xf32, #tpu.memory_space<vmem>>, %arg3: memref<1x16x256xbf16, #tpu.memory_space<vmem>>, %arg4: memref<2x16xf32, #tpu.memory_space<vmem>>, %arg5: memref<2x16xf32, #tpu.memory_space<vmem>>, %arg6: memref<32x2xf32, #tpu.memory_space<vmem>>, %arg7: memref<1x32x1xf32, #tpu.memory_space<vmem>>, %arg8: memref<16x1xf32, #tpu.memory_space<vmem>>, %arg9: memref<16x1xf32, #tpu.memory_space<vmem>>, %arg10: memref<16x1xf32, #tpu.memory_space<vmem>>, %arg11: memref<16x1xf32, #tpu.memory_space<vmem>>) attributes {dimension_semantics = [#tpu.dimension_semantics<parallel>, #tpu.dimension_semantics<arbitrary>], iteration_bounds = array<i64: 2, 1>, scalar_prefetch = 0 : i64, scratch_operands = 4 : i64, tpu.core_type = #tpu.core_type<tc>, window_params = [{transform_indices = @transform_0, window_bounds = array<i64: 1, 16, 256>}, {transform_indices = @transform_1, window_bounds = array<i64: 1, 16, 256>}, {pipeline_mode = #tpu.pipeline_mode<synchronous>, transform_indices = @transform_2, window_bounds = array<i64: 2, 16>}, {pipeline_mode = #tpu.pipeline_mode<synchronous>, transform_indices = @transform_3, window_bounds = array<i64: 2, 16>}, {pipeline_mode = #tpu.pipeline_mode<synchronous>, transform_indices = @transform_4, window_bounds = array<i64: 32, 2>}, {transform_indices = @transform_5, window_bounds = array<i64: 1, 32, 1>}]} {
    %c0 = arith.constant 0 : index
    %c0_0 = arith.constant 0 : index
    %c0_1 = arith.constant 0 : index
    %0 = vector.load %arg2[%c0, %c0_0, %c0_1] : memref<1x16x256xf32, #tpu.memory_space<vmem>>, vector<1x16x256xf32>
    %c0_2 = arith.constant 0 : index
    %c0_3 = arith.constant 0 : index
    %c0_4 = arith.constant 0 : index
    %1 = vector.load %arg3[%c0_2, %c0_3, %c0_4] : memref<1x16x256xbf16, #tpu.memory_space<vmem>>, vector<1x16x256xbf16>
    %2 = arith.extf %1 : vector<1x16x256xbf16> to vector<1x16x256xf32>
    %cst = arith.constant dense<0.000000e+00> : vector<1x16xf32>
    %3 = vector.multi_reduction <add>, %0, %cst [2] : vector<1x16x256xf32> to vector<1x16xf32>
    %4 = vector.shape_cast %3 : vector<1x16xf32> to vector<1x16x1xf32>
    %5 = vector.shape_cast %4 : vector<1x16x1xf32> to vector<16x1xf32>
    %cst_5 = arith.constant dense<0xFF800000> : vector<1x16xf32>
    %6 = vector.multi_reduction <maximumf>, %0, %cst_5 [2] : vector<1x16x256xf32> to vector<1x16xf32>
    %7 = vector.shape_cast %6 : vector<1x16xf32> to vector<1x16x1xf32>
    %8 = vector.shape_cast %7 : vector<1x16x1xf32> to vector<16x1xf32>
    %cst_6 = arith.constant dense<0.000000e+00> : vector<1x16xf32>
    %9 = vector.multi_reduction <add>, %2, %cst_6 [2] : vector<1x16x256xf32> to vector<1x16xf32>
    %10 = vector.shape_cast %9 : vector<1x16xf32> to vector<1x16x1xf32>
    %11 = vector.shape_cast %10 : vector<1x16x1xf32> to vector<16x1xf32>
    %cst_7 = arith.constant dense<0xFF800000> : vector<1x16xf32>
    %12 = vector.multi_reduction <maximumf>, %2, %cst_7 [2] : vector<1x16x256xf32> to vector<1x16xf32>
    %13 = vector.shape_cast %12 : vector<1x16xf32> to vector<1x16x1xf32>
    %14 = vector.shape_cast %13 : vector<1x16x1xf32> to vector<16x1xf32>
    %c0_i32 = arith.constant 0 : i32
    %15 = arith.cmpi eq, %arg1, %c0_i32 : i32
    %16 = arith.extui %15 : i1 to i32
    %c0_i32_8 = arith.constant 0 : i32
    %17 = arith.cmpi ne, %16, %c0_i32_8 : i32
    scf.if %17 {
      %c0_13 = arith.constant 0 : index
      %c0_14 = arith.constant 0 : index
      %24 = vector.load %arg8[%c0_13, %c0_14] : memref<16x1xf32, #tpu.memory_space<vmem>>, vector<16x1xf32>
      tpu.vector_store %arg8[%c0_13, %c0_14], %5 {strides = array<i32>} : memref<16x1xf32, #tpu.memory_space<vmem>>, vector<16x1xf32>,
      %c0_15 = arith.constant 0 : index
      %c0_16 = arith.constant 0 : index
      %25 = vector.load %arg9[%c0_15, %c0_16] : memref<16x1xf32, #tpu.memory_space<vmem>>, vector<16x1xf32>
      tpu.vector_store %arg9[%c0_15, %c0_16], %8 {strides = array<i32>} : memref<16x1xf32, #tpu.memory_space<vmem>>, vector<16x1xf32>,
      %c0_17 = arith.constant 0 : index
      %c0_18 = arith.constant 0 : index
      %26 = vector.load %arg10[%c0_17, %c0_18] : memref<16x1xf32, #tpu.memory_space<vmem>>, vector<16x1xf32>
      tpu.vector_store %arg10[%c0_17, %c0_18], %11 {strides = array<i32>} : memref<16x1xf32, #tpu.memory_space<vmem>>, vector<16x1xf32>,
      %c0_19 = arith.constant 0 : index
      %c0_20 = arith.constant 0 : index
      %27 = vector.load %arg11[%c0_19, %c0_20] : memref<16x1xf32, #tpu.memory_space<vmem>>, vector<16x1xf32>
      tpu.vector_store %arg11[%c0_19, %c0_20], %14 {strides = array<i32>} : memref<16x1xf32, #tpu.memory_space<vmem>>, vector<16x1xf32>,
    } else {
    }
    %c0_i32_9 = arith.constant 0 : i32
    %18 = arith.cmpi sgt, %arg1, %c0_i32_9 : i32
    %19 = arith.extui %18 : i1 to i32
    %c0_i32_10 = arith.constant 0 : i32
    %20 = arith.cmpi ne, %19, %c0_i32_10 : i32
    scf.if %20 {
      %c0_13 = arith.constant 0 : index
      %c0_14 = arith.constant 0 : index
      %24 = vector.load %arg8[%c0_13, %c0_14] : memref<16x1xf32, #tpu.memory_space<vmem>>, vector<16x1xf32>
      %25 = arith.addf %24, %5 : vector<16x1xf32>
      %c0_15 = arith.constant 0 : index
      %c0_16 = arith.constant 0 : index
      %26 = vector.load %arg8[%c0_15, %c0_16] : memref<16x1xf32, #tpu.memory_space<vmem>>, vector<16x1xf32>
      tpu.vector_store %arg8[%c0_15, %c0_16], %25 {strides = array<i32>} : memref<16x1xf32, #tpu.memory_space<vmem>>, vector<16x1xf32>,
      %c0_17 = arith.constant 0 : index
      %c0_18 = arith.constant 0 : index
      %27 = vector.load %arg9[%c0_17, %c0_18] : memref<16x1xf32, #tpu.memory_space<vmem>>, vector<16x1xf32>
      %28 = arith.maximumf %27, %8 : vector<16x1xf32>
      %c0_19 = arith.constant 0 : index
      %c0_20 = arith.constant 0 : index
      %29 = vector.load %arg9[%c0_19, %c0_20] : memref<16x1xf32, #tpu.memory_space<vmem>>, vector<16x1xf32>
      tpu.vector_store %arg9[%c0_19, %c0_20], %28 {strides = array<i32>} : memref<16x1xf32, #tpu.memory_space<vmem>>, vector<16x1xf32>,
      %c0_21 = arith.constant 0 : index
      %c0_22 = arith.constant 0 : index
      %30 = vector.load %arg10[%c0_21, %c0_22] : memref<16x1xf32, #tpu.memory_space<vmem>>, vector<16x1xf32>
      %31 = arith.addf %30, %11 : vector<16x1xf32>
      %c0_23 = arith.constant 0 : index
      %c0_24 = arith.constant 0 : index
      %32 = vector.load %arg10[%c0_23, %c0_24] : memref<16x1xf32, #tpu.memory_space<vmem>>, vector<16x1xf32>
      tpu.vector_store %arg10[%c0_23, %c0_24], %31 {strides = array<i32>} : memref<16x1xf32, #tpu.memory_space<vmem>>, vector<16x1xf32>,
      %c0_25 = arith.constant 0 : index
      %c0_26 = arith.constant 0 : index
      %33 = vector.load %arg11[%c0_25, %c0_26] : memref<16x1xf32, #tpu.memory_space<vmem>>, vector<16x1xf32>
      %34 = arith.maximumf %33, %14 : vector<16x1xf32>
      %c0_27 = arith.constant 0 : index
      %c0_28 = arith.constant 0 : index
      %35 = vector.load %arg11[%c0_27, %c0_28] : memref<16x1xf32, #tpu.memory_space<vmem>>, vector<16x1xf32>
      tpu.vector_store %arg11[%c0_27, %c0_28], %34 {strides = array<i32>} : memref<16x1xf32, #tpu.memory_space<vmem>>, vector<16x1xf32>,
    } else {
    }
    %c0_i32_11 = arith.constant 0 : i32
    %21 = arith.cmpi eq, %arg1, %c0_i32_11 : i32
    %22 = arith.extui %21 : i1 to i32
    %c0_i32_12 = arith.constant 0 : i32
    %23 = arith.cmpi ne, %22, %c0_i32_12 : i32
    scf.if %23 {
      %c0_13 = arith.constant 0 : index
      %c0_14 = arith.constant 0 : index
      %24 = vector.load %arg8[%c0_13, %c0_14] : memref<16x1xf32, #tpu.memory_space<vmem>>, vector<16x1xf32>
      %cst_15 = arith.constant 3.906250e-03 : f32
      %25 = vector.broadcast %cst_15 : f32 to vector<16x1xf32>
      %26 = arith.mulf %24, %25 : vector<16x1xf32>
      %c0_16 = arith.constant 0 : index
      %c0_17 = arith.constant 0 : index
      %27 = vector.load %arg10[%c0_16, %c0_17] : memref<16x1xf32, #tpu.memory_space<vmem>>, vector<16x1xf32>
      %cst_18 = arith.constant 3.906250e-03 : f32
      %28 = vector.broadcast %cst_18 : f32 to vector<16x1xf32>
      %29 = arith.mulf %27, %28 : vector<16x1xf32>
      %c0_19 = arith.constant 0 : index
      %c0_20 = arith.constant 0 : index
      %30 = vector.load %arg4[%c0_19, %c0_20] : memref<2x16xf32, #tpu.memory_space<vmem>>, vector<2x16xf32>
      %cst_21 = arith.constant dense<0.000000e+00> : vector<2x1xf32>
      %31 = tpu.matmul %30, %26, %cst_21 {dimension_numbers = #tpu.dot_dimension_numbers<[1], [0], [0], [1], [0, 0, 1, 1], [], []>} : vector<2x16xf32>, vector<16x1xf32>, vector<2x1xf32> -> vector<2x1xf32>
      %c0_22 = arith.constant 0 : index
      %c0_23 = arith.constant 0 : index
      %32 = vector.load %arg5[%c0_22, %c0_23] : memref<2x16xf32, #tpu.memory_space<vmem>>, vector<2x16xf32>
      %cst_24 = arith.constant dense<0.000000e+00> : vector<2x1xf32>
      %33 = tpu.matmul %32, %29, %cst_24 {dimension_numbers = #tpu.dot_dimension_numbers<[1], [0], [0], [1], [0, 0, 1, 1], [], []>} : vector<2x16xf32>, vector<16x1xf32>, vector<2x1xf32> -> vector<2x1xf32>
      %34 = arith.addf %31, %33 : vector<2x1xf32>
      %c0_25 = arith.constant 0 : index
      %c0_26 = arith.constant 0 : index
      %35 = vector.load %arg4[%c0_25, %c0_26] : memref<2x16xf32, #tpu.memory_space<vmem>>, vector<2x16xf32>
      %c0_27 = arith.constant 0 : index
      %c0_28 = arith.constant 0 : index
      %36 = vector.load %arg9[%c0_27, %c0_28] : memref<16x1xf32, #tpu.memory_space<vmem>>, vector<16x1xf32>
      %cst_29 = arith.constant dense<0.000000e+00> : vector<2x1xf32>
      %37 = tpu.matmul %35, %36, %cst_29 {dimension_numbers = #tpu.dot_dimension_numbers<[1], [0], [0], [1], [0, 0, 1, 1], [], []>} : vector<2x16xf32>, vector<16x1xf32>, vector<2x1xf32> -> vector<2x1xf32>
      %c0_30 = arith.constant 0 : index
      %c0_31 = arith.constant 0 : index
      %38 = vector.load %arg5[%c0_30, %c0_31] : memref<2x16xf32, #tpu.memory_space<vmem>>, vector<2x16xf32>
      %c0_32 = arith.constant 0 : index
      %c0_33 = arith.constant 0 : index
      %39 = vector.load %arg11[%c0_32, %c0_33] : memref<16x1xf32, #tpu.memory_space<vmem>>, vector<16x1xf32>
      %cst_34 = arith.constant dense<0.000000e+00> : vector<2x1xf32>
      %40 = tpu.matmul %38, %39, %cst_34 {dimension_numbers = #tpu.dot_dimension_numbers<[1], [0], [0], [1], [0, 0, 1, 1], [], []>} : vector<2x16xf32>, vector<16x1xf32>, vector<2x1xf32> -> vector<2x1xf32>
      %41 = arith.addf %37, %40 : vector<2x1xf32>
      %cst_35 = arith.constant 0.000000e+00 : f32
      %42 = vector.broadcast %cst_35 : f32 to vector<2x1xf32>
      %43 = arith.maximumf %34, %42 : vector<2x1xf32>
      %cst_36 = arith.constant 0.000000e+00 : f32
      %44 = vector.broadcast %cst_36 : f32 to vector<2x1xf32>
      %45 = arith.maximumf %41, %44 : vector<2x1xf32>
      %46 = arith.addf %43, %45 : vector<2x1xf32>
      %c0_37 = arith.constant 0 : index
      %c0_38 = arith.constant 0 : index
      %47 = vector.load %arg6[%c0_37, %c0_38] : memref<32x2xf32, #tpu.memory_space<vmem>>, vector<32x2xf32>
      %cst_39 = arith.constant dense<0.000000e+00> : vector<32x1xf32>
      %48 = tpu.matmul %47, %46, %cst_39 {dimension_numbers = #tpu.dot_dimension_numbers<[1], [0], [0], [1], [0, 0, 1, 1], [], []>} : vector<32x2xf32>, vector<2x1xf32>, vector<32x1xf32> -> vector<32x1xf32>
      %49 = arith.negf %48 : vector<32x1xf32>
      %50 = math.exp %49 : vector<32x1xf32>
      %cst_40 = arith.constant 1.000000e+00 : f32
      %51 = vector.broadcast %cst_40 : f32 to vector<32x1xf32>
      %52 = arith.addf %51, %50 : vector<32x1xf32>
      %53 = arith.divf %51, %52 : vector<32x1xf32>
      %c0_41 = arith.constant 0 : index
      %c0_42 = arith.constant 0 : index
      %c0_43 = arith.constant 0 : index
      %54 = vector.load %arg7[%c0_41, %c0_42, %c0_43] : memref<1x32x1xf32, #tpu.memory_space<vmem>>, vector<1x32x1xf32>
      %55 = vector.shape_cast %54 : vector<1x32x1xf32> to vector<32x1xf32>
      %56 = vector.shape_cast %53 : vector<32x1xf32> to vector<1x32x1xf32>
      tpu.vector_store %arg7[%c0_41, %c0_42, %c0_43], %56 {strides = array<i32>} : memref<1x32x1xf32, #tpu.memory_space<vmem>>, vector<1x32x1xf32>,
    } else {
    }
    return
  }
  func.func @transform_0(%arg0: i32, %arg1: i32) -> (i32, i32, i32) {
    %c0_i32 = arith.constant 0 : i32
    %c0_i32_0 = arith.constant 0 : i32
    return %arg0, %c0_i32, %arg1 : i32, i32, i32
  }
  func.func @transform_1(%arg0: i32, %arg1: i32) -> (i32, i32, i32) {
    %c0_i32 = arith.constant 0 : i32
    %c0_i32_0 = arith.constant 0 : i32
    return %arg0, %c0_i32, %arg1 : i32, i32, i32
  }
  func.func @transform_2(%arg0: i32, %arg1: i32) -> (i32, i32) {
    %c0_i32 = arith.constant 0 : i32
    %c0_i32_0 = arith.constant 0 : i32
    %c0_i32_1 = arith.constant 0 : i32
    return %c0_i32, %c0_i32_0 : i32, i32
  }
  func.func @transform_3(%arg0: i32, %arg1: i32) -> (i32, i32) {
    %c0_i32 = arith.constant 0 : i32
    %c0_i32_0 = arith.constant 0 : i32
    %c0_i32_1 = arith.constant 0 : i32
    return %c0_i32, %c0_i32_0 : i32, i32
  }
  func.func @transform_4(%arg0: i32, %arg1: i32) -> (i32, i32) {
    %c0_i32 = arith.constant 0 : i32
    %c0_i32_0 = arith.constant 0 : i32
    %c0_i32_1 = arith.constant 0 : i32
    return %c0_i32, %c0_i32_0 : i32, i32
  }
  func.func @transform_5(%arg0: i32, %arg1: i32) -> (i32, i32, i32) {
    %c0_i32 = arith.constant 0 : i32
    %c0_i32_0 = arith.constant 0 : i32
    %c0_i32_1 = arith.constant 0 : i32
    return %arg0, %c0_i32, %c0_i32_0 : i32, i32, i32
  }
}

module attributes {stable_mosaic.version = 11 : i64} {
  func.func @_ca_apply_kernel(%arg0: i32, %arg1: i32, %arg2: memref<1x32x1xf32, #tpu.memory_space<vmem>>, %arg3: memref<1x16x256xf32, #tpu.memory_space<vmem>>, %arg4: memref<1x16x256xbf16, #tpu.memory_space<vmem>>, %arg5: memref<1x32x256xbf16, #tpu.memory_space<vmem>>, %arg6: memref<1x2x256xf32, #tpu.memory_space<vmem>>) attributes {dimension_semantics = [#tpu.dimension_semantics<parallel>, #tpu.dimension_semantics<parallel>], iteration_bounds = array<i64: 2, 1>, scalar_prefetch = 0 : i64, scratch_operands = 0 : i64, tpu.core_type = #tpu.core_type<tc>, window_params = [{transform_indices = @transform_0, window_bounds = array<i64: 1, 32, 1>}, {transform_indices = @transform_1, window_bounds = array<i64: 1, 16, 256>}, {transform_indices = @transform_2, window_bounds = array<i64: 1, 16, 256>}, {transform_indices = @transform_3, window_bounds = array<i64: 1, 32, 256>}, {transform_indices = @transform_4, window_bounds = array<i64: 1, 2, 256>}]} {
    %c0 = arith.constant 0 : index
    %c0_0 = arith.constant 0 : index
    %c0_1 = arith.constant 0 : index
    %0 = vector.load %arg2[%c0, %c0_0, %c0_1] : memref<1x32x1xf32, #tpu.memory_space<vmem>>, vector<1x32x1xf32>
    %c0_2 = arith.constant 0 : index
    %c0_3 = arith.constant 0 : index
    %c0_4 = arith.constant 0 : index
    %1 = vector.load %arg3[%c0_2, %c0_3, %c0_4] : memref<1x16x256xf32, #tpu.memory_space<vmem>>, vector<1x16x256xf32>
    %c0_5 = arith.constant 0 : index
    %c0_6 = arith.constant 0 : index
    %c0_7 = arith.constant 0 : index
    %2 = vector.load %arg4[%c0_5, %c0_6, %c0_7] : memref<1x16x256xbf16, #tpu.memory_space<vmem>>, vector<1x16x256xbf16>
    %3 = arith.extf %2 : vector<1x16x256xbf16> to vector<1x16x256xf32>
    %4 = vector.extract_strided_slice %0 {offsets = [0, 0, 0], sizes = [1, 16, 1], strides = [1, 1, 1]} : vector<1x32x1xf32> to vector<1x16x1xf32>
    %5 = vector.broadcast %4 : vector<1x16x1xf32> to vector<1x16x256xf32>
    %6 = arith.mulf %1, %5 : vector<1x16x256xf32>
    %7 = vector.extract_strided_slice %0 {offsets = [0, 16, 0], sizes = [1, 16, 1], strides = [1, 1, 1]} : vector<1x32x1xf32> to vector<1x16x1xf32>
    %8 = vector.broadcast %7 : vector<1x16x1xf32> to vector<1x16x256xf32>
    %9 = arith.mulf %3, %8 : vector<1x16x256xf32>
    %10 = arith.truncf %6 : vector<1x16x256xf32> to vector<1x16x256xbf16>
    %c0_8 = arith.constant 0 : index
    %c0_9 = arith.constant 0 : index
    %c0_10 = arith.constant 0 : index
    %11 = vector.load %arg5[%c0_8, %c0_9, %c0_10] : memref<1x32x256xbf16, #tpu.memory_space<vmem>>, vector<1x16x256xbf16>
    tpu.vector_store %arg5[%c0_8, %c0_9, %c0_10], %10 {strides = array<i32>} : memref<1x32x256xbf16, #tpu.memory_space<vmem>>, vector<1x16x256xbf16>,
    %12 = arith.truncf %9 : vector<1x16x256xf32> to vector<1x16x256xbf16>
    %c0_11 = arith.constant 0 : index
    %c16 = arith.constant 16 : index
    %c0_12 = arith.constant 0 : index
    %13 = vector.load %arg5[%c0_11, %c16, %c0_12] : memref<1x32x256xbf16, #tpu.memory_space<vmem>>, vector<1x16x256xbf16>
    tpu.vector_store %arg5[%c0_11, %c16, %c0_12], %12 {strides = array<i32>} : memref<1x32x256xbf16, #tpu.memory_space<vmem>>, vector<1x16x256xbf16>,
    %cst = arith.constant dense<0.000000e+00> : vector<1x256xf32>
    %14 = vector.multi_reduction <add>, %6, %cst [1] : vector<1x16x256xf32> to vector<1x256xf32>
    %15 = vector.shape_cast %14 : vector<1x256xf32> to vector<1x1x256xf32>
    %cst_13 = arith.constant dense<0.000000e+00> : vector<1x256xf32>
    %16 = vector.multi_reduction <add>, %9, %cst_13 [1] : vector<1x16x256xf32> to vector<1x256xf32>
    %17 = vector.shape_cast %16 : vector<1x256xf32> to vector<1x1x256xf32>
    %18 = arith.addf %15, %17 : vector<1x1x256xf32>
    %cst_14 = arith.constant dense<0xFF800000> : vector<1x256xf32>
    %19 = vector.multi_reduction <maximumf>, %6, %cst_14 [1] : vector<1x16x256xf32> to vector<1x256xf32>
    %20 = vector.shape_cast %19 : vector<1x256xf32> to vector<1x1x256xf32>
    %cst_15 = arith.constant dense<0xFF800000> : vector<1x256xf32>
    %21 = vector.multi_reduction <maximumf>, %9, %cst_15 [1] : vector<1x16x256xf32> to vector<1x256xf32>
    %22 = vector.shape_cast %21 : vector<1x256xf32> to vector<1x1x256xf32>
    %23 = arith.maximumf %20, %22 : vector<1x1x256xf32>
    %cst_16 = arith.constant 3.125000e-02 : f32
    %24 = vector.broadcast %cst_16 : f32 to vector<1x1x256xf32>
    %25 = arith.mulf %18, %24 : vector<1x1x256xf32>
    %c0_17 = arith.constant 0 : index
    %c0_18 = arith.constant 0 : index
    %c0_19 = arith.constant 0 : index
    %26 = vector.load %arg6[%c0_17, %c0_18, %c0_19] : memref<1x2x256xf32, #tpu.memory_space<vmem>>, vector<1x1x256xf32>
    tpu.vector_store %arg6[%c0_17, %c0_18, %c0_19], %25 {strides = array<i32>} : memref<1x2x256xf32, #tpu.memory_space<vmem>>, vector<1x1x256xf32>,
    %c0_20 = arith.constant 0 : index
    %c1 = arith.constant 1 : index
    %c0_21 = arith.constant 0 : index
    %27 = vector.load %arg6[%c0_20, %c1, %c0_21] : memref<1x2x256xf32, #tpu.memory_space<vmem>>, vector<1x1x256xf32>
    tpu.vector_store %arg6[%c0_20, %c1, %c0_21], %23 {strides = array<i32>} : memref<1x2x256xf32, #tpu.memory_space<vmem>>, vector<1x1x256xf32>,
    return
  }
  func.func @transform_0(%arg0: i32, %arg1: i32) -> (i32, i32, i32) {
    %c0_i32 = arith.constant 0 : i32
    %c0_i32_0 = arith.constant 0 : i32
    %c0_i32_1 = arith.constant 0 : i32
    return %arg0, %c0_i32, %c0_i32_0 : i32, i32, i32
  }
  func.func @transform_1(%arg0: i32, %arg1: i32) -> (i32, i32, i32) {
    %c0_i32 = arith.constant 0 : i32
    %c0_i32_0 = arith.constant 0 : i32
    return %arg0, %c0_i32, %arg1 : i32, i32, i32
  }
  func.func @transform_2(%arg0: i32, %arg1: i32) -> (i32, i32, i32) {
    %c0_i32 = arith.constant 0 : i32
    %c0_i32_0 = arith.constant 0 : i32
    return %arg0, %c0_i32, %arg1 : i32, i32, i32
  }
  func.func @transform_3(%arg0: i32, %arg1: i32) -> (i32, i32, i32) {
    %c0_i32 = arith.constant 0 : i32
    %c0_i32_0 = arith.constant 0 : i32
    return %arg0, %c0_i32, %arg1 : i32, i32, i32
  }
  func.func @transform_4(%arg0: i32, %arg1: i32) -> (i32, i32, i32) {
    %c0_i32 = arith.constant 0 : i32
    %c0_i32_0 = arith.constant 0 : i32
    return %arg0, %c0_i32, %arg1 : i32, i32, i32
  }
}

module attributes {stable_mosaic.version = 11 : i64} {
  func.func @_sa_conv2_kernel(%arg0: i32, %arg1: i32, %arg2: memref<1x256xi32, #tpu.memory_space<vmem>>, %arg3: memref<1x2x256xf32, #tpu.memory_space<vmem>>, %arg4: memref<1x32x256xbf16, #tpu.memory_space<vmem>>, %arg5: memref<32x144xbf16, #tpu.memory_space<vmem>>, %arg6: memref<16x1xf32, #tpu.memory_space<vmem>>, %arg7: memref<98xf32, #tpu.memory_space<smem>>, %arg8: memref<1xf32, #tpu.memory_space<smem>>, %arg9: memref<1x16x256xf32, #tpu.memory_space<vmem>>, %arg10: memref<1x256xf32, #tpu.memory_space<vmem>>, %arg11: memref<2x435xf32, #tpu.memory_space<vmem>>, %arg12: memref<32x401xbf16, #tpu.memory_space<vmem>>) attributes {dimension_semantics = [#tpu.dimension_semantics<parallel>, #tpu.dimension_semantics<arbitrary>], iteration_bounds = array<i64: 2, 1>, scalar_prefetch = 0 : i64, scratch_operands = 3 : i64, tpu.core_type = #tpu.core_type<tc>, window_params = [{pipeline_mode = #tpu.pipeline_mode<synchronous>, transform_indices = @transform_0, window_bounds = array<i64: 1, 256>}, {transform_indices = @transform_1, window_bounds = array<i64: 1, 2, 256>}, {transform_indices = @transform_2, window_bounds = array<i64: 1, 32, 256>}, {transform_indices = @transform_3, window_bounds = array<i64: 32, 144>}, {pipeline_mode = #tpu.pipeline_mode<synchronous>, transform_indices = @transform_4, window_bounds = array<i64: 16, 1>}, {transform_indices = @transform_5, window_bounds = array<i64: 98>}, {transform_indices = @transform_6, window_bounds = array<i64: 1>}, {transform_indices = @transform_7, window_bounds = array<i64: 1, 16, 256>}]} {
    %c0 = arith.constant 0 : index
    %c0_0 = arith.constant 0 : index
    %0 = vector.load %arg2[%c0, %c0_0] : memref<1x256xi32, #tpu.memory_space<vmem>>, vector<1x256xi32>
    %c0_i32 = arith.constant 0 : i32
    %1 = arith.cmpi eq, %arg1, %c0_i32 : i32
    %2 = arith.extui %1 : i1 to i32
    %c0_i32_1 = arith.constant 0 : i32
    %3 = arith.cmpi ne, %2, %c0_i32_1 : i32
    scf.if %3 {
      %cst_42 = arith.constant 0.000000e+00 : f32
      %77 = vector.broadcast %cst_42 : f32 to vector<2x435xf32>
      %c0_43 = arith.constant 0 : index
      %c0_44 = arith.constant 0 : index
      %78 = vector.load %arg11[%c0_43, %c0_44] : memref<2x435xf32, #tpu.memory_space<vmem>>, vector<2x435xf32>
      tpu.vector_store %arg11[%c0_43, %c0_44], %77 {strides = array<i32>} : memref<2x435xf32, #tpu.memory_space<vmem>>, vector<2x435xf32>,
      %cst_45 = arith.constant 0.000000e+00 : bf16
      %79 = vector.broadcast %cst_45 : bf16 to vector<32x401xbf16>
      %c0_46 = arith.constant 0 : index
      %c0_47 = arith.constant 0 : index
      %80 = vector.load %arg12[%c0_46, %c0_47] : memref<32x401xbf16, #tpu.memory_space<vmem>>, vector<32x401xbf16>
      tpu.vector_store %arg12[%c0_46, %c0_47], %79 {strides = array<i32>} : memref<32x401xbf16, #tpu.memory_space<vmem>>, vector<32x401xbf16>,
      %c0_48 = arith.constant 0 : index
      %c0_49 = arith.constant 0 : index
      %c0_50 = arith.constant 0 : index
      %81 = vector.load %arg3[%c0_48, %c0_49, %c0_50] : memref<1x2x256xf32, #tpu.memory_space<vmem>>, vector<1x2x256xf32>
      %82 = vector.shape_cast %81 : vector<1x2x256xf32> to vector<2x256xf32>
      %c0_51 = arith.constant 0 : index
      %c128_52 = arith.constant 128 : index
      %83 = vector.load %arg11[%c0_51, %c128_52] : memref<2x435xf32, #tpu.memory_space<vmem>>, vector<2x256xf32>
      tpu.vector_store %arg11[%c0_51, %c128_52], %82 {strides = array<i32>} : memref<2x435xf32, #tpu.memory_space<vmem>>, vector<2x256xf32>,
      %cst_53 = arith.constant 0.000000e+00 : f32
      %84 = vector.broadcast %cst_53 : f32 to vector<1x256xf32>
      %cst_54 = arith.constant 0.000000e+00 : f32
      %85 = vector.broadcast %cst_54 : f32 to vector<1x256xf32>
      %c0_55 = arith.constant 0 : index
      %86 = memref.load %arg7[%c0_55] : memref<98xf32, #tpu.memory_space<smem>>
      %c0_56 = arith.constant 0 : index
      %c77 = arith.constant 77 : index
      %87 = vector.load %arg11[%c0_56, %c77] : memref<2x435xf32, #tpu.memory_space<vmem>>, vector<1x256xf32>
      %88 = vector.broadcast %86 : f32 to vector<1x256xf32>
      %89 = arith.mulf %88, %87 : vector<1x256xf32>
      %90 = arith.addf %85, %89 : vector<1x256xf32>
      %c7 = arith.constant 7 : index
      %91 = memref.load %arg7[%c7] : memref<98xf32, #tpu.memory_space<smem>>
      %c0_57 = arith.constant 0 : index
      %c93 = arith.constant 93 : index
      %92 = vector.load %arg11[%c0_57, %c93] : memref<2x435xf32, #tpu.memory_space<vmem>>, vector<1x256xf32>
      %93 = vector.broadcast %91 : f32 to vector<1x256xf32>
      %94 = arith.mulf %93, %92 : vector<1x256xf32>
      %95 = arith.addf %90, %94 : vector<1x256xf32>
      %c14 = arith.constant 14 : index
      %96 = memref.load %arg7[%c14] : memref<98xf32, #tpu.memory_space<smem>>
      %c0_58 = arith.constant 0 : index
      %c109 = arith.constant 109 : index
      %97 = vector.load %arg11[%c0_58, %c109] : memref<2x435xf32, #tpu.memory_space<vmem>>, vector<1x256xf32>
      %98 = vector.broadcast %96 : f32 to vector<1x256xf32>
      %99 = arith.mulf %98, %97 : vector<1x256xf32>
      %100 = arith.addf %95, %99 : vector<1x256xf32>
      %c21 = arith.constant 21 : index
      %101 = memref.load %arg7[%c21] : memref<98xf32, #tpu.memory_space<smem>>
      %c0_59 = arith.constant 0 : index
      %c125 = arith.constant 125 : index
      %102 = vector.load %arg11[%c0_59, %c125] : memref<2x435xf32, #tpu.memory_space<vmem>>, vector<1x256xf32>
      %103 = vector.broadcast %101 : f32 to vector<1x256xf32>
      %104 = arith.mulf %103, %102 : vector<1x256xf32>
      %105 = arith.addf %100, %104 : vector<1x256xf32>
      %c28 = arith.constant 28 : index
      %106 = memref.load %arg7[%c28] : memref<98xf32, #tpu.memory_space<smem>>
      %c0_60 = arith.constant 0 : index
      %c141 = arith.constant 141 : index
      %107 = vector.load %arg11[%c0_60, %c141] : memref<2x435xf32, #tpu.memory_space<vmem>>, vector<1x256xf32>
      %108 = vector.broadcast %106 : f32 to vector<1x256xf32>
      %109 = arith.mulf %108, %107 : vector<1x256xf32>
      %110 = arith.addf %105, %109 : vector<1x256xf32>
      %c35 = arith.constant 35 : index
      %111 = memref.load %arg7[%c35] : memref<98xf32, #tpu.memory_space<smem>>
      %c0_61 = arith.constant 0 : index
      %c157 = arith.constant 157 : index
      %112 = vector.load %arg11[%c0_61, %c157] : memref<2x435xf32, #tpu.memory_space<vmem>>, vector<1x256xf32>
      %113 = vector.broadcast %111 : f32 to vector<1x256xf32>
      %114 = arith.mulf %113, %112 : vector<1x256xf32>
      %115 = arith.addf %110, %114 : vector<1x256xf32>
      %c42 = arith.constant 42 : index
      %116 = memref.load %arg7[%c42] : memref<98xf32, #tpu.memory_space<smem>>
      %c0_62 = arith.constant 0 : index
      %c173 = arith.constant 173 : index
      %117 = vector.load %arg11[%c0_62, %c173] : memref<2x435xf32, #tpu.memory_space<vmem>>, vector<1x256xf32>
      %118 = vector.broadcast %116 : f32 to vector<1x256xf32>
      %119 = arith.mulf %118, %117 : vector<1x256xf32>
      %120 = arith.addf %115, %119 : vector<1x256xf32>
      %c49 = arith.constant 49 : index
      %121 = memref.load %arg7[%c49] : memref<98xf32, #tpu.memory_space<smem>>
      %c1 = arith.constant 1 : index
      %c77_63 = arith.constant 77 : index
      %122 = vector.load %arg11[%c1, %c77_63] : memref<2x435xf32, #tpu.memory_space<vmem>>, vector<1x256xf32>
      %123 = vector.broadcast %121 : f32 to vector<1x256xf32>
      %124 = arith.mulf %123, %122 : vector<1x256xf32>
      %125 = arith.addf %120, %124 : vector<1x256xf32>
      %c56 = arith.constant 56 : index
      %126 = memref.load %arg7[%c56] : memref<98xf32, #tpu.memory_space<smem>>
      %c1_64 = arith.constant 1 : index
      %c93_65 = arith.constant 93 : index
      %127 = vector.load %arg11[%c1_64, %c93_65] : memref<2x435xf32, #tpu.memory_space<vmem>>, vector<1x256xf32>
      %128 = vector.broadcast %126 : f32 to vector<1x256xf32>
      %129 = arith.mulf %128, %127 : vector<1x256xf32>
      %130 = arith.addf %125, %129 : vector<1x256xf32>
      %c63 = arith.constant 63 : index
      %131 = memref.load %arg7[%c63] : memref<98xf32, #tpu.memory_space<smem>>
      %c1_66 = arith.constant 1 : index
      %c109_67 = arith.constant 109 : index
      %132 = vector.load %arg11[%c1_66, %c109_67] : memref<2x435xf32, #tpu.memory_space<vmem>>, vector<1x256xf32>
      %133 = vector.broadcast %131 : f32 to vector<1x256xf32>
      %134 = arith.mulf %133, %132 : vector<1x256xf32>
      %135 = arith.addf %130, %134 : vector<1x256xf32>
      %c70 = arith.constant 70 : index
      %136 = memref.load %arg7[%c70] : memref<98xf32, #tpu.memory_space<smem>>
      %c1_68 = arith.constant 1 : index
      %c125_69 = arith.constant 125 : index
      %137 = vector.load %arg11[%c1_68, %c125_69] : memref<2x435xf32, #tpu.memory_space<vmem>>, vector<1x256xf32>
      %138 = vector.broadcast %136 : f32 to vector<1x256xf32>
      %139 = arith.mulf %138, %137 : vector<1x256xf32>
      %140 = arith.addf %135, %139 : vector<1x256xf32>
      %c77_70 = arith.constant 77 : index
      %141 = memref.load %arg7[%c77_70] : memref<98xf32, #tpu.memory_space<smem>>
      %c1_71 = arith.constant 1 : index
      %c141_72 = arith.constant 141 : index
      %142 = vector.load %arg11[%c1_71, %c141_72] : memref<2x435xf32, #tpu.memory_space<vmem>>, vector<1x256xf32>
      %143 = vector.broadcast %141 : f32 to vector<1x256xf32>
      %144 = arith.mulf %143, %142 : vector<1x256xf32>
      %145 = arith.addf %140, %144 : vector<1x256xf32>
      %c84 = arith.constant 84 : index
      %146 = memref.load %arg7[%c84] : memref<98xf32, #tpu.memory_space<smem>>
      %c1_73 = arith.constant 1 : index
      %c157_74 = arith.constant 157 : index
      %147 = vector.load %arg11[%c1_73, %c157_74] : memref<2x435xf32, #tpu.memory_space<vmem>>, vector<1x256xf32>
      %148 = vector.broadcast %146 : f32 to vector<1x256xf32>
      %149 = arith.mulf %148, %147 : vector<1x256xf32>
      %150 = arith.addf %145, %149 : vector<1x256xf32>
      %c91 = arith.constant 91 : index
      %151 = memref.load %arg7[%c91] : memref<98xf32, #tpu.memory_space<smem>>
      %c1_75 = arith.constant 1 : index
      %c173_76 = arith.constant 173 : index
      %152 = vector.load %arg11[%c1_75, %c173_76] : memref<2x435xf32, #tpu.memory_space<vmem>>, vector<1x256xf32>
      %153 = vector.broadcast %151 : f32 to vector<1x256xf32>
      %154 = arith.mulf %153, %152 : vector<1x256xf32>
      %155 = arith.addf %150, %154 : vector<1x256xf32>
      %c3_i32 = arith.constant 3 : i32
      %156 = vector.broadcast %c3_i32 : i32 to vector<1x256xi32>
      %157 = arith.cmpi sge, %0, %156 : vector<1x256xi32>
      %c15_i32 = arith.constant 15 : i32
      %158 = vector.broadcast %c15_i32 : i32 to vector<1x256xi32>
      %159 = arith.cmpi sle, %0, %158 : vector<1x256xi32>
      %160 = arith.andi %157, %159 : vector<1x256xi1>
      %cst_77 = arith.constant 0.000000e+00 : f32
      %161 = vector.broadcast %cst_77 : f32 to vector<1x256xf32>
      %162 = arith.select %160, %155, %161 : vector<1x256xi1>, vector<1x256xf32>
      %163 = arith.addf %84, %162 : vector<1x256xf32>
      %cst_78 = arith.constant 0.000000e+00 : f32
      %164 = vector.broadcast %cst_78 : f32 to vector<1x256xf32>
      %c1_79 = arith.constant 1 : index
      %165 = memref.load %arg7[%c1_79] : memref<98xf32, #tpu.memory_space<smem>>
      %c0_80 = arith.constant 0 : index
      %c78 = arith.constant 78 : index
      %166 = vector.load %arg11[%c0_80, %c78] : memref<2x435xf32, #tpu.memory_space<vmem>>, vector<1x256xf32>
      %167 = vector.broadcast %165 : f32 to vector<1x256xf32>
      %168 = arith.mulf %167, %166 : vector<1x256xf32>
      %169 = arith.addf %164, %168 : vector<1x256xf32>
      %c8 = arith.constant 8 : index
      %170 = memref.load %arg7[%c8] : memref<98xf32, #tpu.memory_space<smem>>
      %c0_81 = arith.constant 0 : index
      %c94 = arith.constant 94 : index
      %171 = vector.load %arg11[%c0_81, %c94] : memref<2x435xf32, #tpu.memory_space<vmem>>, vector<1x256xf32>
      %172 = vector.broadcast %170 : f32 to vector<1x256xf32>
      %173 = arith.mulf %172, %171 : vector<1x256xf32>
      %174 = arith.addf %169, %173 : vector<1x256xf32>
      %c15 = arith.constant 15 : index
      %175 = memref.load %arg7[%c15] : memref<98xf32, #tpu.memory_space<smem>>
      %c0_82 = arith.constant 0 : index
      %c110 = arith.constant 110 : index
      %176 = vector.load %arg11[%c0_82, %c110] : memref<2x435xf32, #tpu.memory_space<vmem>>, vector<1x256xf32>
      %177 = vector.broadcast %175 : f32 to vector<1x256xf32>
      %178 = arith.mulf %177, %176 : vector<1x256xf32>
      %179 = arith.addf %174, %178 : vector<1x256xf32>
      %c22 = arith.constant 22 : index
      %180 = memref.load %arg7[%c22] : memref<98xf32, #tpu.memory_space<smem>>
      %c0_83 = arith.constant 0 : index
      %c126 = arith.constant 126 : index
      %181 = vector.load %arg11[%c0_83, %c126] : memref<2x435xf32, #tpu.memory_space<vmem>>, vector<1x256xf32>
      %182 = vector.broadcast %180 : f32 to vector<1x256xf32>
      %183 = arith.mulf %182, %181 : vector<1x256xf32>
      %184 = arith.addf %179, %183 : vector<1x256xf32>
      %c29 = arith.constant 29 : index
      %185 = memref.load %arg7[%c29] : memref<98xf32, #tpu.memory_space<smem>>
      %c0_84 = arith.constant 0 : index
      %c142 = arith.constant 142 : index
      %186 = vector.load %arg11[%c0_84, %c142] : memref<2x435xf32, #tpu.memory_space<vmem>>, vector<1x256xf32>
      %187 = vector.broadcast %185 : f32 to vector<1x256xf32>
      %188 = arith.mulf %187, %186 : vector<1x256xf32>
      %189 = arith.addf %184, %188 : vector<1x256xf32>
      %c36 = arith.constant 36 : index
      %190 = memref.load %arg7[%c36] : memref<98xf32, #tpu.memory_space<smem>>
      %c0_85 = arith.constant 0 : index
      %c158 = arith.constant 158 : index
      %191 = vector.load %arg11[%c0_85, %c158] : memref<2x435xf32, #tpu.memory_space<vmem>>, vector<1x256xf32>
      %192 = vector.broadcast %190 : f32 to vector<1x256xf32>
      %193 = arith.mulf %192, %191 : vector<1x256xf32>
      %194 = arith.addf %189, %193 : vector<1x256xf32>
      %c43 = arith.constant 43 : index
      %195 = memref.load %arg7[%c43] : memref<98xf32, #tpu.memory_space<smem>>
      %c0_86 = arith.constant 0 : index
      %c174 = arith.constant 174 : index
      %196 = vector.load %arg11[%c0_86, %c174] : memref<2x435xf32, #tpu.memory_space<vmem>>, vector<1x256xf32>
      %197 = vector.broadcast %195 : f32 to vector<1x256xf32>
      %198 = arith.mulf %197, %196 : vector<1x256xf32>
      %199 = arith.addf %194, %198 : vector<1x256xf32>
      %c50 = arith.constant 50 : index
      %200 = memref.load %arg7[%c50] : memref<98xf32, #tpu.memory_space<smem>>
      %c1_87 = arith.constant 1 : index
      %c78_88 = arith.constant 78 : index
      %201 = vector.load %arg11[%c1_87, %c78_88] : memref<2x435xf32, #tpu.memory_space<vmem>>, vector<1x256xf32>
      %202 = vector.broadcast %200 : f32 to vector<1x256xf32>
      %203 = arith.mulf %202, %201 : vector<1x256xf32>
      %204 = arith.addf %199, %203 : vector<1x256xf32>
      %c57 = arith.constant 57 : index
      %205 = memref.load %arg7[%c57] : memref<98xf32, #tpu.memory_space<smem>>
      %c1_89 = arith.constant 1 : index
      %c94_90 = arith.constant 94 : index
      %206 = vector.load %arg11[%c1_89, %c94_90] : memref<2x435xf32, #tpu.memory_space<vmem>>, vector<1x256xf32>
      %207 = vector.broadcast %205 : f32 to vector<1x256xf32>
      %208 = arith.mulf %207, %206 : vector<1x256xf32>
      %209 = arith.addf %204, %208 : vector<1x256xf32>
      %c64 = arith.constant 64 : index
      %210 = memref.load %arg7[%c64] : memref<98xf32, #tpu.memory_space<smem>>
      %c1_91 = arith.constant 1 : index
      %c110_92 = arith.constant 110 : index
      %211 = vector.load %arg11[%c1_91, %c110_92] : memref<2x435xf32, #tpu.memory_space<vmem>>, vector<1x256xf32>
      %212 = vector.broadcast %210 : f32 to vector<1x256xf32>
      %213 = arith.mulf %212, %211 : vector<1x256xf32>
      %214 = arith.addf %209, %213 : vector<1x256xf32>
      %c71 = arith.constant 71 : index
      %215 = memref.load %arg7[%c71] : memref<98xf32, #tpu.memory_space<smem>>
      %c1_93 = arith.constant 1 : index
      %c126_94 = arith.constant 126 : index
      %216 = vector.load %arg11[%c1_93, %c126_94] : memref<2x435xf32, #tpu.memory_space<vmem>>, vector<1x256xf32>
      %217 = vector.broadcast %215 : f32 to vector<1x256xf32>
      %218 = arith.mulf %217, %216 : vector<1x256xf32>
      %219 = arith.addf %214, %218 : vector<1x256xf32>
      %c78_95 = arith.constant 78 : index
      %220 = memref.load %arg7[%c78_95] : memref<98xf32, #tpu.memory_space<smem>>
      %c1_96 = arith.constant 1 : index
      %c142_97 = arith.constant 142 : index
      %221 = vector.load %arg11[%c1_96, %c142_97] : memref<2x435xf32, #tpu.memory_space<vmem>>, vector<1x256xf32>
      %222 = vector.broadcast %220 : f32 to vector<1x256xf32>
      %223 = arith.mulf %222, %221 : vector<1x256xf32>
      %224 = arith.addf %219, %223 : vector<1x256xf32>
      %c85 = arith.constant 85 : index
      %225 = memref.load %arg7[%c85] : memref<98xf32, #tpu.memory_space<smem>>
      %c1_98 = arith.constant 1 : index
      %c158_99 = arith.constant 158 : index
      %226 = vector.load %arg11[%c1_98, %c158_99] : memref<2x435xf32, #tpu.memory_space<vmem>>, vector<1x256xf32>
      %227 = vector.broadcast %225 : f32 to vector<1x256xf32>
      %228 = arith.mulf %227, %226 : vector<1x256xf32>
      %229 = arith.addf %224, %228 : vector<1x256xf32>
      %c92 = arith.constant 92 : index
      %230 = memref.load %arg7[%c92] : memref<98xf32, #tpu.memory_space<smem>>
      %c1_100 = arith.constant 1 : index
      %c174_101 = arith.constant 174 : index
      %231 = vector.load %arg11[%c1_100, %c174_101] : memref<2x435xf32, #tpu.memory_space<vmem>>, vector<1x256xf32>
      %232 = vector.broadcast %230 : f32 to vector<1x256xf32>
      %233 = arith.mulf %232, %231 : vector<1x256xf32>
      %234 = arith.addf %229, %233 : vector<1x256xf32>
      %c2_i32 = arith.constant 2 : i32
      %235 = vector.broadcast %c2_i32 : i32 to vector<1x256xi32>
      %236 = arith.cmpi sge, %0, %235 : vector<1x256xi32>
      %c15_i32_102 = arith.constant 15 : i32
      %237 = vector.broadcast %c15_i32_102 : i32 to vector<1x256xi32>
      %238 = arith.cmpi sle, %0, %237 : vector<1x256xi32>
      %239 = arith.andi %236, %238 : vector<1x256xi1>
      %cst_103 = arith.constant 0.000000e+00 : f32
      %240 = vector.broadcast %cst_103 : f32 to vector<1x256xf32>
      %241 = arith.select %239, %234, %240 : vector<1x256xi1>, vector<1x256xf32>
      %242 = arith.addf %163, %241 : vector<1x256xf32>
      %cst_104 = arith.constant 0.000000e+00 : f32
      %243 = vector.broadcast %cst_104 : f32 to vector<1x256xf32>
      %c2 = arith.constant 2 : index
      %244 = memref.load %arg7[%c2] : memref<98xf32, #tpu.memory_space<smem>>
      %c0_105 = arith.constant 0 : index
      %c79 = arith.constant 79 : index
      %245 = vector.load %arg11[%c0_105, %c79] : memref<2x435xf32, #tpu.memory_space<vmem>>, vector<1x256xf32>
      %246 = vector.broadcast %244 : f32 to vector<1x256xf32>
      %247 = arith.mulf %246, %245 : vector<1x256xf32>
      %248 = arith.addf %243, %247 : vector<1x256xf32>
      %c9 = arith.constant 9 : index
      %249 = memref.load %arg7[%c9] : memref<98xf32, #tpu.memory_space<smem>>
      %c0_106 = arith.constant 0 : index
      %c95 = arith.constant 95 : index
      %250 = vector.load %arg11[%c0_106, %c95] : memref<2x435xf32, #tpu.memory_space<vmem>>, vector<1x256xf32>
      %251 = vector.broadcast %249 : f32 to vector<1x256xf32>
      %252 = arith.mulf %251, %250 : vector<1x256xf32>
      %253 = arith.addf %248, %252 : vector<1x256xf32>
      %c16 = arith.constant 16 : index
      %254 = memref.load %arg7[%c16] : memref<98xf32, #tpu.memory_space<smem>>
      %c0_107 = arith.constant 0 : index
      %c111_108 = arith.constant 111 : index
      %255 = vector.load %arg11[%c0_107, %c111_108] : memref<2x435xf32, #tpu.memory_space<vmem>>, vector<1x256xf32>
      %256 = vector.broadcast %254 : f32 to vector<1x256xf32>
      %257 = arith.mulf %256, %255 : vector<1x256xf32>
      %258 = arith.addf %253, %257 : vector<1x256xf32>
      %c23 = arith.constant 23 : index
      %259 = memref.load %arg7[%c23] : memref<98xf32, #tpu.memory_space<smem>>
      %c0_109 = arith.constant 0 : index
      %c127_110 = arith.constant 127 : index
      %260 = vector.load %arg11[%c0_109, %c127_110] : memref<2x435xf32, #tpu.memory_space<vmem>>, vector<1x256xf32>
      %261 = vector.broadcast %259 : f32 to vector<1x256xf32>
      %262 = arith.mulf %261, %260 : vector<1x256xf32>
      %263 = arith.addf %258, %262 : vector<1x256xf32>
      %c30 = arith.constant 30 : index
      %264 = memref.load %arg7[%c30] : memref<98xf32, #tpu.memory_space<smem>>
      %c0_111 = arith.constant 0 : index
      %c143_112 = arith.constant 143 : index
      %265 = vector.load %arg11[%c0_111, %c143_112] : memref<2x435xf32, #tpu.memory_space<vmem>>, vector<1x256xf32>
      %266 = vector.broadcast %264 : f32 to vector<1x256xf32>
      %267 = arith.mulf %266, %265 : vector<1x256xf32>
      %268 = arith.addf %263, %267 : vector<1x256xf32>
      %c37 = arith.constant 37 : index
      %269 = memref.load %arg7[%c37] : memref<98xf32, #tpu.memory_space<smem>>
      %c0_113 = arith.constant 0 : index
      %c159 = arith.constant 159 : index
      %270 = vector.load %arg11[%c0_113, %c159] : memref<2x435xf32, #tpu.memory_space<vmem>>, vector<1x256xf32>
      %271 = vector.broadcast %269 : f32 to vector<1x256xf32>
      %272 = arith.mulf %271, %270 : vector<1x256xf32>
      %273 = arith.addf %268, %272 : vector<1x256xf32>
      %c44 = arith.constant 44 : index
      %274 = memref.load %arg7[%c44] : memref<98xf32, #tpu.memory_space<smem>>
      %c0_114 = arith.constant 0 : index
      %c175 = arith.constant 175 : index
      %275 = vector.load %arg11[%c0_114, %c175] : memref<2x435xf32, #tpu.memory_space<vmem>>, vector<1x256xf32>
      %276 = vector.broadcast %274 : f32 to vector<1x256xf32>
      %277 = arith.mulf %276, %275 : vector<1x256xf32>
      %278 = arith.addf %273, %277 : vector<1x256xf32>
      %c51 = arith.constant 51 : index
      %279 = memref.load %arg7[%c51] : memref<98xf32, #tpu.memory_space<smem>>
      %c1_115 = arith.constant 1 : index
      %c79_116 = arith.constant 79 : index
      %280 = vector.load %arg11[%c1_115, %c79_116] : memref<2x435xf32, #tpu.memory_space<vmem>>, vector<1x256xf32>
      %281 = vector.broadcast %279 : f32 to vector<1x256xf32>
      %282 = arith.mulf %281, %280 : vector<1x256xf32>
      %283 = arith.addf %278, %282 : vector<1x256xf32>
      %c58 = arith.constant 58 : index
      %284 = memref.load %arg7[%c58] : memref<98xf32, #tpu.memory_space<smem>>
      %c1_117 = arith.constant 1 : index
      %c95_118 = arith.constant 95 : index
      %285 = vector.load %arg11[%c1_117, %c95_118] : memref<2x435xf32, #tpu.memory_space<vmem>>, vector<1x256xf32>
      %286 = vector.broadcast %284 : f32 to vector<1x256xf32>
      %287 = arith.mulf %286, %285 : vector<1x256xf32>
      %288 = arith.addf %283, %287 : vector<1x256xf32>
      %c65 = arith.constant 65 : index
      %289 = memref.load %arg7[%c65] : memref<98xf32, #tpu.memory_space<smem>>
      %c1_119 = arith.constant 1 : index
      %c111_120 = arith.constant 111 : index
      %290 = vector.load %arg11[%c1_119, %c111_120] : memref<2x435xf32, #tpu.memory_space<vmem>>, vector<1x256xf32>
      %291 = vector.broadcast %289 : f32 to vector<1x256xf32>
      %292 = arith.mulf %291, %290 : vector<1x256xf32>
      %293 = arith.addf %288, %292 : vector<1x256xf32>
      %c72 = arith.constant 72 : index
      %294 = memref.load %arg7[%c72] : memref<98xf32, #tpu.memory_space<smem>>
      %c1_121 = arith.constant 1 : index
      %c127_122 = arith.constant 127 : index
      %295 = vector.load %arg11[%c1_121, %c127_122] : memref<2x435xf32, #tpu.memory_space<vmem>>, vector<1x256xf32>
      %296 = vector.broadcast %294 : f32 to vector<1x256xf32>
      %297 = arith.mulf %296, %295 : vector<1x256xf32>
      %298 = arith.addf %293, %297 : vector<1x256xf32>
      %c79_123 = arith.constant 79 : index
      %299 = memref.load %arg7[%c79_123] : memref<98xf32, #tpu.memory_space<smem>>
      %c1_124 = arith.constant 1 : index
      %c143_125 = arith.constant 143 : index
      %300 = vector.load %arg11[%c1_124, %c143_125] : memref<2x435xf32, #tpu.memory_space<vmem>>, vector<1x256xf32>
      %301 = vector.broadcast %299 : f32 to vector<1x256xf32>
      %302 = arith.mulf %301, %300 : vector<1x256xf32>
      %303 = arith.addf %298, %302 : vector<1x256xf32>
      %c86 = arith.constant 86 : index
      %304 = memref.load %arg7[%c86] : memref<98xf32, #tpu.memory_space<smem>>
      %c1_126 = arith.constant 1 : index
      %c159_127 = arith.constant 159 : index
      %305 = vector.load %arg11[%c1_126, %c159_127] : memref<2x435xf32, #tpu.memory_space<vmem>>, vector<1x256xf32>
      %306 = vector.broadcast %304 : f32 to vector<1x256xf32>
      %307 = arith.mulf %306, %305 : vector<1x256xf32>
      %308 = arith.addf %303, %307 : vector<1x256xf32>
      %c93_128 = arith.constant 93 : index
      %309 = memref.load %arg7[%c93_128] : memref<98xf32, #tpu.memory_space<smem>>
      %c1_129 = arith.constant 1 : index
      %c175_130 = arith.constant 175 : index
      %310 = vector.load %arg11[%c1_129, %c175_130] : memref<2x435xf32, #tpu.memory_space<vmem>>, vector<1x256xf32>
      %311 = vector.broadcast %309 : f32 to vector<1x256xf32>
      %312 = arith.mulf %311, %310 : vector<1x256xf32>
      %313 = arith.addf %308, %312 : vector<1x256xf32>
      %c1_i32_131 = arith.constant 1 : i32
      %314 = vector.broadcast %c1_i32_131 : i32 to vector<1x256xi32>
      %315 = arith.cmpi sge, %0, %314 : vector<1x256xi32>
      %c15_i32_132 = arith.constant 15 : i32
      %316 = vector.broadcast %c15_i32_132 : i32 to vector<1x256xi32>
      %317 = arith.cmpi sle, %0, %316 : vector<1x256xi32>
      %318 = arith.andi %315, %317 : vector<1x256xi1>
      %cst_133 = arith.constant 0.000000e+00 : f32
      %319 = vector.broadcast %cst_133 : f32 to vector<1x256xf32>
      %320 = arith.select %318, %313, %319 : vector<1x256xi1>, vector<1x256xf32>
      %321 = arith.addf %242, %320 : vector<1x256xf32>
      %cst_134 = arith.constant 0.000000e+00 : f32
      %322 = vector.broadcast %cst_134 : f32 to vector<1x256xf32>
      %c3 = arith.constant 3 : index
      %323 = memref.load %arg7[%c3] : memref<98xf32, #tpu.memory_space<smem>>
      %c0_135 = arith.constant 0 : index
      %c80 = arith.constant 80 : index
      %324 = vector.load %arg11[%c0_135, %c80] : memref<2x435xf32, #tpu.memory_space<vmem>>, vector<1x256xf32>
      %325 = vector.broadcast %323 : f32 to vector<1x256xf32>
      %326 = arith.mulf %325, %324 : vector<1x256xf32>
      %327 = arith.addf %322, %326 : vector<1x256xf32>
      %c10 = arith.constant 10 : index
      %328 = memref.load %arg7[%c10] : memref<98xf32, #tpu.memory_space<smem>>
      %c0_136 = arith.constant 0 : index
      %c96 = arith.constant 96 : index
      %329 = vector.load %arg11[%c0_136, %c96] : memref<2x435xf32, #tpu.memory_space<vmem>>, vector<1x256xf32>
      %330 = vector.broadcast %328 : f32 to vector<1x256xf32>
      %331 = arith.mulf %330, %329 : vector<1x256xf32>
      %332 = arith.addf %327, %331 : vector<1x256xf32>
      %c17 = arith.constant 17 : index
      %333 = memref.load %arg7[%c17] : memref<98xf32, #tpu.memory_space<smem>>
      %c0_137 = arith.constant 0 : index
      %c112_138 = arith.constant 112 : index
      %334 = vector.load %arg11[%c0_137, %c112_138] : memref<2x435xf32, #tpu.memory_space<vmem>>, vector<1x256xf32>
      %335 = vector.broadcast %333 : f32 to vector<1x256xf32>
      %336 = arith.mulf %335, %334 : vector<1x256xf32>
      %337 = arith.addf %332, %336 : vector<1x256xf32>
      %c24 = arith.constant 24 : index
      %338 = memref.load %arg7[%c24] : memref<98xf32, #tpu.memory_space<smem>>
      %c0_139 = arith.constant 0 : index
      %c128_140 = arith.constant 128 : index
      %339 = vector.load %arg11[%c0_139, %c128_140] : memref<2x435xf32, #tpu.memory_space<vmem>>, vector<1x256xf32>
      %340 = vector.broadcast %338 : f32 to vector<1x256xf32>
      %341 = arith.mulf %340, %339 : vector<1x256xf32>
      %342 = arith.addf %337, %341 : vector<1x256xf32>
      %c31 = arith.constant 31 : index
      %343 = memref.load %arg7[%c31] : memref<98xf32, #tpu.memory_space<smem>>
      %c0_141 = arith.constant 0 : index
      %c144_142 = arith.constant 144 : index
      %344 = vector.load %arg11[%c0_141, %c144_142] : memref<2x435xf32, #tpu.memory_space<vmem>>, vector<1x256xf32>
      %345 = vector.broadcast %343 : f32 to vector<1x256xf32>
      %346 = arith.mulf %345, %344 : vector<1x256xf32>
      %347 = arith.addf %342, %346 : vector<1x256xf32>
      %c38 = arith.constant 38 : index
      %348 = memref.load %arg7[%c38] : memref<98xf32, #tpu.memory_space<smem>>
      %c0_143 = arith.constant 0 : index
      %c160 = arith.constant 160 : index
      %349 = vector.load %arg11[%c0_143, %c160] : memref<2x435xf32, #tpu.memory_space<vmem>>, vector<1x256xf32>
      %350 = vector.broadcast %348 : f32 to vector<1x256xf32>
      %351 = arith.mulf %350, %349 : vector<1x256xf32>
      %352 = arith.addf %347, %351 : vector<1x256xf32>
      %c45 = arith.constant 45 : index
      %353 = memref.load %arg7[%c45] : memref<98xf32, #tpu.memory_space<smem>>
      %c0_144 = arith.constant 0 : index
      %c176 = arith.constant 176 : index
      %354 = vector.load %arg11[%c0_144, %c176] : memref<2x435xf32, #tpu.memory_space<vmem>>, vector<1x256xf32>
      %355 = vector.broadcast %353 : f32 to vector<1x256xf32>
      %356 = arith.mulf %355, %354 : vector<1x256xf32>
      %357 = arith.addf %352, %356 : vector<1x256xf32>
      %c52 = arith.constant 52 : index
      %358 = memref.load %arg7[%c52] : memref<98xf32, #tpu.memory_space<smem>>
      %c1_145 = arith.constant 1 : index
      %c80_146 = arith.constant 80 : index
      %359 = vector.load %arg11[%c1_145, %c80_146] : memref<2x435xf32, #tpu.memory_space<vmem>>, vector<1x256xf32>
      %360 = vector.broadcast %358 : f32 to vector<1x256xf32>
      %361 = arith.mulf %360, %359 : vector<1x256xf32>
      %362 = arith.addf %357, %361 : vector<1x256xf32>
      %c59 = arith.constant 59 : index
      %363 = memref.load %arg7[%c59] : memref<98xf32, #tpu.memory_space<smem>>
      %c1_147 = arith.constant 1 : index
      %c96_148 = arith.constant 96 : index
      %364 = vector.load %arg11[%c1_147, %c96_148] : memref<2x435xf32, #tpu.memory_space<vmem>>, vector<1x256xf32>
      %365 = vector.broadcast %363 : f32 to vector<1x256xf32>
      %366 = arith.mulf %365, %364 : vector<1x256xf32>
      %367 = arith.addf %362, %366 : vector<1x256xf32>
      %c66 = arith.constant 66 : index
      %368 = memref.load %arg7[%c66] : memref<98xf32, #tpu.memory_space<smem>>
      %c1_149 = arith.constant 1 : index
      %c112_150 = arith.constant 112 : index
      %369 = vector.load %arg11[%c1_149, %c112_150] : memref<2x435xf32, #tpu.memory_space<vmem>>, vector<1x256xf32>
      %370 = vector.broadcast %368 : f32 to vector<1x256xf32>
      %371 = arith.mulf %370, %369 : vector<1x256xf32>
      %372 = arith.addf %367, %371 : vector<1x256xf32>
      %c73 = arith.constant 73 : index
      %373 = memref.load %arg7[%c73] : memref<98xf32, #tpu.memory_space<smem>>
      %c1_151 = arith.constant 1 : index
      %c128_152 = arith.constant 128 : index
      %374 = vector.load %arg11[%c1_151, %c128_152] : memref<2x435xf32, #tpu.memory_space<vmem>>, vector<1x256xf32>
      %375 = vector.broadcast %373 : f32 to vector<1x256xf32>
      %376 = arith.mulf %375, %374 : vector<1x256xf32>
      %377 = arith.addf %372, %376 : vector<1x256xf32>
      %c80_153 = arith.constant 80 : index
      %378 = memref.load %arg7[%c80_153] : memref<98xf32, #tpu.memory_space<smem>>
      %c1_154 = arith.constant 1 : index
      %c144_155 = arith.constant 144 : index
      %379 = vector.load %arg11[%c1_154, %c144_155] : memref<2x435xf32, #tpu.memory_space<vmem>>, vector<1x256xf32>
      %380 = vector.broadcast %378 : f32 to vector<1x256xf32>
      %381 = arith.mulf %380, %379 : vector<1x256xf32>
      %382 = arith.addf %377, %381 : vector<1x256xf32>
      %c87 = arith.constant 87 : index
      %383 = memref.load %arg7[%c87] : memref<98xf32, #tpu.memory_space<smem>>
      %c1_156 = arith.constant 1 : index
      %c160_157 = arith.constant 160 : index
      %384 = vector.load %arg11[%c1_156, %c160_157] : memref<2x435xf32, #tpu.memory_space<vmem>>, vector<1x256xf32>
      %385 = vector.broadcast %383 : f32 to vector<1x256xf32>
      %386 = arith.mulf %385, %384 : vector<1x256xf32>
      %387 = arith.addf %382, %386 : vector<1x256xf32>
      %c94_158 = arith.constant 94 : index
      %388 = memref.load %arg7[%c94_158] : memref<98xf32, #tpu.memory_space<smem>>
      %c1_159 = arith.constant 1 : index
      %c176_160 = arith.constant 176 : index
      %389 = vector.load %arg11[%c1_159, %c176_160] : memref<2x435xf32, #tpu.memory_space<vmem>>, vector<1x256xf32>
      %390 = vector.broadcast %388 : f32 to vector<1x256xf32>
      %391 = arith.mulf %390, %389 : vector<1x256xf32>
      %392 = arith.addf %387, %391 : vector<1x256xf32>
      %393 = arith.addf %321, %392 : vector<1x256xf32>
      %cst_161 = arith.constant 0.000000e+00 : f32
      %394 = vector.broadcast %cst_161 : f32 to vector<1x256xf32>
      %c4 = arith.constant 4 : index
      %395 = memref.load %arg7[%c4] : memref<98xf32, #tpu.memory_space<smem>>
      %c0_162 = arith.constant 0 : index
      %c81 = arith.constant 81 : index
      %396 = vector.load %arg11[%c0_162, %c81] : memref<2x435xf32, #tpu.memory_space<vmem>>, vector<1x256xf32>
      %397 = vector.broadcast %395 : f32 to vector<1x256xf32>
      %398 = arith.mulf %397, %396 : vector<1x256xf32>
      %399 = arith.addf %394, %398 : vector<1x256xf32>
      %c11 = arith.constant 11 : index
      %400 = memref.load %arg7[%c11] : memref<98xf32, #tpu.memory_space<smem>>
      %c0_163 = arith.constant 0 : index
      %c97 = arith.constant 97 : index
      %401 = vector.load %arg11[%c0_163, %c97] : memref<2x435xf32, #tpu.memory_space<vmem>>, vector<1x256xf32>
      %402 = vector.broadcast %400 : f32 to vector<1x256xf32>
      %403 = arith.mulf %402, %401 : vector<1x256xf32>
      %404 = arith.addf %399, %403 : vector<1x256xf32>
      %c18 = arith.constant 18 : index
      %405 = memref.load %arg7[%c18] : memref<98xf32, #tpu.memory_space<smem>>
      %c0_164 = arith.constant 0 : index
      %c113_165 = arith.constant 113 : index
      %406 = vector.load %arg11[%c0_164, %c113_165] : memref<2x435xf32, #tpu.memory_space<vmem>>, vector<1x256xf32>
      %407 = vector.broadcast %405 : f32 to vector<1x256xf32>
      %408 = arith.mulf %407, %406 : vector<1x256xf32>
      %409 = arith.addf %404, %408 : vector<1x256xf32>
      %c25 = arith.constant 25 : index
      %410 = memref.load %arg7[%c25] : memref<98xf32, #tpu.memory_space<smem>>
      %c0_166 = arith.constant 0 : index
      %c129_167 = arith.constant 129 : index
      %411 = vector.load %arg11[%c0_166, %c129_167] : memref<2x435xf32, #tpu.memory_space<vmem>>, vector<1x256xf32>
      %412 = vector.broadcast %410 : f32 to vector<1x256xf32>
      %413 = arith.mulf %412, %411 : vector<1x256xf32>
      %414 = arith.addf %409, %413 : vector<1x256xf32>
      %c32 = arith.constant 32 : index
      %415 = memref.load %arg7[%c32] : memref<98xf32, #tpu.memory_space<smem>>
      %c0_168 = arith.constant 0 : index
      %c145_169 = arith.constant 145 : index
      %416 = vector.load %arg11[%c0_168, %c145_169] : memref<2x435xf32, #tpu.memory_space<vmem>>, vector<1x256xf32>
      %417 = vector.broadcast %415 : f32 to vector<1x256xf32>
      %418 = arith.mulf %417, %416 : vector<1x256xf32>
      %419 = arith.addf %414, %418 : vector<1x256xf32>
      %c39 = arith.constant 39 : index
      %420 = memref.load %arg7[%c39] : memref<98xf32, #tpu.memory_space<smem>>
      %c0_170 = arith.constant 0 : index
      %c161 = arith.constant 161 : index
      %421 = vector.load %arg11[%c0_170, %c161] : memref<2x435xf32, #tpu.memory_space<vmem>>, vector<1x256xf32>
      %422 = vector.broadcast %420 : f32 to vector<1x256xf32>
      %423 = arith.mulf %422, %421 : vector<1x256xf32>
      %424 = arith.addf %419, %423 : vector<1x256xf32>
      %c46 = arith.constant 46 : index
      %425 = memref.load %arg7[%c46] : memref<98xf32, #tpu.memory_space<smem>>
      %c0_171 = arith.constant 0 : index
      %c177 = arith.constant 177 : index
      %426 = vector.load %arg11[%c0_171, %c177] : memref<2x435xf32, #tpu.memory_space<vmem>>, vector<1x256xf32>
      %427 = vector.broadcast %425 : f32 to vector<1x256xf32>
      %428 = arith.mulf %427, %426 : vector<1x256xf32>
      %429 = arith.addf %424, %428 : vector<1x256xf32>
      %c53 = arith.constant 53 : index
      %430 = memref.load %arg7[%c53] : memref<98xf32, #tpu.memory_space<smem>>
      %c1_172 = arith.constant 1 : index
      %c81_173 = arith.constant 81 : index
      %431 = vector.load %arg11[%c1_172, %c81_173] : memref<2x435xf32, #tpu.memory_space<vmem>>, vector<1x256xf32>
      %432 = vector.broadcast %430 : f32 to vector<1x256xf32>
      %433 = arith.mulf %432, %431 : vector<1x256xf32>
      %434 = arith.addf %429, %433 : vector<1x256xf32>
      %c60 = arith.constant 60 : index
      %435 = memref.load %arg7[%c60] : memref<98xf32, #tpu.memory_space<smem>>
      %c1_174 = arith.constant 1 : index
      %c97_175 = arith.constant 97 : index
      %436 = vector.load %arg11[%c1_174, %c97_175] : memref<2x435xf32, #tpu.memory_space<vmem>>, vector<1x256xf32>
      %437 = vector.broadcast %435 : f32 to vector<1x256xf32>
      %438 = arith.mulf %437, %436 : vector<1x256xf32>
      %439 = arith.addf %434, %438 : vector<1x256xf32>
      %c67 = arith.constant 67 : index
      %440 = memref.load %arg7[%c67] : memref<98xf32, #tpu.memory_space<smem>>
      %c1_176 = arith.constant 1 : index
      %c113_177 = arith.constant 113 : index
      %441 = vector.load %arg11[%c1_176, %c113_177] : memref<2x435xf32, #tpu.memory_space<vmem>>, vector<1x256xf32>
      %442 = vector.broadcast %440 : f32 to vector<1x256xf32>
      %443 = arith.mulf %442, %441 : vector<1x256xf32>
      %444 = arith.addf %439, %443 : vector<1x256xf32>
      %c74 = arith.constant 74 : index
      %445 = memref.load %arg7[%c74] : memref<98xf32, #tpu.memory_space<smem>>
      %c1_178 = arith.constant 1 : index
      %c129_179 = arith.constant 129 : index
      %446 = vector.load %arg11[%c1_178, %c129_179] : memref<2x435xf32, #tpu.memory_space<vmem>>, vector<1x256xf32>
      %447 = vector.broadcast %445 : f32 to vector<1x256xf32>
      %448 = arith.mulf %447, %446 : vector<1x256xf32>
      %449 = arith.addf %444, %448 : vector<1x256xf32>
      %c81_180 = arith.constant 81 : index
      %450 = memref.load %arg7[%c81_180] : memref<98xf32, #tpu.memory_space<smem>>
      %c1_181 = arith.constant 1 : index
      %c145_182 = arith.constant 145 : index
      %451 = vector.load %arg11[%c1_181, %c145_182] : memref<2x435xf32, #tpu.memory_space<vmem>>, vector<1x256xf32>
      %452 = vector.broadcast %450 : f32 to vector<1x256xf32>
      %453 = arith.mulf %452, %451 : vector<1x256xf32>
      %454 = arith.addf %449, %453 : vector<1x256xf32>
      %c88 = arith.constant 88 : index
      %455 = memref.load %arg7[%c88] : memref<98xf32, #tpu.memory_space<smem>>
      %c1_183 = arith.constant 1 : index
      %c161_184 = arith.constant 161 : index
      %456 = vector.load %arg11[%c1_183, %c161_184] : memref<2x435xf32, #tpu.memory_space<vmem>>, vector<1x256xf32>
      %457 = vector.broadcast %455 : f32 to vector<1x256xf32>
      %458 = arith.mulf %457, %456 : vector<1x256xf32>
      %459 = arith.addf %454, %458 : vector<1x256xf32>
      %c95_185 = arith.constant 95 : index
      %460 = memref.load %arg7[%c95_185] : memref<98xf32, #tpu.memory_space<smem>>
      %c1_186 = arith.constant 1 : index
      %c177_187 = arith.constant 177 : index
      %461 = vector.load %arg11[%c1_186, %c177_187] : memref<2x435xf32, #tpu.memory_space<vmem>>, vector<1x256xf32>
      %462 = vector.broadcast %460 : f32 to vector<1x256xf32>
      %463 = arith.mulf %462, %461 : vector<1x256xf32>
      %464 = arith.addf %459, %463 : vector<1x256xf32>
      %c0_i32_188 = arith.constant 0 : i32
      %465 = vector.broadcast %c0_i32_188 : i32 to vector<1x256xi32>
      %466 = arith.cmpi sge, %0, %465 : vector<1x256xi32>
      %c14_i32_189 = arith.constant 14 : i32
      %467 = vector.broadcast %c14_i32_189 : i32 to vector<1x256xi32>
      %468 = arith.cmpi sle, %0, %467 : vector<1x256xi32>
      %469 = arith.andi %466, %468 : vector<1x256xi1>
      %cst_190 = arith.constant 0.000000e+00 : f32
      %470 = vector.broadcast %cst_190 : f32 to vector<1x256xf32>
      %471 = arith.select %469, %464, %470 : vector<1x256xi1>, vector<1x256xf32>
      %472 = arith.addf %393, %471 : vector<1x256xf32>
      %cst_191 = arith.constant 0.000000e+00 : f32
      %473 = vector.broadcast %cst_191 : f32 to vector<1x256xf32>
      %c5 = arith.constant 5 : index
      %474 = memref.load %arg7[%c5] : memref<98xf32, #tpu.memory_space<smem>>
      %c0_192 = arith.constant 0 : index
      %c82 = arith.constant 82 : index
      %475 = vector.load %arg11[%c0_192, %c82] : memref<2x435xf32, #tpu.memory_space<vmem>>, vector<1x256xf32>
      %476 = vector.broadcast %474 : f32 to vector<1x256xf32>
      %477 = arith.mulf %476, %475 : vector<1x256xf32>
      %478 = arith.addf %473, %477 : vector<1x256xf32>
      %c12 = arith.constant 12 : index
      %479 = memref.load %arg7[%c12] : memref<98xf32, #tpu.memory_space<smem>>
      %c0_193 = arith.constant 0 : index
      %c98 = arith.constant 98 : index
      %480 = vector.load %arg11[%c0_193, %c98] : memref<2x435xf32, #tpu.memory_space<vmem>>, vector<1x256xf32>
      %481 = vector.broadcast %479 : f32 to vector<1x256xf32>
      %482 = arith.mulf %481, %480 : vector<1x256xf32>
      %483 = arith.addf %478, %482 : vector<1x256xf32>
      %c19 = arith.constant 19 : index
      %484 = memref.load %arg7[%c19] : memref<98xf32, #tpu.memory_space<smem>>
      %c0_194 = arith.constant 0 : index
      %c114 = arith.constant 114 : index
      %485 = vector.load %arg11[%c0_194, %c114] : memref<2x435xf32, #tpu.memory_space<vmem>>, vector<1x256xf32>
      %486 = vector.broadcast %484 : f32 to vector<1x256xf32>
      %487 = arith.mulf %486, %485 : vector<1x256xf32>
      %488 = arith.addf %483, %487 : vector<1x256xf32>
      %c26 = arith.constant 26 : index
      %489 = memref.load %arg7[%c26] : memref<98xf32, #tpu.memory_space<smem>>
      %c0_195 = arith.constant 0 : index
      %c130 = arith.constant 130 : index
      %490 = vector.load %arg11[%c0_195, %c130] : memref<2x435xf32, #tpu.memory_space<vmem>>, vector<1x256xf32>
      %491 = vector.broadcast %489 : f32 to vector<1x256xf32>
      %492 = arith.mulf %491, %490 : vector<1x256xf32>
      %493 = arith.addf %488, %492 : vector<1x256xf32>
      %c33 = arith.constant 33 : index
      %494 = memref.load %arg7[%c33] : memref<98xf32, #tpu.memory_space<smem>>
      %c0_196 = arith.constant 0 : index
      %c146 = arith.constant 146 : index
      %495 = vector.load %arg11[%c0_196, %c146] : memref<2x435xf32, #tpu.memory_space<vmem>>, vector<1x256xf32>
      %496 = vector.broadcast %494 : f32 to vector<1x256xf32>
      %497 = arith.mulf %496, %495 : vector<1x256xf32>
      %498 = arith.addf %493, %497 : vector<1x256xf32>
      %c40 = arith.constant 40 : index
      %499 = memref.load %arg7[%c40] : memref<98xf32, #tpu.memory_space<smem>>
      %c0_197 = arith.constant 0 : index
      %c162 = arith.constant 162 : index
      %500 = vector.load %arg11[%c0_197, %c162] : memref<2x435xf32, #tpu.memory_space<vmem>>, vector<1x256xf32>
      %501 = vector.broadcast %499 : f32 to vector<1x256xf32>
      %502 = arith.mulf %501, %500 : vector<1x256xf32>
      %503 = arith.addf %498, %502 : vector<1x256xf32>
      %c47 = arith.constant 47 : index
      %504 = memref.load %arg7[%c47] : memref<98xf32, #tpu.memory_space<smem>>
      %c0_198 = arith.constant 0 : index
      %c178 = arith.constant 178 : index
      %505 = vector.load %arg11[%c0_198, %c178] : memref<2x435xf32, #tpu.memory_space<vmem>>, vector<1x256xf32>
      %506 = vector.broadcast %504 : f32 to vector<1x256xf32>
      %507 = arith.mulf %506, %505 : vector<1x256xf32>
      %508 = arith.addf %503, %507 : vector<1x256xf32>
      %c54 = arith.constant 54 : index
      %509 = memref.load %arg7[%c54] : memref<98xf32, #tpu.memory_space<smem>>
      %c1_199 = arith.constant 1 : index
      %c82_200 = arith.constant 82 : index
      %510 = vector.load %arg11[%c1_199, %c82_200] : memref<2x435xf32, #tpu.memory_space<vmem>>, vector<1x256xf32>
      %511 = vector.broadcast %509 : f32 to vector<1x256xf32>
      %512 = arith.mulf %511, %510 : vector<1x256xf32>
      %513 = arith.addf %508, %512 : vector<1x256xf32>
      %c61 = arith.constant 61 : index
      %514 = memref.load %arg7[%c61] : memref<98xf32, #tpu.memory_space<smem>>
      %c1_201 = arith.constant 1 : index
      %c98_202 = arith.constant 98 : index
      %515 = vector.load %arg11[%c1_201, %c98_202] : memref<2x435xf32, #tpu.memory_space<vmem>>, vector<1x256xf32>
      %516 = vector.broadcast %514 : f32 to vector<1x256xf32>
      %517 = arith.mulf %516, %515 : vector<1x256xf32>
      %518 = arith.addf %513, %517 : vector<1x256xf32>
      %c68 = arith.constant 68 : index
      %519 = memref.load %arg7[%c68] : memref<98xf32, #tpu.memory_space<smem>>
      %c1_203 = arith.constant 1 : index
      %c114_204 = arith.constant 114 : index
      %520 = vector.load %arg11[%c1_203, %c114_204] : memref<2x435xf32, #tpu.memory_space<vmem>>, vector<1x256xf32>
      %521 = vector.broadcast %519 : f32 to vector<1x256xf32>
      %522 = arith.mulf %521, %520 : vector<1x256xf32>
      %523 = arith.addf %518, %522 : vector<1x256xf32>
      %c75 = arith.constant 75 : index
      %524 = memref.load %arg7[%c75] : memref<98xf32, #tpu.memory_space<smem>>
      %c1_205 = arith.constant 1 : index
      %c130_206 = arith.constant 130 : index
      %525 = vector.load %arg11[%c1_205, %c130_206] : memref<2x435xf32, #tpu.memory_space<vmem>>, vector<1x256xf32>
      %526 = vector.broadcast %524 : f32 to vector<1x256xf32>
      %527 = arith.mulf %526, %525 : vector<1x256xf32>
      %528 = arith.addf %523, %527 : vector<1x256xf32>
      %c82_207 = arith.constant 82 : index
      %529 = memref.load %arg7[%c82_207] : memref<98xf32, #tpu.memory_space<smem>>
      %c1_208 = arith.constant 1 : index
      %c146_209 = arith.constant 146 : index
      %530 = vector.load %arg11[%c1_208, %c146_209] : memref<2x435xf32, #tpu.memory_space<vmem>>, vector<1x256xf32>
      %531 = vector.broadcast %529 : f32 to vector<1x256xf32>
      %532 = arith.mulf %531, %530 : vector<1x256xf32>
      %533 = arith.addf %528, %532 : vector<1x256xf32>
      %c89 = arith.constant 89 : index
      %534 = memref.load %arg7[%c89] : memref<98xf32, #tpu.memory_space<smem>>
      %c1_210 = arith.constant 1 : index
      %c162_211 = arith.constant 162 : index
      %535 = vector.load %arg11[%c1_210, %c162_211] : memref<2x435xf32, #tpu.memory_space<vmem>>, vector<1x256xf32>
      %536 = vector.broadcast %534 : f32 to vector<1x256xf32>
      %537 = arith.mulf %536, %535 : vector<1x256xf32>
      %538 = arith.addf %533, %537 : vector<1x256xf32>
      %c96_212 = arith.constant 96 : index
      %539 = memref.load %arg7[%c96_212] : memref<98xf32, #tpu.memory_space<smem>>
      %c1_213 = arith.constant 1 : index
      %c178_214 = arith.constant 178 : index
      %540 = vector.load %arg11[%c1_213, %c178_214] : memref<2x435xf32, #tpu.memory_space<vmem>>, vector<1x256xf32>
      %541 = vector.broadcast %539 : f32 to vector<1x256xf32>
      %542 = arith.mulf %541, %540 : vector<1x256xf32>
      %543 = arith.addf %538, %542 : vector<1x256xf32>
      %c0_i32_215 = arith.constant 0 : i32
      %544 = vector.broadcast %c0_i32_215 : i32 to vector<1x256xi32>
      %545 = arith.cmpi sge, %0, %544 : vector<1x256xi32>
      %c13_i32 = arith.constant 13 : i32
      %546 = vector.broadcast %c13_i32 : i32 to vector<1x256xi32>
      %547 = arith.cmpi sle, %0, %546 : vector<1x256xi32>
      %548 = arith.andi %545, %547 : vector<1x256xi1>
      %cst_216 = arith.constant 0.000000e+00 : f32
      %549 = vector.broadcast %cst_216 : f32 to vector<1x256xf32>
      %550 = arith.select %548, %543, %549 : vector<1x256xi1>, vector<1x256xf32>
      %551 = arith.addf %472, %550 : vector<1x256xf32>
      %cst_217 = arith.constant 0.000000e+00 : f32
      %552 = vector.broadcast %cst_217 : f32 to vector<1x256xf32>
      %c6 = arith.constant 6 : index
      %553 = memref.load %arg7[%c6] : memref<98xf32, #tpu.memory_space<smem>>
      %c0_218 = arith.constant 0 : index
      %c83 = arith.constant 83 : index
      %554 = vector.load %arg11[%c0_218, %c83] : memref<2x435xf32, #tpu.memory_space<vmem>>, vector<1x256xf32>
      %555 = vector.broadcast %553 : f32 to vector<1x256xf32>
      %556 = arith.mulf %555, %554 : vector<1x256xf32>
      %557 = arith.addf %552, %556 : vector<1x256xf32>
      %c13 = arith.constant 13 : index
      %558 = memref.load %arg7[%c13] : memref<98xf32, #tpu.memory_space<smem>>
      %c0_219 = arith.constant 0 : index
      %c99 = arith.constant 99 : index
      %559 = vector.load %arg11[%c0_219, %c99] : memref<2x435xf32, #tpu.memory_space<vmem>>, vector<1x256xf32>
      %560 = vector.broadcast %558 : f32 to vector<1x256xf32>
      %561 = arith.mulf %560, %559 : vector<1x256xf32>
      %562 = arith.addf %557, %561 : vector<1x256xf32>
      %c20 = arith.constant 20 : index
      %563 = memref.load %arg7[%c20] : memref<98xf32, #tpu.memory_space<smem>>
      %c0_220 = arith.constant 0 : index
      %c115 = arith.constant 115 : index
      %564 = vector.load %arg11[%c0_220, %c115] : memref<2x435xf32, #tpu.memory_space<vmem>>, vector<1x256xf32>
      %565 = vector.broadcast %563 : f32 to vector<1x256xf32>
      %566 = arith.mulf %565, %564 : vector<1x256xf32>
      %567 = arith.addf %562, %566 : vector<1x256xf32>
      %c27 = arith.constant 27 : index
      %568 = memref.load %arg7[%c27] : memref<98xf32, #tpu.memory_space<smem>>
      %c0_221 = arith.constant 0 : index
      %c131 = arith.constant 131 : index
      %569 = vector.load %arg11[%c0_221, %c131] : memref<2x435xf32, #tpu.memory_space<vmem>>, vector<1x256xf32>
      %570 = vector.broadcast %568 : f32 to vector<1x256xf32>
      %571 = arith.mulf %570, %569 : vector<1x256xf32>
      %572 = arith.addf %567, %571 : vector<1x256xf32>
      %c34 = arith.constant 34 : index
      %573 = memref.load %arg7[%c34] : memref<98xf32, #tpu.memory_space<smem>>
      %c0_222 = arith.constant 0 : index
      %c147 = arith.constant 147 : index
      %574 = vector.load %arg11[%c0_222, %c147] : memref<2x435xf32, #tpu.memory_space<vmem>>, vector<1x256xf32>
      %575 = vector.broadcast %573 : f32 to vector<1x256xf32>
      %576 = arith.mulf %575, %574 : vector<1x256xf32>
      %577 = arith.addf %572, %576 : vector<1x256xf32>
      %c41 = arith.constant 41 : index
      %578 = memref.load %arg7[%c41] : memref<98xf32, #tpu.memory_space<smem>>
      %c0_223 = arith.constant 0 : index
      %c163 = arith.constant 163 : index
      %579 = vector.load %arg11[%c0_223, %c163] : memref<2x435xf32, #tpu.memory_space<vmem>>, vector<1x256xf32>
      %580 = vector.broadcast %578 : f32 to vector<1x256xf32>
      %581 = arith.mulf %580, %579 : vector<1x256xf32>
      %582 = arith.addf %577, %581 : vector<1x256xf32>
      %c48 = arith.constant 48 : index
      %583 = memref.load %arg7[%c48] : memref<98xf32, #tpu.memory_space<smem>>
      %c0_224 = arith.constant 0 : index
      %c179 = arith.constant 179 : index
      %584 = vector.load %arg11[%c0_224, %c179] : memref<2x435xf32, #tpu.memory_space<vmem>>, vector<1x256xf32>
      %585 = vector.broadcast %583 : f32 to vector<1x256xf32>
      %586 = arith.mulf %585, %584 : vector<1x256xf32>
      %587 = arith.addf %582, %586 : vector<1x256xf32>
      %c55 = arith.constant 55 : index
      %588 = memref.load %arg7[%c55] : memref<98xf32, #tpu.memory_space<smem>>
      %c1_225 = arith.constant 1 : index
      %c83_226 = arith.constant 83 : index
      %589 = vector.load %arg11[%c1_225, %c83_226] : memref<2x435xf32, #tpu.memory_space<vmem>>, vector<1x256xf32>
      %590 = vector.broadcast %588 : f32 to vector<1x256xf32>
      %591 = arith.mulf %590, %589 : vector<1x256xf32>
      %592 = arith.addf %587, %591 : vector<1x256xf32>
      %c62 = arith.constant 62 : index
      %593 = memref.load %arg7[%c62] : memref<98xf32, #tpu.memory_space<smem>>
      %c1_227 = arith.constant 1 : index
      %c99_228 = arith.constant 99 : index
      %594 = vector.load %arg11[%c1_227, %c99_228] : memref<2x435xf32, #tpu.memory_space<vmem>>, vector<1x256xf32>
      %595 = vector.broadcast %593 : f32 to vector<1x256xf32>
      %596 = arith.mulf %595, %594 : vector<1x256xf32>
      %597 = arith.addf %592, %596 : vector<1x256xf32>
      %c69 = arith.constant 69 : index
      %598 = memref.load %arg7[%c69] : memref<98xf32, #tpu.memory_space<smem>>
      %c1_229 = arith.constant 1 : index
      %c115_230 = arith.constant 115 : index
      %599 = vector.load %arg11[%c1_229, %c115_230] : memref<2x435xf32, #tpu.memory_space<vmem>>, vector<1x256xf32>
      %600 = vector.broadcast %598 : f32 to vector<1x256xf32>
      %601 = arith.mulf %600, %599 : vector<1x256xf32>
      %602 = arith.addf %597, %601 : vector<1x256xf32>
      %c76 = arith.constant 76 : index
      %603 = memref.load %arg7[%c76] : memref<98xf32, #tpu.memory_space<smem>>
      %c1_231 = arith.constant 1 : index
      %c131_232 = arith.constant 131 : index
      %604 = vector.load %arg11[%c1_231, %c131_232] : memref<2x435xf32, #tpu.memory_space<vmem>>, vector<1x256xf32>
      %605 = vector.broadcast %603 : f32 to vector<1x256xf32>
      %606 = arith.mulf %605, %604 : vector<1x256xf32>
      %607 = arith.addf %602, %606 : vector<1x256xf32>
      %c83_233 = arith.constant 83 : index
      %608 = memref.load %arg7[%c83_233] : memref<98xf32, #tpu.memory_space<smem>>
      %c1_234 = arith.constant 1 : index
      %c147_235 = arith.constant 147 : index
      %609 = vector.load %arg11[%c1_234, %c147_235] : memref<2x435xf32, #tpu.memory_space<vmem>>, vector<1x256xf32>
      %610 = vector.broadcast %608 : f32 to vector<1x256xf32>
      %611 = arith.mulf %610, %609 : vector<1x256xf32>
      %612 = arith.addf %607, %611 : vector<1x256xf32>
      %c90 = arith.constant 90 : index
      %613 = memref.load %arg7[%c90] : memref<98xf32, #tpu.memory_space<smem>>
      %c1_236 = arith.constant 1 : index
      %c163_237 = arith.constant 163 : index
      %614 = vector.load %arg11[%c1_236, %c163_237] : memref<2x435xf32, #tpu.memory_space<vmem>>, vector<1x256xf32>
      %615 = vector.broadcast %613 : f32 to vector<1x256xf32>
      %616 = arith.mulf %615, %614 : vector<1x256xf32>
      %617 = arith.addf %612, %616 : vector<1x256xf32>
      %c97_238 = arith.constant 97 : index
      %618 = memref.load %arg7[%c97_238] : memref<98xf32, #tpu.memory_space<smem>>
      %c1_239 = arith.constant 1 : index
      %c179_240 = arith.constant 179 : index
      %619 = vector.load %arg11[%c1_239, %c179_240] : memref<2x435xf32, #tpu.memory_space<vmem>>, vector<1x256xf32>
      %620 = vector.broadcast %618 : f32 to vector<1x256xf32>
      %621 = arith.mulf %620, %619 : vector<1x256xf32>
      %622 = arith.addf %617, %621 : vector<1x256xf32>
      %c0_i32_241 = arith.constant 0 : i32
      %623 = vector.broadcast %c0_i32_241 : i32 to vector<1x256xi32>
      %624 = arith.cmpi sge, %0, %623 : vector<1x256xi32>
      %c12_i32 = arith.constant 12 : i32
      %625 = vector.broadcast %c12_i32 : i32 to vector<1x256xi32>
      %626 = arith.cmpi sle, %0, %625 : vector<1x256xi32>
      %627 = arith.andi %624, %626 : vector<1x256xi1>
      %cst_242 = arith.constant 0.000000e+00 : f32
      %628 = vector.broadcast %cst_242 : f32 to vector<1x256xf32>
      %629 = arith.select %627, %622, %628 : vector<1x256xi1>, vector<1x256xf32>
      %630 = arith.addf %551, %629 : vector<1x256xf32>
      %c0_243 = arith.constant 0 : index
      %631 = memref.load %arg8[%c0_243] : memref<1xf32, #tpu.memory_space<smem>>
      %632 = vector.broadcast %631 : f32 to vector<1x256xf32>
      %633 = arith.addf %630, %632 : vector<1x256xf32>
      %634 = arith.negf %633 : vector<1x256xf32>
      %635 = math.exp %634 : vector<1x256xf32>
      %cst_244 = arith.constant 1.000000e+00 : f32
      %636 = vector.broadcast %cst_244 : f32 to vector<1x256xf32>
      %637 = arith.addf %636, %635 : vector<1x256xf32>
      %638 = arith.divf %636, %637 : vector<1x256xf32>
      %c0_245 = arith.constant 0 : index
      %c0_246 = arith.constant 0 : index
      %639 = vector.load %arg10[%c0_245, %c0_246] : memref<1x256xf32, #tpu.memory_space<vmem>>, vector<1x256xf32>
      tpu.vector_store %arg10[%c0_245, %c0_246], %638 {strides = array<i32>} : memref<1x256xf32, #tpu.memory_space<vmem>>, vector<1x256xf32>,
    } else {
    }
    %c0_2 = arith.constant 0 : index
    %c0_3 = arith.constant 0 : index
    %4 = vector.load %arg10[%c0_2, %c0_3] : memref<1x256xf32, #tpu.memory_space<vmem>>, vector<1x256xf32>
    %c0_4 = arith.constant 0 : index
    %c0_5 = arith.constant 0 : index
    %c0_6 = arith.constant 0 : index
    %5 = vector.load %arg4[%c0_4, %c0_5, %c0_6] : memref<1x32x256xbf16, #tpu.memory_space<vmem>>, vector<1x32x256xbf16>
    %6 = vector.shape_cast %5 : vector<1x32x256xbf16> to vector<32x256xbf16>
    %7 = arith.extf %6 : vector<32x256xbf16> to vector<32x256xf32>
    %8 = vector.broadcast %4 : vector<1x256xf32> to vector<32x256xf32>
    %9 = arith.mulf %7, %8 : vector<32x256xf32>
    %10 = arith.truncf %9 : vector<32x256xf32> to vector<32x256xbf16>
    %c0_7 = arith.constant 0 : index
    %c128 = arith.constant 128 : index
    %11 = vector.load %arg12[%c0_7, %c128] : memref<32x401xbf16, #tpu.memory_space<vmem>>, vector<32x256xbf16>
    tpu.vector_store %arg12[%c0_7, %c128], %10 {strides = array<i32>} : memref<32x401xbf16, #tpu.memory_space<vmem>>, vector<32x256xbf16>,
    %c0_8 = arith.constant 0 : index
    %c0_9 = arith.constant 0 : index
    %12 = vector.load %arg5[%c0_8, %c0_9] : memref<32x144xbf16, #tpu.memory_space<vmem>>, vector<32x144xbf16>
    %cst = arith.constant 0.000000e+00 : f32
    %13 = vector.broadcast %cst : f32 to vector<16x256xf32>
    %cst_10 = arith.constant 0.000000e+00 : f32
    %14 = vector.broadcast %cst_10 : f32 to vector<16x256xf32>
    %c0_11 = arith.constant 0 : index
    %c111 = arith.constant 111 : index
    %15 = vector.load %arg12[%c0_11, %c111] : memref<32x401xbf16, #tpu.memory_space<vmem>>, vector<32x256xbf16>
    %16 = vector.extract_strided_slice %12 {offsets = [0, 0], sizes = [32, 16], strides = [1, 1]} : vector<32x144xbf16> to vector<32x16xbf16>
    %cst_12 = arith.constant dense<0.000000e+00> : vector<16x256xf32>
    %17 = tpu.matmul %16, %15, %cst_12 {dimension_numbers = #tpu.dot_dimension_numbers<[0], [0], [1], [1], [0, 1, 1, 1], [], []>} : vector<32x16xbf16>, vector<32x256xbf16>, vector<16x256xf32> -> vector<16x256xf32>
    %18 = arith.addf %14, %17 : vector<16x256xf32>
    %c0_13 = arith.constant 0 : index
    %c127 = arith.constant 127 : index
    %19 = vector.load %arg12[%c0_13, %c127] : memref<32x401xbf16, #tpu.memory_space<vmem>>, vector<32x256xbf16>
    %20 = vector.extract_strided_slice %12 {offsets = [0, 48], sizes = [32, 16], strides = [1, 1]} : vector<32x144xbf16> to vector<32x16xbf16>
    %cst_14 = arith.constant dense<0.000000e+00> : vector<16x256xf32>
    %21 = tpu.matmul %20, %19, %cst_14 {dimension_numbers = #tpu.dot_dimension_numbers<[0], [0], [1], [1], [0, 1, 1, 1], [], []>} : vector<32x16xbf16>, vector<32x256xbf16>, vector<16x256xf32> -> vector<16x256xf32>
    %22 = arith.addf %18, %21 : vector<16x256xf32>
    %c0_15 = arith.constant 0 : index
    %c143 = arith.constant 143 : index
    %23 = vector.load %arg12[%c0_15, %c143] : memref<32x401xbf16, #tpu.memory_space<vmem>>, vector<32x256xbf16>
    %24 = vector.extract_strided_slice %12 {offsets = [0, 96], sizes = [32, 16], strides = [1, 1]} : vector<32x144xbf16> to vector<32x16xbf16>
    %cst_16 = arith.constant dense<0.000000e+00> : vector<16x256xf32>
    %25 = tpu.matmul %24, %23, %cst_16 {dimension_numbers = #tpu.dot_dimension_numbers<[0], [0], [1], [1], [0, 1, 1, 1], [], []>} : vector<32x16xbf16>, vector<32x256xbf16>, vector<16x256xf32> -> vector<16x256xf32>
    %26 = arith.addf %22, %25 : vector<16x256xf32>
    %c1_i32 = arith.constant 1 : i32
    %27 = vector.broadcast %c1_i32 : i32 to vector<1x256xi32>
    %28 = arith.cmpi sge, %0, %27 : vector<1x256xi32>
    %cst_17 = arith.constant 0.000000e+00 : f32
    %29 = vector.shape_cast %28 : vector<1x256xi1> to vector<1x256xi1>
    %30 = vector.broadcast %29 : vector<1x256xi1> to vector<16x256xi1>
    %31 = vector.broadcast %cst_17 : f32 to vector<16x256xf32>
    %32 = arith.select %30, %26, %31 : vector<16x256xi1>, vector<16x256xf32>
    %33 = arith.addf %13, %32 : vector<16x256xf32>
    %cst_18 = arith.constant 0.000000e+00 : f32
    %34 = vector.broadcast %cst_18 : f32 to vector<16x256xf32>
    %c0_19 = arith.constant 0 : index
    %c112 = arith.constant 112 : index
    %35 = vector.load %arg12[%c0_19, %c112] : memref<32x401xbf16, #tpu.memory_space<vmem>>, vector<32x256xbf16>
    %36 = vector.extract_strided_slice %12 {offsets = [0, 16], sizes = [32, 16], strides = [1, 1]} : vector<32x144xbf16> to vector<32x16xbf16>
    %cst_20 = arith.constant dense<0.000000e+00> : vector<16x256xf32>
    %37 = tpu.matmul %36, %35, %cst_20 {dimension_numbers = #tpu.dot_dimension_numbers<[0], [0], [1], [1], [0, 1, 1, 1], [], []>} : vector<32x16xbf16>, vector<32x256xbf16>, vector<16x256xf32> -> vector<16x256xf32>
    %38 = arith.addf %34, %37 : vector<16x256xf32>
    %c0_21 = arith.constant 0 : index
    %c128_22 = arith.constant 128 : index
    %39 = vector.load %arg12[%c0_21, %c128_22] : memref<32x401xbf16, #tpu.memory_space<vmem>>, vector<32x256xbf16>
    %40 = vector.extract_strided_slice %12 {offsets = [0, 64], sizes = [32, 16], strides = [1, 1]} : vector<32x144xbf16> to vector<32x16xbf16>
    %cst_23 = arith.constant dense<0.000000e+00> : vector<16x256xf32>
    %41 = tpu.matmul %40, %39, %cst_23 {dimension_numbers = #tpu.dot_dimension_numbers<[0], [0], [1], [1], [0, 1, 1, 1], [], []>} : vector<32x16xbf16>, vector<32x256xbf16>, vector<16x256xf32> -> vector<16x256xf32>
    %42 = arith.addf %38, %41 : vector<16x256xf32>
    %c0_24 = arith.constant 0 : index
    %c144 = arith.constant 144 : index
    %43 = vector.load %arg12[%c0_24, %c144] : memref<32x401xbf16, #tpu.memory_space<vmem>>, vector<32x256xbf16>
    %44 = vector.extract_strided_slice %12 {offsets = [0, 112], sizes = [32, 16], strides = [1, 1]} : vector<32x144xbf16> to vector<32x16xbf16>
    %cst_25 = arith.constant dense<0.000000e+00> : vector<16x256xf32>
    %45 = tpu.matmul %44, %43, %cst_25 {dimension_numbers = #tpu.dot_dimension_numbers<[0], [0], [1], [1], [0, 1, 1, 1], [], []>} : vector<32x16xbf16>, vector<32x256xbf16>, vector<16x256xf32> -> vector<16x256xf32>
    %46 = arith.addf %42, %45 : vector<16x256xf32>
    %47 = arith.addf %33, %46 : vector<16x256xf32>
    %cst_26 = arith.constant 0.000000e+00 : f32
    %48 = vector.broadcast %cst_26 : f32 to vector<16x256xf32>
    %c0_27 = arith.constant 0 : index
    %c113 = arith.constant 113 : index
    %49 = vector.load %arg12[%c0_27, %c113] : memref<32x401xbf16, #tpu.memory_space<vmem>>, vector<32x256xbf16>
    %50 = vector.extract_strided_slice %12 {offsets = [0, 32], sizes = [32, 16], strides = [1, 1]} : vector<32x144xbf16> to vector<32x16xbf16>
    %cst_28 = arith.constant dense<0.000000e+00> : vector<16x256xf32>
    %51 = tpu.matmul %50, %49, %cst_28 {dimension_numbers = #tpu.dot_dimension_numbers<[0], [0], [1], [1], [0, 1, 1, 1], [], []>} : vector<32x16xbf16>, vector<32x256xbf16>, vector<16x256xf32> -> vector<16x256xf32>
    %52 = arith.addf %48, %51 : vector<16x256xf32>
    %c0_29 = arith.constant 0 : index
    %c129 = arith.constant 129 : index
    %53 = vector.load %arg12[%c0_29, %c129] : memref<32x401xbf16, #tpu.memory_space<vmem>>, vector<32x256xbf16>
    %54 = vector.extract_strided_slice %12 {offsets = [0, 80], sizes = [32, 16], strides = [1, 1]} : vector<32x144xbf16> to vector<32x16xbf16>
    %cst_30 = arith.constant dense<0.000000e+00> : vector<16x256xf32>
    %55 = tpu.matmul %54, %53, %cst_30 {dimension_numbers = #tpu.dot_dimension_numbers<[0], [0], [1], [1], [0, 1, 1, 1], [], []>} : vector<32x16xbf16>, vector<32x256xbf16>, vector<16x256xf32> -> vector<16x256xf32>
    %56 = arith.addf %52, %55 : vector<16x256xf32>
    %c0_31 = arith.constant 0 : index
    %c145 = arith.constant 145 : index
    %57 = vector.load %arg12[%c0_31, %c145] : memref<32x401xbf16, #tpu.memory_space<vmem>>, vector<32x256xbf16>
    %58 = vector.extract_strided_slice %12 {offsets = [0, 128], sizes = [32, 16], strides = [1, 1]} : vector<32x144xbf16> to vector<32x16xbf16>
    %cst_32 = arith.constant dense<0.000000e+00> : vector<16x256xf32>
    %59 = tpu.matmul %58, %57, %cst_32 {dimension_numbers = #tpu.dot_dimension_numbers<[0], [0], [1], [1], [0, 1, 1, 1], [], []>} : vector<32x16xbf16>, vector<32x256xbf16>, vector<16x256xf32> -> vector<16x256xf32>
    %60 = arith.addf %56, %59 : vector<16x256xf32>
    %c14_i32 = arith.constant 14 : i32
    %61 = vector.broadcast %c14_i32 : i32 to vector<1x256xi32>
    %62 = arith.cmpi sle, %0, %61 : vector<1x256xi32>
    %cst_33 = arith.constant 0.000000e+00 : f32
    %63 = vector.shape_cast %62 : vector<1x256xi1> to vector<1x256xi1>
    %64 = vector.broadcast %63 : vector<1x256xi1> to vector<16x256xi1>
    %65 = vector.broadcast %cst_33 : f32 to vector<16x256xf32>
    %66 = arith.select %64, %60, %65 : vector<16x256xi1>, vector<16x256xf32>
    %67 = arith.addf %47, %66 : vector<16x256xf32>
    %c0_i32_34 = arith.constant 0 : i32
    %68 = arith.cmpi eq, %arg1, %c0_i32_34 : i32
    %69 = arith.extui %68 : i1 to i32
    %c0_i32_35 = arith.constant 0 : i32
    %70 = arith.cmpi ne, %69, %c0_i32_35 : i32
    scf.if %70 {
      %c0_42 = arith.constant 0 : index
      %c0_43 = arith.constant 0 : index
      %77 = vector.load %arg6[%c0_42, %c0_43] : memref<16x1xf32, #tpu.memory_space<vmem>>, vector<16x1xf32>
      %78 = vector.shape_cast %77 : vector<16x1xf32> to vector<16x1xf32>
      %79 = vector.broadcast %78 : vector<16x1xf32> to vector<16x256xf32>
      %c0_44 = arith.constant 0 : index
      %c0_45 = arith.constant 0 : index
      %c0_46 = arith.constant 0 : index
      %80 = vector.load %arg9[%c0_44, %c0_45, %c0_46] : memref<1x16x256xf32, #tpu.memory_space<vmem>>, vector<1x16x256xf32>
      %81 = vector.shape_cast %80 : vector<1x16x256xf32> to vector<16x256xf32>
      %82 = vector.shape_cast %79 : vector<16x256xf32> to vector<1x16x256xf32>
      tpu.vector_store %arg9[%c0_44, %c0_45, %c0_46], %82 {strides = array<i32>} : memref<1x16x256xf32, #tpu.memory_space<vmem>>, vector<1x16x256xf32>,
    } else {
    }
    %c0_36 = arith.constant 0 : index
    %c0_37 = arith.constant 0 : index
    %c0_38 = arith.constant 0 : index
    %71 = vector.load %arg9[%c0_36, %c0_37, %c0_38] : memref<1x16x256xf32, #tpu.memory_space<vmem>>, vector<1x16x256xf32>
    %72 = vector.shape_cast %71 : vector<1x16x256xf32> to vector<16x256xf32>
    %73 = arith.addf %72, %67 : vector<16x256xf32>
    %c0_39 = arith.constant 0 : index
    %c0_40 = arith.constant 0 : index
    %c0_41 = arith.constant 0 : index
    %74 = vector.load %arg9[%c0_39, %c0_40, %c0_41] : memref<1x16x256xf32, #tpu.memory_space<vmem>>, vector<1x16x256xf32>
    %75 = vector.shape_cast %74 : vector<1x16x256xf32> to vector<16x256xf32>
    %76 = vector.shape_cast %73 : vector<16x256xf32> to vector<1x16x256xf32>
    tpu.vector_store %arg9[%c0_39, %c0_40, %c0_41], %76 {strides = array<i32>} : memref<1x16x256xf32, #tpu.memory_space<vmem>>, vector<1x16x256xf32>,
    return
  }
  func.func @transform_0(%arg0: i32, %arg1: i32) -> (i32, i32) {
    %c0_i32 = arith.constant 0 : i32
    %c0_i32_0 = arith.constant 0 : i32
    %c0_i32_1 = arith.constant 0 : i32
    return %c0_i32, %c0_i32_0 : i32, i32
  }
  func.func @transform_1(%arg0: i32, %arg1: i32) -> (i32, i32, i32) {
    %c0_i32 = arith.constant 0 : i32
    %c0_i32_0 = arith.constant 0 : i32
    %c0_i32_1 = arith.constant 0 : i32
    return %arg0, %c0_i32, %c0_i32_0 : i32, i32, i32
  }
  func.func @transform_2(%arg0: i32, %arg1: i32) -> (i32, i32, i32) {
    %c0_i32 = arith.constant 0 : i32
    %c0_i32_0 = arith.constant 0 : i32
    return %arg0, %arg1, %c0_i32 : i32, i32, i32
  }
  func.func @transform_3(%arg0: i32, %arg1: i32) -> (i32, i32) {
    %c0_i32 = arith.constant 0 : i32
    %c0_i32_0 = arith.constant 0 : i32
    return %arg1, %c0_i32 : i32, i32
  }
  func.func @transform_4(%arg0: i32, %arg1: i32) -> (i32, i32) {
    %c0_i32 = arith.constant 0 : i32
    %c0_i32_0 = arith.constant 0 : i32
    %c0_i32_1 = arith.constant 0 : i32
    return %c0_i32, %c0_i32_0 : i32, i32
  }
  func.func @transform_5(%arg0: i32, %arg1: i32) -> i32 {
    %c0_i32 = arith.constant 0 : i32
    %c0_i32_0 = arith.constant 0 : i32
    return %c0_i32 : i32
  }
  func.func @transform_6(%arg0: i32, %arg1: i32) -> i32 {
    %c0_i32 = arith.constant 0 : i32
    %c0_i32_0 = arith.constant 0 : i32
    return %c0_i32 : i32
  }
  func.func @transform_7(%arg0: i32, %arg1: i32) -> (i32, i32, i32) {
    %c0_i32 = arith.constant 0 : i32
    %c0_i32_0 = arith.constant 0 : i32
    %c0_i32_1 = arith.constant 0 : i32
    return %arg0, %c0_i32, %c0_i32_0 : i32, i32, i32
  }
}

</mosaic_0001>

<llo_original>
// kernel: up_forward.4
$region0: #{up_forward.4}
  #allocation0 [shape = 'u32[]', space=smem, size = 0x4, offset = 0x4, fixed_abs, tag = 'smem constant byte address 0x4 - core index']
  #allocation1 [shape = 'u32[72,128]{1,0:T(1,128)}', space=vmem, size = 0x9000, scoped, tag = 'internal scratch']
  %s0 = inlined_call_operand.vmem [shape: bf16[64,32], index: 0, kind: input, shape index: {}]
  %s1 = inlined_call_operand.vmem [shape: f32[64,1], index: 1, kind: input, shape index: {}]
  %s2 = inlined_call_operand.vmem [shape: bf16[2,32,64], index: 2, kind: input, shape index: {}]
  %s3 = inlined_call_operand.vmem [shape: bf16[2,64,64], index: 3, kind: output, shape index: {}]
  %s4 = sld [smem:[#allocation0]]
  $region45: #{up_forward.4} parent=0
    _
  %s6 = ssub.s32 1, %s4
  %s7 = scalar_select 0, %s6, %s4
  loop: start=0, step=1, limit=4
  $region2: #{up_forward.4} parent=0 // loop_pre_header
    _
  $region3: #{up_forward.4} parent=0 // loop_header
    %s9 = sphi 0, %s13
    %p10 = scmp.ge.s32.totalorder %s9, 4
    %s16 = sphi 0, %s28
    %s17 = sphi 0, %s24
    %s18 = sphi 0, %s16
    %s19 = sphi 0, %s17
    %s20 = sphi 0, %s18
    %s21 = sphi 0, %s19
    %s29 = sphi 0, %s29
    %s31 = sphi 0, %s29
    %s32 = sphi 0, %s31
    %s46 = sphi 0, %s32
    %s50 = sphi 0, %s50
    %s52 = sphi 0, %s50
    %s53 = sphi 0, %s52
    %s67 = sphi 0, %s53
    %s75 = sphi 0, %s77
    %s78 = sphi 0, %s75
    %s79 = sphi 0, %s78
    %s95 = sphi 0, %s79
    %s103 = sphi 0, %s105
    %s106 = sphi 0, %s103
    %s107 = sphi 0, %s106
    %s123 = sphi 0, %s107
  $region4: #{up_forward.4} parent=0 // loop_header_branch
    %12 = sbr.rel (%p10) target = $region8
  $region5: #{up_forward.4} parent=0 // loop_body
    %s14 = ssub.s32 %s9, 1
    %s15 = ssub.s32 %s9, 2
    %s22 = sadd.s32 1, %s17
    %p23 = scmp.ge.s32.totalorder %s22, 1
    %s24 = scalar_select %p23, 0, %s22
    %s25 = sadd.s32 1, %s16
    %s26 = scalar_select %p23, %s25, %s16
    %p27 = scmp.ge.s32.totalorder %s26, 2
    %s28 = scalar_select %p27, 0, %s26
    %s30 = sadd.s32 %s29, 1
    %p33 = scmp.eq.s32.totalorder %s9, 1
    %p34 = scmp.ne.s32.totalorder %s29, %s31
    %p35 = scmp.eq.s32.totalorder %s9, 0
    %p36 = por %p34, %p35
    %p37 = scmp.ne.s32.totalorder %s29, %s31
    %p38 = scmp.eq.s32.totalorder %s14, 1
    %p39 = por %p37, %p38
    %p40 = scmp.ne.s32.totalorder %s31, %s32
    %p41 = scmp.eq.s32.totalorder %s14, 0
    %p42 = por %p40, %p41
    %p43 = scmp.ne.s32.totalorder %s31, %s32
    %p44 = scmp.eq.s32.totalorder %s15, 1
    %p45 = por %p43, %p44
    %p47 = scmp.ne.s32.totalorder %s32, %s46
    %p48 = scmp.eq.s32.totalorder %s15, 0
    %p49 = por %p47, %p48
    %s51 = sadd.s32 %s50, 1
    %p54 = scmp.eq.s32.totalorder %s9, 1
    %p55 = scmp.ne.s32.totalorder %s50, %s52
    %p56 = scmp.eq.s32.totalorder %s9, 0
    %p57 = por %p55, %p56
    %p58 = scmp.ne.s32.totalorder %s50, %s52
    %p59 = scmp.eq.s32.totalorder %s14, 1
    %p60 = por %p58, %p59
    %p61 = scmp.ne.s32.totalorder %s52, %s53
    %p62 = scmp.eq.s32.totalorder %s14, 0
    %p63 = por %p61, %p62
    %p64 = scmp.ne.s32.totalorder %s52, %s53
    %p65 = scmp.eq.s32.totalorder %s15, 1
    %p66 = por %p64, %p65
    %p68 = scmp.ne.s32.totalorder %s53, %s67
    %p69 = scmp.eq.s32.totalorder %s15, 0
    %p70 = por %p68, %p69
    %s71 = ssub.s32 %s16, %s28
    %s72 = ssub.s32 %s17, %s24
    %s73 = sor.u32 %s71, %s72
    %p74 = scmp.eq.s32.totalorder %s73, 0
    %s76 = sadd.s32 %s75, 1
    %s77 = scalar_select %p74, %s75, %s76
    %p80 = pneg %p74
    %p81 = scmp.eq.s32.totalorder %s9, 1
    %p82 = por %p80, %p81
    %p83 = scmp.ne.s32.totalorder %s75, %s78
    %p84 = scmp.eq.s32.totalorder %s9, 0
    %p85 = por %p83, %p84
    %p86 = scmp.ne.s32.totalorder %s75, %s78
    %p87 = scmp.eq.s32.totalorder %s14, 1
    %p88 = por %p86, %p87
    %p89 = scmp.ne.s32.totalorder %s78, %s79
    %p90 = scmp.eq.s32.totalorder %s14, 0
    %p91 = por %p89, %p90
    %p92 = scmp.ne.s32.totalorder %s78, %s79
    %p93 = scmp.eq.s32.totalorder %s15, 1
    %p94 = por %p92, %p93
    %p96 = scmp.ne.s32.totalorder %s79, %s95
    %p97 = scmp.eq.s32.totalorder %s15, 0
    %p98 = por %p96, %p97
    %s99 = ssub.s32 %s16, %s28
    %s100 = ssub.s32 %s17, %s24
    %s101 = sor.u32 %s99, %s100
    %p102 = scmp.eq.s32.totalorder %s101, 0
    %s104 = sadd.s32 %s103, 1
    %s105 = scalar_select %p102, %s103, %s104
    %p108 = pneg %p102
    %p109 = scmp.eq.s32.totalorder %s9, 1
    %p110 = por %p108, %p109
    %p111 = scmp.ne.s32.totalorder %s103, %s106
    %p112 = scmp.eq.s32.totalorder %s9, 0
    %p113 = por %p111, %p112
    %p114 = scmp.ne.s32.totalorder %s103, %s106
    %p115 = scmp.eq.s32.totalorder %s14, 1
    %p116 = por %p114, %p115
    %p117 = scmp.ne.s32.totalorder %s106, %s107
    %p118 = scmp.eq.s32.totalorder %s14, 0
    %p119 = por %p117, %p118
    %p120 = scmp.ne.s32.totalorder %s106, %s107
    %p121 = scmp.eq.s32.totalorder %s15, 1
    %p122 = por %p120, %p121
    %p124 = scmp.ne.s32.totalorder %s107, %s123
    %p125 = scmp.eq.s32.totalorder %s15, 0
    %p126 = por %p124, %p125
    %p127 = scmp.le.s32.totalorder 1, %s9
    %p128 = scmp.lt.s32.totalorder %s9, 3
    %p129 = pnand %p127, %p128
    %p130 = pneg %p129
    // Predicated region
    $region9: #{up_forward.4} parent=5 // pred_check
      _
    $region10: #{up_forward.4} parent=5 // pred_check_branch
      %132 = sbr.rel (%p129) target = $region12
    $region11: #{up_forward.4} parent=5 // pred_region
      %s133 = ssub.s32 %s9, 1
      // Predicated region
      $region13: #{up_forward.4} parent=11 // pred_check
        %p134 = pneg %p42
      $region14: #{up_forward.4} parent=11 // pred_check_branch
        %136 = sbr.rel (%p134) target = $region16
      $region15: #{up_forward.4} parent=11 // pred_region
        _
      $region16: #{up_forward.4} parent=11 // pred_fallthru
        _
      // Predicated region
      $region17: #{up_forward.4} parent=11 // pred_check
        %p137 = pneg %p63
      $region18: #{up_forward.4} parent=11 // pred_check_branch
        %139 = sbr.rel (%p137) target = $region20
      $region19: #{up_forward.4} parent=11 // pred_region
        _
      $region20: #{up_forward.4} parent=11 // pred_fallthru
        _
    $region12: #{up_forward.4} parent=5 // pred_fallthru
      _
    %p140 = scmp.lt.s32.totalorder %s9, 2
    // Predicated region
    $region21: #{up_forward.4} parent=5 // pred_check
      %p141 = pneg %p140
    $region22: #{up_forward.4} parent=5 // pred_check_branch
      %143 = sbr.rel (%p141) target = $region24
    $region23: #{up_forward.4} parent=5 // pred_region
      // Predicated region
      $region25: #{up_forward.4} parent=23 // pred_check
        %p144 = pneg %p85
      $region26: #{up_forward.4} parent=23 // pred_check_branch
        %146 = sbr.rel (%p144) target = $region28
      $region27: #{up_forward.4} parent=23 // pred_region
        %p147 = scmp.lt.s32.totalorder %s16, 1
        %s148 = scalar_select %p147, %s16, 1
        %p149 = scmp.lt.s32.totalorder %s17, 0
        %s150 = scalar_select %p149, %s17, 0
        %s151 = smul.addr %s148, 4
        %s152 = sadd.s32 %s150, %s151
        %s153 = smul.addr %s152, 4
        %s154 = scalar_lea.vmem %s2, %s153
      $region28: #{up_forward.4} parent=23 // pred_fallthru
        _
    $region24: #{up_forward.4} parent=5 // pred_fallthru
      _
    %p155 = scmp.le.s32.totalorder 1, %s9
    %p156 = scmp.lt.s32.totalorder %s9, 3
    %p157 = pnand %p155, %p156
    %p158 = pneg %p157
    // Predicated region
    $region29: #{up_forward.4} parent=5 // pred_check
      _
    $region30: #{up_forward.4} parent=5 // pred_check_branch
      %160 = sbr.rel (%p157) target = $region32
    $region31: #{up_forward.4} parent=5 // pred_region
      %s161 = ssub.s32 %s9, 1
      %p162 = pneg %p42
      %p163 = pneg %p39
      %p164 = pneg %p63
      %p165 = pneg %p60
      %p166 = scmp.lt.s32.totalorder %s18, 1
      %s167 = scalar_select %p166, %s18, 1
      %p168 = scmp.lt.s32.totalorder %s19, 0
      %s169 = scalar_select %p168, %s19, 0
      %s170 = smul.addr %s167, 4
      %s171 = sadd.s32 %s169, %s170
      %s172 = smul.addr %s171, 4
      %s173 = scalar_lea.vmem %s2, %s172
      %p174 = pneg %p91
      %p175 = pneg %p88
      %p176 = pneg %p119
      %p177 = pneg %p116
      %p178 = scmp.lt.s32.totalorder %s18, 1
      %s179 = scalar_select %p178, %s18, 1
      %p180 = scmp.lt.s32.totalorder %s19, 0
      %s181 = scalar_select %p180, %s19, 0
      %s182 = smul.addr %s179, 8
      %s183 = sadd.s32 %s181, %s182
      %s184 = smul.addr %s183, 4
      %s185 = scalar_lea.vmem %s3, %s184
      %p186 = scmp.lt.s32.totalorder %s18, 1
      %s187 = scalar_select %p186, %s18, 1
      %p188 = scmp.lt.s32.totalorder %s19, 0
      %s189 = scalar_select %p188, %s19, 0
      %s190 = smul.addr %s187, 4
      %s191 = sadd.s32 %s189, %s190
      %s192 = smul.addr %s191, 4
      %s193 = scalar_lea.vmem %s2, %s192
      %p194 = scmp.lt.s32.totalorder %s18, 1
      %s195 = scalar_select %p194, %s18, 1
      %p196 = scmp.lt.s32.totalorder %s19, 0
      %s197 = scalar_select %p196, %s19, 0
      %s198 = smul.addr %s195, 8
      %s199 = sadd.s32 %s197, %s198
      %s200 = smul.addr %s199, 4
      %s201 = scalar_lea.vmem %s3, %s200
      %v203 = vld [vmem:[%s0] sm:$0xf]
      %v204 = vld [vmem:[%s0 + $0x4] sm:$0xf]
      %v205 = vld [vmem:[%s0 + $0x8] sm:$0xf]
      %v206 = vld [vmem:[%s0 + $0xc] sm:$0xf]
      %v207 = vld [vmem:[%s0 + $0x10] sm:$0xf]
      %v208 = vld [vmem:[%s0 + $0x14] sm:$0xf]
      %v209 = vld [vmem:[%s0 + $0x18] sm:$0xf]
      %v210 = vld [vmem:[%s0 + $0x1c] sm:$0xf]
      %v211 = vld [vmem:[%s193] sm:$0xf]
      %v212 = vld [vmem:[%s193 + $0x4] sm:$0xf]
      %v213 = vld [vmem:[%s193 + $0x8] sm:$0xf]
      %v214 = vld [vmem:[%s193 + $0xc] sm:$0xf]
      %v215 = vld [vmem:[%s1] sm:$0xff]
      %v216 = vld [vmem:[%s1 + $0x8] sm:$0xff]
      %v217 = vld [vmem:[%s1 + $0x10] sm:$0xff]
      %v218 = vld [vmem:[%s1 + $0x18] sm:$0xff]
      %v219 = vld [vmem:[%s1 + $0x20] sm:$0xff]
      %v220 = vld [vmem:[%s1 + $0x28] sm:$0xff]
      %v221 = vld [vmem:[%s1 + $0x30] sm:$0xff]
      %v222 = vld [vmem:[%s1 + $0x38] sm:$0xff]
      %224 = vset.pattern.permute.xlu0 0
      %225 = vperm.xlu0 %224, %v215
      %v226 = vpop.permute.xlu0 %225
      %229 = vset.pattern.permute.xlu0 0
      %230 = vperm.xlu0 %229, %v216
      %v231 = vpop.permute.xlu0 %230
      %234 = vset.pattern.permute.xlu0 0
      %235 = vperm.xlu0 %234, %v217
      %v236 = vpop.permute.xlu0 %235
      %239 = vset.pattern.permute.xlu0 0
      %240 = vperm.xlu0 %239, %v218
      %v241 = vpop.permute.xlu0 %240
      %244 = vset.pattern.permute.xlu0 0
      %245 = vperm.xlu0 %244, %v219
      %v246 = vpop.permute.xlu0 %245
      %249 = vset.pattern.permute.xlu0 0
      %250 = vperm.xlu0 %249, %v220
      %v251 = vpop.permute.xlu0 %250
      %254 = vset.pattern.permute.xlu0 0
      %255 = vperm.xlu0 %254, %v221
      %v256 = vpop.permute.xlu0 %255
      %259 = vset.pattern.permute.xlu0 0
      %260 = vperm.xlu0 %259, %v222
      %v261 = vpop.permute.xlu0 %260
      %v271 = vunpack.c.l.b16 %v203
      %v272 = vunpack.c.l.b16 %v204
      %v273 = vunpack.c.l.b16 %v205
      %v274 = vunpack.c.l.b16 %v206
      %v275 = vunpack.c.l.b16 %v207
      %v276 = vunpack.c.l.b16 %v208
      %v277 = vunpack.c.l.b16 %v209
      %v278 = vunpack.c.l.b16 %v210
      %v279 = vpack.c.b16 %v272, %v271
      %v280 = vpack.c.b16 %v274, %v273
      %v281 = vpack.c.b16 %v276, %v275
      %v282 = vpack.c.b16 %v278, %v277
      %v287 = vunpack.c.l.b16 %v211
      %v288 = vunpack.c.l.b16 %v212
      %v289 = vunpack.c.l.b16 %v213
      %v290 = vunpack.c.l.b16 %v214
      %v291 = vpack.c.b16 %v288, %v287
      %v292 = vpack.c.b16 %v290, %v289
      %vm295 = vcmask 261120
      %v297 = vsel %vm295, %v279, 0
      %v300 = vsel %vm295, %v280, 0
      %v303 = vsel %vm295, %v281, 0
      %v306 = vsel %vm295, %v282, 0
      %308 = vmatpush.bf16.msra.mxu0 0
      %309 = vmatpush.bf16.msra.mxu0 0
      %310 = vmatpush.bf16.msra.mxu0 0
      %311 = vmatpush.bf16.msra.mxu0 0
      %312 = vmatpush.bf16.msra.mxu0 0
      %313 = vmatpush.bf16.msra.mxu0 0
      %314 = vmatpush.bf16.msra.mxu0 %v292
      %315 = vmatpush.bf16.msra.mxu0 %v291
      %316 = vmatmul.bf16.gmra.mxu0 %v297
      %v317 = vpop.f32.mrf.mxu0
      %v318 = vadd.f32 %v226, %v317
      %v319 = vpop.f32.mrf.mxu0
      %v320 = vadd.f32 %v231, %v319
      %321 = vmatmul.bf16.gmra.mxu0 %v300
      %v322 = vpop.f32.mrf.mxu0
      %v323 = vadd.f32 %v236, %v322
      %v324 = vpop.f32.mrf.mxu0
      %v325 = vadd.f32 %v241, %v324
      %326 = vmatmul.bf16.gmra.mxu0 %v303
      %v327 = vpop.f32.mrf.mxu0
      %v328 = vadd.f32 %v246, %v327
      %v329 = vpop.f32.mrf.mxu0
      %v330 = vadd.f32 %v251, %v329
      %331 = vmatmul.bf16.gmra.mxu0 %v306
      %v332 = vpop.f32.mrf.mxu0
      %v333 = vadd.f32 %v256, %v332
      %v334 = vpop.f32.mrf.mxu0
      %v335 = vadd.f32 %v261, %v334
      %336 = vdwg.mxu0
      %v337 = vpack.c.bf16 %v318, %v318
      %v338 = vpack.c.bf16 %v320, %v320
      %v339 = vpack.c.bf16 %v323, %v323
      %v340 = vpack.c.bf16 %v325, %v325
      %v341 = vpack.c.bf16 %v328, %v328
      %v342 = vpack.c.bf16 %v330, %v330
      %v343 = vpack.c.bf16 %v333, %v333
      %v344 = vpack.c.bf16 %v335, %v335
      %vm345 = vcmask 519168
      %346 = vst.msk [vmem:[%s201] sm:$0xf] %vm345, %v337
      %347 = vst.msk [vmem:[%s201 + $0x4] sm:$0xf] %vm345, %v338
      %348 = vst.msk [vmem:[%s201 + $0x8] sm:$0xf] %vm345, %v339
      %349 = vst.msk [vmem:[%s201 + $0xc] sm:$0xf] %vm345, %v340
      %350 = vst.msk [vmem:[%s201 + $0x10] sm:$0xf] %vm345, %v341
      %351 = vst.msk [vmem:[%s201 + $0x14] sm:$0xf] %vm345, %v342
      %352 = vst.msk [vmem:[%s201 + $0x18] sm:$0xf] %vm345, %v343
      %353 = vst.msk [vmem:[%s201 + $0x1c] sm:$0xf] %vm345, %v344
      %p354 = scmp.lt.s32.totalorder %s18, 1
      %s355 = scalar_select %p354, %s18, 1
      %p356 = scmp.lt.s32.totalorder %s19, 0
      %s357 = scalar_select %p356, %s19, 0
      %s358 = smul.addr %s355, 8
      %s359 = sadd.s32 %s357, %s358
      %s360 = smul.addr %s359, 4
      %s361 = scalar_lea.vmem %s3, %s360
      // Predicated region
      $region33: #{up_forward.4} parent=31 // pred_check
        %p362 = pneg %p116
      $region34: #{up_forward.4} parent=31 // pred_check_branch
        %364 = sbr.rel (%p362) target = $region36
      $region35: #{up_forward.4} parent=31 // pred_region
        _
      $region36: #{up_forward.4} parent=31 // pred_fallthru
        _
    $region32: #{up_forward.4} parent=5 // pred_fallthru
      _
    %p365 = scmp.le.s32.totalorder 2, %s9
    // Predicated region
    $region37: #{up_forward.4} parent=5 // pred_check
      %p366 = pneg %p365
    $region38: #{up_forward.4} parent=5 // pred_check_branch
      %368 = sbr.rel (%p366) target = $region40
    $region39: #{up_forward.4} parent=5 // pred_region
      %s369 = ssub.s32 %s9, 2
      // Predicated region
      $region41: #{up_forward.4} parent=39 // pred_check
        %p370 = pneg %p122
      $region42: #{up_forward.4} parent=39 // pred_check_branch
        %372 = sbr.rel (%p370) target = $region44
      $region43: #{up_forward.4} parent=39 // pred_region
        %p373 = scmp.lt.s32.totalorder %s20, 1
        %s374 = scalar_select %p373, %s20, 1
        %p375 = scmp.lt.s32.totalorder %s21, 0
        %s376 = scalar_select %p375, %s21, 0
        %s377 = smul.addr %s374, 8
        %s378 = sadd.s32 %s376, %s377
        %s379 = smul.addr %s378, 4
        %s380 = scalar_lea.vmem %s3, %s379
      $region44: #{up_forward.4} parent=39 // pred_fallthru
        _
    $region40: #{up_forward.4} parent=5 // pred_fallthru
      _
  $region6: #{up_forward.4} parent=0 // loop_footer
    %s13 = sadd.s32 1, %s9
  $region7: #{up_forward.4} parent=0 // loop_footer_branch
    %8 = sbr.rel target = $region3
  $region8: #{up_forward.4} parent=0 // loop_exit
    _

// kernel: up_forward.5
$region0: #{up_forward.5}
  #allocation0 [shape = 'u32[]', space=smem, size = 0x4, offset = 0x4, fixed_abs, tag = 'smem constant byte address 0x4 - core index']
  #allocation1 [shape = 'u32[72,128]{1,0:T(1,128)}', space=vmem, size = 0x9000, scoped, tag = 'internal scratch']
  #allocation2 [shape = 'f32[16,1]{1,0:T(8,128)}', space=vmem, size = 0x2000, scoped, tag = 'scratch operand']
  #allocation3 [shape = 'f32[16,1]{1,0:T(8,128)}', space=vmem, size = 0x2000, scoped, tag = 'scratch operand']
  #allocation4 [shape = 'f32[16,1]{1,0:T(8,128)}', space=vmem, size = 0x2000, scoped, tag = 'scratch operand']
  #allocation5 [shape = 'f32[16,1]{1,0:T(8,128)}', space=vmem, size = 0x2000, scoped, tag = 'scratch operand']
  %s0 = inlined_call_operand.vmem [shape: f32[2,16,256], index: 0, kind: input, shape index: {}]
  %s1 = inlined_call_operand.vmem [shape: bf16[2,16,256], index: 1, kind: input, shape index: {}]
  %s2 = inlined_call_operand.vmem [shape: f32[2,16], index: 2, kind: input, shape index: {}]
  %s3 = inlined_call_operand.vmem [shape: f32[2,16], index: 3, kind: input, shape index: {}]
  %s4 = inlined_call_operand.vmem [shape: f32[32,2], index: 4, kind: input, shape index: {}]
  %s5 = inlined_call_operand.vmem [shape: f32[2,32,1], index: 5, kind: output, shape index: {}]
  %s6 = sld [smem:[#allocation0]]
  $region65: #{up_forward.5} parent=0
    _
  %s8 = ssub.s32 1, %s6
  %s9 = scalar_select 0, %s8, %s6
  loop: start=0, step=1, limit=4
  $region2: #{up_forward.5} parent=0 // loop_pre_header
    _
  $region3: #{up_forward.5} parent=0 // loop_header
    %s11 = sphi 0, %s15
    %p12 = scmp.ge.s32.totalorder %s11, 4
    %s18 = sphi 0, %s30
    %s19 = sphi 0, %s26
    %s20 = sphi 0, %s18
    %s21 = sphi 0, %s19
    %s22 = sphi 0, %s20
    %s23 = sphi 0, %s21
    %s35 = sphi 0, %s37
    %s38 = sphi 0, %s35
    %s39 = sphi 0, %s38
    %s55 = sphi 0, %s39
    %s63 = sphi 0, %s65
    %s66 = sphi 0, %s63
    %s67 = sphi 0, %s66
    %s83 = sphi 0, %s67
    %s87 = sphi 0, %s87
    %s89 = sphi 0, %s87
    %s90 = sphi 0, %s89
    %s104 = sphi 0, %s90
    %s108 = sphi 0, %s108
    %s110 = sphi 0, %s108
    %s111 = sphi 0, %s110
    %s125 = sphi 0, %s111
    %s129 = sphi 0, %s129
    %s131 = sphi 0, %s129
    %s132 = sphi 0, %s131
    %s146 = sphi 0, %s132
    %s152 = sphi 0, %s154
    %s155 = sphi 0, %s152
    %s156 = sphi 0, %s155
    %s172 = sphi 0, %s156
  $region4: #{up_forward.5} parent=0 // loop_header_branch
    %14 = sbr.rel (%p12) target = $region8
  $region5: #{up_forward.5} parent=0 // loop_body
    %s16 = ssub.s32 %s11, 1
    %s17 = ssub.s32 %s11, 2
    %s24 = sadd.s32 1, %s19
    %p25 = scmp.ge.s32.totalorder %s24, 1
    %s26 = scalar_select %p25, 0, %s24
    %s27 = sadd.s32 1, %s18
    %s28 = scalar_select %p25, %s27, %s18
    %p29 = scmp.ge.s32.totalorder %s28, 2
    %s30 = scalar_select %p29, 0, %s28
    %s31 = ssub.s32 %s18, %s30
    %s32 = ssub.s32 %s19, %s26
    %s33 = sor.u32 %s31, %s32
    %p34 = scmp.eq.s32.totalorder %s33, 0
    %s36 = sadd.s32 %s35, 1
    %s37 = scalar_select %p34, %s35, %s36
    %p40 = pneg %p34
    %p41 = scmp.eq.s32.totalorder %s11, 1
    %p42 = por %p40, %p41
    %p43 = scmp.ne.s32.totalorder %s35, %s38
    %p44 = scmp.eq.s32.totalorder %s11, 0
    %p45 = por %p43, %p44
    %p46 = scmp.ne.s32.totalorder %s35, %s38
    %p47 = scmp.eq.s32.totalorder %s16, 1
    %p48 = por %p46, %p47
    %p49 = scmp.ne.s32.totalorder %s38, %s39
    %p50 = scmp.eq.s32.totalorder %s16, 0
    %p51 = por %p49, %p50
    %p52 = scmp.ne.s32.totalorder %s38, %s39
    %p53 = scmp.eq.s32.totalorder %s17, 1
    %p54 = por %p52, %p53
    %p56 = scmp.ne.s32.totalorder %s39, %s55
    %p57 = scmp.eq.s32.totalorder %s17, 0
    %p58 = por %p56, %p57
    %s59 = ssub.s32 %s18, %s30
    %s60 = ssub.s32 %s19, %s26
    %s61 = sor.u32 %s59, %s60
    %p62 = scmp.eq.s32.totalorder %s61, 0
    %s64 = sadd.s32 %s63, 1
    %s65 = scalar_select %p62, %s63, %s64
    %p68 = pneg %p62
    %p69 = scmp.eq.s32.totalorder %s11, 1
    %p70 = por %p68, %p69
    %p71 = scmp.ne.s32.totalorder %s63, %s66
    %p72 = scmp.eq.s32.totalorder %s11, 0
    %p73 = por %p71, %p72
    %p74 = scmp.ne.s32.totalorder %s63, %s66
    %p75 = scmp.eq.s32.totalorder %s16, 1
    %p76 = por %p74, %p75
    %p77 = scmp.ne.s32.totalorder %s66, %s67
    %p78 = scmp.eq.s32.totalorder %s16, 0
    %p79 = por %p77, %p78
    %p80 = scmp.ne.s32.totalorder %s66, %s67
    %p81 = scmp.eq.s32.totalorder %s17, 1
    %p82 = por %p80, %p81
    %p84 = scmp.ne.s32.totalorder %s67, %s83
    %p85 = scmp.eq.s32.totalorder %s17, 0
    %p86 = por %p84, %p85
    %s88 = sadd.s32 %s87, 1
    %p91 = scmp.eq.s32.totalorder %s11, 1
    %p92 = scmp.ne.s32.totalorder %s87, %s89
    %p93 = scmp.eq.s32.totalorder %s11, 0
    %p94 = por %p92, %p93
    %p95 = scmp.ne.s32.totalorder %s87, %s89
    %p96 = scmp.eq.s32.totalorder %s16, 1
    %p97 = por %p95, %p96
    %p98 = scmp.ne.s32.totalorder %s89, %s90
    %p99 = scmp.eq.s32.totalorder %s16, 0
    %p100 = por %p98, %p99
    %p101 = scmp.ne.s32.totalorder %s89, %s90
    %p102 = scmp.eq.s32.totalorder %s17, 1
    %p103 = por %p101, %p102
    %p105 = scmp.ne.s32.totalorder %s90, %s104
    %p106 = scmp.eq.s32.totalorder %s17, 0
    %p107 = por %p105, %p106
    %s109 = sadd.s32 %s108, 1
    %p112 = scmp.eq.s32.totalorder %s11, 1
    %p113 = scmp.ne.s32.totalorder %s108, %s110
    %p114 = scmp.eq.s32.totalorder %s11, 0
    %p115 = por %p113, %p114
    %p116 = scmp.ne.s32.totalorder %s108, %s110
    %p117 = scmp.eq.s32.totalorder %s16, 1
    %p118 = por %p116, %p117
    %p119 = scmp.ne.s32.totalorder %s110, %s111
    %p120 = scmp.eq.s32.totalorder %s16, 0
    %p121 = por %p119, %p120
    %p122 = scmp.ne.s32.totalorder %s110, %s111
    %p123 = scmp.eq.s32.totalorder %s17, 1
    %p124 = por %p122, %p123
    %p126 = scmp.ne.s32.totalorder %s111, %s125
    %p127 = scmp.eq.s32.totalorder %s17, 0
    %p128 = por %p126, %p127
    %s130 = sadd.s32 %s129, 1
    %p133 = scmp.eq.s32.totalorder %s11, 1
    %p134 = scmp.ne.s32.totalorder %s129, %s131
    %p135 = scmp.eq.s32.totalorder %s11, 0
    %p136 = por %p134, %p135
    %p137 = scmp.ne.s32.totalorder %s129, %s131
    %p138 = scmp.eq.s32.totalorder %s16, 1
    %p139 = por %p137, %p138
    %p140 = scmp.ne.s32.totalorder %s131, %s132
    %p141 = scmp.eq.s32.totalorder %s16, 0
    %p142 = por %p140, %p141
    %p143 = scmp.ne.s32.totalorder %s131, %s132
    %p144 = scmp.eq.s32.totalorder %s17, 1
    %p145 = por %p143, %p144
    %p147 = scmp.ne.s32.totalorder %s132, %s146
    %p148 = scmp.eq.s32.totalorder %s17, 0
    %p149 = por %p147, %p148
    %s150 = ssub.s32 %s18, %s30
    %p151 = scmp.eq.s32.totalorder %s150, 0
    %s153 = sadd.s32 %s152, 1
    %s154 = scalar_select %p151, %s152, %s153
    %p157 = pneg %p151
    %p158 = scmp.eq.s32.totalorder %s11, 1
    %p159 = por %p157, %p158
    %p160 = scmp.ne.s32.totalorder %s152, %s155
    %p161 = scmp.eq.s32.totalorder %s11, 0
    %p162 = por %p160, %p161
    %p163 = scmp.ne.s32.totalorder %s152, %s155
    %p164 = scmp.eq.s32.totalorder %s16, 1
    %p165 = por %p163, %p164
    %p166 = scmp.ne.s32.totalorder %s155, %s156
    %p167 = scmp.eq.s32.totalorder %s16, 0
    %p168 = por %p166, %p167
    %p169 = scmp.ne.s32.totalorder %s155, %s156
    %p170 = scmp.eq.s32.totalorder %s17, 1
    %p171 = por %p169, %p170
    %p173 = scmp.ne.s32.totalorder %s156, %s172
    %p174 = scmp.eq.s32.totalorder %s17, 0
    %p175 = por %p173, %p174
    %p176 = scmp.le.s32.totalorder 1, %s11
    %p177 = scmp.lt.s32.totalorder %s11, 3
    %p178 = pnand %p176, %p177
    %p179 = pneg %p178
    // Predicated region
    $region9: #{up_forward.5} parent=5 // pred_check
      _
    $region10: #{up_forward.5} parent=5 // pred_check_branch
      %181 = sbr.rel (%p178) target = $region12
    $region11: #{up_forward.5} parent=5 // pred_region
      %s182 = ssub.s32 %s11, 1
      // Predicated region
      $region13: #{up_forward.5} parent=11 // pred_check
        %p183 = pneg %p100
      $region14: #{up_forward.5} parent=11 // pred_check_branch
        %185 = sbr.rel (%p183) target = $region16
      $region15: #{up_forward.5} parent=11 // pred_region
        _
      $region16: #{up_forward.5} parent=11 // pred_fallthru
        _
      // Predicated region
      $region17: #{up_forward.5} parent=11 // pred_check
        %p186 = pneg %p121
      $region18: #{up_forward.5} parent=11 // pred_check_branch
        %188 = sbr.rel (%p186) target = $region20
      $region19: #{up_forward.5} parent=11 // pred_region
        _
      $region20: #{up_forward.5} parent=11 // pred_fallthru
        _
      // Predicated region
      $region21: #{up_forward.5} parent=11 // pred_check
        %p189 = pneg %p142
      $region22: #{up_forward.5} parent=11 // pred_check_branch
        %191 = sbr.rel (%p189) target = $region24
      $region23: #{up_forward.5} parent=11 // pred_region
        _
      $region24: #{up_forward.5} parent=11 // pred_fallthru
        _
    $region12: #{up_forward.5} parent=5 // pred_fallthru
      _
    %p192 = scmp.lt.s32.totalorder %s11, 2
    // Predicated region
    $region25: #{up_forward.5} parent=5 // pred_check
      %p193 = pneg %p192
    $region26: #{up_forward.5} parent=5 // pred_check_branch
      %195 = sbr.rel (%p193) target = $region28
    $region27: #{up_forward.5} parent=5 // pred_region
      // Predicated region
      $region29: #{up_forward.5} parent=27 // pred_check
        %p196 = pneg %p45
      $region30: #{up_forward.5} parent=27 // pred_check_branch
        %198 = sbr.rel (%p196) target = $region32
      $region31: #{up_forward.5} parent=27 // pred_region
        %s199 = smul.u32 2, %s19
        %p200 = scmp.lt.s32.totalorder %s18, 1
        %s201 = scalar_select %p200, %s18, 1
        %p202 = scmp.lt.s32.totalorder %s199, 1
        %s203 = scalar_select %p202, %s199, 1
        %s204 = smul.addr %s201, 4
        %s205 = sadd.s32 %s203, %s204
        %s206 = smul.addr %s205, 8
        %s207 = scalar_lea.vmem %s0, %s206
        %s208 = smul.u32 2, %s19
      $region32: #{up_forward.5} parent=27 // pred_fallthru
        _
      // Predicated region
      $region33: #{up_forward.5} parent=27 // pred_check
        %p209 = pneg %p73
      $region34: #{up_forward.5} parent=27 // pred_check_branch
        %211 = sbr.rel (%p209) target = $region36
      $region35: #{up_forward.5} parent=27 // pred_region
        %s212 = smul.u32 2, %s19
        %p213 = scmp.lt.s32.totalorder %s18, 1
        %s214 = scalar_select %p213, %s18, 1
        %p215 = scmp.lt.s32.totalorder %s212, 1
        %s216 = scalar_select %p215, %s212, 1
        %s217 = smul.addr %s214, 4
        %s218 = sadd.s32 %s216, %s217
        %s219 = smul.addr %s218, 4
        %s220 = scalar_lea.vmem %s1, %s219
        %s221 = smul.u32 2, %s19
      $region36: #{up_forward.5} parent=27 // pred_fallthru
        _
    $region28: #{up_forward.5} parent=5 // pred_fallthru
      _
    %p222 = scmp.le.s32.totalorder 1, %s11
    %p223 = scmp.lt.s32.totalorder %s11, 3
    %p224 = pnand %p222, %p223
    %p225 = pneg %p224
    // Predicated region
    $region37: #{up_forward.5} parent=5 // pred_check
      _
    $region38: #{up_forward.5} parent=5 // pred_check_branch
      %227 = sbr.rel (%p224) target = $region40
    $region39: #{up_forward.5} parent=5 // pred_region
      %s228 = ssub.s32 %s11, 1
      %s229 = smul.u32 2, %s21
      %p230 = scmp.lt.s32.totalorder %s20, 1
      %s231 = scalar_select %p230, %s20, 1
      %p232 = scmp.lt.s32.totalorder %s229, 1
      %s233 = scalar_select %p232, %s229, 1
      %s234 = smul.addr %s231, 4
      %s235 = sadd.s32 %s233, %s234
      %s236 = smul.addr %s235, 8
      %s237 = scalar_lea.vmem %s0, %s236
      %p238 = pneg %p51
      %p239 = pneg %p48
      %s240 = smul.u32 2, %s21
      %p241 = scmp.lt.s32.totalorder %s20, 1
      %s242 = scalar_select %p241, %s20, 1
      %p243 = scmp.lt.s32.totalorder %s240, 1
      %s244 = scalar_select %p243, %s240, 1
      %s245 = smul.addr %s242, 4
      %s246 = sadd.s32 %s244, %s245
      %s247 = smul.addr %s246, 4
      %s248 = scalar_lea.vmem %s1, %s247
      %p249 = pneg %p79
      %p250 = pneg %p76
      %p251 = pneg %p100
      %p252 = pneg %p97
      %p253 = pneg %p121
      %p254 = pneg %p118
      %p255 = pneg %p142
      %p256 = pneg %p139
      %p257 = pneg %p168
      %p258 = pneg %p165
      %p259 = scmp.lt.s32.totalorder %s20, 1
      %s260 = scalar_select %p259, %s20, 1
      %s261 = smul.addr %s260, 4
      %s262 = smul.addr %s261, 8
      %s263 = scalar_lea.vmem %s5, %s262
      %s264 = smul.u32 2, %s21
      %p265 = scmp.lt.s32.totalorder %s20, 1
      %s266 = scalar_select %p265, %s20, 1
      %p267 = scmp.lt.s32.totalorder %s264, 1
      %s268 = scalar_select %p267, %s264, 1
      %s269 = smul.addr %s266, 4
      %s270 = sadd.s32 %s268, %s269
      %s271 = smul.addr %s270, 8
      %s272 = scalar_lea.vmem %s0, %s271
      %s273 = smul.u32 2, %s21
      %s274 = smul.u32 2, %s21
      %p275 = scmp.lt.s32.totalorder %s20, 1
      %s276 = scalar_select %p275, %s20, 1
      %p277 = scmp.lt.s32.totalorder %s274, 1
      %s278 = scalar_select %p277, %s274, 1
      %s279 = smul.addr %s276, 4
      %s280 = sadd.s32 %s278, %s279
      %s281 = smul.addr %s280, 4
      %s282 = scalar_lea.vmem %s1, %s281
      %s283 = smul.u32 2, %s21
      %p284 = scmp.lt.s32.totalorder %s20, 1
      %s285 = scalar_select %p284, %s20, 1
      %s286 = smul.addr %s285, 4
      %s287 = smul.addr %s286, 8
      %s288 = scalar_lea.vmem %s5, %s287
      %v289 = vld [vmem:[%s272] sm:$0xff]
      %v290 = vld [vmem:[%s272 + $0x8] sm:$0xff]
      %v291 = vld [vmem:[%s272 + $0x10] sm:$0xff]
      %v292 = vld [vmem:[%s272 + $0x18] sm:$0xff]
      %v293 = vld [vmem:[%s282] sm:$0xff]
      %v294 = vld [vmem:[%s282 + $0x8] sm:$0xff]
      %v295 = vunpack.c.l.bf16 %v293
      %v296 = vunpack.c.h.bf16 %v293
      %v297 = vunpack.c.l.bf16 %v294
      %v298 = vunpack.c.h.bf16 %v294
      %v299 = vadd.f32 %v289, %v290
      %300 = vadd.xlane.f32.xlu0 %v299
      %v301 = vpop.xlane.xlu0 %300
      %v302 = vadd.f32 %v291, %v292
      %303 = vadd.xlane.f32.xlu0 %v302
      %v304 = vpop.xlane.xlu0 %303
      %v305 = vmax.f32 %v289, %v290
      %306 = vmax.xlane.f32.xlu0 %v305
      %v307 = vpop.xlane.xlu0 %306
      %v308 = vmax.f32 %v291, %v292
      %309 = vmax.xlane.f32.xlu0 %v308
      %v310 = vpop.xlane.xlu0 %309
      %v311 = vadd.f32 %v295, %v296
      %312 = vadd.xlane.f32.xlu0 %v311
      %v313 = vpop.xlane.xlu0 %312
      %v314 = vadd.f32 %v297, %v298
      %315 = vadd.xlane.f32.xlu0 %v314
      %v316 = vpop.xlane.xlu0 %315
      %v317 = vmax.f32 %v295, %v296
      %318 = vmax.xlane.f32.xlu0 %v317
      %v319 = vpop.xlane.xlu0 %318
      %v320 = vmax.f32 %v297, %v298
      %321 = vmax.xlane.f32.xlu0 %v320
      %v322 = vpop.xlane.xlu0 %321
      %p323 = scmp.eq.s32.totalorder %s21, 0
      // Predicated region
      $region41: #{up_forward.5} parent=39 // pred_check
        %p324 = pneg %p323
      $region42: #{up_forward.5} parent=39 // pred_check_branch
        %326 = sbr.rel (%p324) target = $region44
      $region43: #{up_forward.5} parent=39 // pred_region
        %vm327 = vcmask 7168
        %328 = vst.msk [vmem:[#allocation2] sm:$0xff] %vm327, %v301
        %329 = vst.msk [vmem:[#allocation2 + $0x8] sm:$0xff] %vm327, %v304
        %330 = vst.msk [vmem:[#allocation3] sm:$0xff] %vm327, %v307
        %331 = vst.msk [vmem:[#allocation3 + $0x8] sm:$0xff] %vm327, %v310
        %332 = vst.msk [vmem:[#allocation4] sm:$0xff] %vm327, %v313
        %333 = vst.msk [vmem:[#allocation4 + $0x8] sm:$0xff] %vm327, %v316
        %334 = vst.msk [vmem:[#allocation5] sm:$0xff] %vm327, %v319
        %335 = vst.msk [vmem:[#allocation5 + $0x8] sm:$0xff] %vm327, %v322
      $region44: #{up_forward.5} parent=39 // pred_fallthru
        _
      %p336 = scmp.gt.s32.totalorder %s21, 0
      // Predicated region
      $region45: #{up_forward.5} parent=39 // pred_check
        %p337 = pneg %p336
      $region46: #{up_forward.5} parent=39 // pred_check_branch
        %339 = sbr.rel (%p337) target = $region48
      $region47: #{up_forward.5} parent=39 // pred_region
        %v340 = vld [vmem:[#allocation2] sm:$0xff]
        %v341 = vld [vmem:[#allocation2 + $0x8] sm:$0xff]
        %v342 = vadd.f32 %v340, %v301
        %v343 = vadd.f32 %v341, %v304
        %vm344 = vcmask 7168
        %345 = vst.msk [vmem:[#allocation2] sm:$0xff] %vm344, %v342
        %346 = vst.msk [vmem:[#allocation2 + $0x8] sm:$0xff] %vm344, %v343
        %v347 = vld [vmem:[#allocation3] sm:$0xff]
        %v348 = vld [vmem:[#allocation3 + $0x8] sm:$0xff]
        %v349 = vmax.f32 %v347, %v307
        %v350 = vmax.f32 %v348, %v310
        %351 = vst.msk [vmem:[#allocation3] sm:$0xff] %vm344, %v349
        %352 = vst.msk [vmem:[#allocation3 + $0x8] sm:$0xff] %vm344, %v350
        %v353 = vld [vmem:[#allocation4] sm:$0xff]
        %v354 = vld [vmem:[#allocation4 + $0x8] sm:$0xff]
        %v355 = vadd.f32 %v353, %v313
        %v356 = vadd.f32 %v354, %v316
        %357 = vst.msk [vmem:[#allocation4] sm:$0xff] %vm344, %v355
        %358 = vst.msk [vmem:[#allocation4 + $0x8] sm:$0xff] %vm344, %v356
        %v359 = vld [vmem:[#allocation5] sm:$0xff]
        %v360 = vld [vmem:[#allocation5 + $0x8] sm:$0xff]
        %v361 = vmax.f32 %v359, %v319
        %v362 = vmax.f32 %v360, %v322
        %363 = vst.msk [vmem:[#allocation5] sm:$0xff] %vm344, %v361
        %364 = vst.msk [vmem:[#allocation5 + $0x8] sm:$0xff] %vm344, %v362
      $region48: #{up_forward.5} parent=39 // pred_fallthru
        _
      // Predicated region
      $region49: #{up_forward.5} parent=39 // pred_check
        %p365 = pneg %p323
      $region50: #{up_forward.5} parent=39 // pred_check_branch
        %367 = sbr.rel (%p365) target = $region52
      $region51: #{up_forward.5} parent=39 // pred_region
        %v368 = vld [vmem:[#allocation2] sm:$0xff]
        %v369 = vld [vmem:[#allocation2 + $0x8] sm:$0xff]
        %v370 = vmul.f32 %v368, 0.00390625
        %v371 = vmul.f32 %v369, 0.00390625
        %v372 = vld [vmem:[#allocation4] sm:$0xff]
        %v373 = vld [vmem:[#allocation4 + $0x8] sm:$0xff]
        %v374 = vmul.f32 %v372, 0.00390625
        %v375 = vmul.f32 %v373, 0.00390625
        %v376 = vld [vmem:[%s2] sm:$0x3]
        %v377 = vld [vmem:[%s3] sm:$0x3]
        %vm378 = vcmask 130048
        %v380 = vsel %vm378, %v377, 0
        %382 = vmatpush.msra.mxu0 0.0
        %383 = vmatpush.msra.mxu0 0.0
        %384 = vmatpush.msra.mxu0 0.0
        %385 = vmatpush.msra.mxu0 0.0
        %386 = vmatpush.msra.mxu0 0.0
        %387 = vmatpush.msra.mxu0 0.0
        %388 = vmatpush.msra.mxu0 0.0
        %389 = vmatpush.msra.mxu0 0.0
        %390 = vmatpush.msra.mxu0 0.0
        %391 = vmatpush.msra.mxu0 0.0
        %392 = vmatpush.msra.mxu0 0.0
        %393 = vmatpush.msra.mxu0 0.0
        %394 = vmatpush.msra.mxu0 0.0
        %395 = vmatpush.msra.mxu0 0.0
        %396 = vmatpush.msra.mxu0 %v375
        %397 = vmatpush.msra.mxu0 %v374
        %398 = vmatmul.f32.gmra.mxu0 %v380
        %v399 = vpop.f32.mrf.mxu0
        %v400 = vadd.f32 0.0, %v399
        %401 = vdwg.mxu0
        %v403 = vsel %vm378, %v376, 0
        %405 = vmatpush.msra.mxu0 0.0
        %406 = vmatpush.msra.mxu0 0.0
        %407 = vmatpush.msra.mxu0 0.0
        %408 = vmatpush.msra.mxu0 0.0
        %409 = vmatpush.msra.mxu0 0.0
        %410 = vmatpush.msra.mxu0 0.0
        %411 = vmatpush.msra.mxu0 0.0
        %412 = vmatpush.msra.mxu0 0.0
        %413 = vmatpush.msra.mxu0 0.0
        %414 = vmatpush.msra.mxu0 0.0
        %415 = vmatpush.msra.mxu0 0.0
        %416 = vmatpush.msra.mxu0 0.0
        %417 = vmatpush.msra.mxu0 0.0
        %418 = vmatpush.msra.mxu0 0.0
        %419 = vmatpush.msra.mxu0 %v371
        %420 = vmatpush.msra.mxu0 %v370
        %421 = vmatmul.f32.gmra.mxu0 %v403
        %v422 = vpop.f32.mrf.mxu0
        %v423 = vadd.f32 %v400, %v422
        %424 = vdwg.mxu0
        %v425 = vld [vmem:[#allocation3] sm:$0xff]
        %v426 = vld [vmem:[#allocation3 + $0x8] sm:$0xff]
        %v427 = vld [vmem:[#allocation5] sm:$0xff]
        %v428 = vld [vmem:[#allocation5 + $0x8] sm:$0xff]
        %429 = vmatpush.msra.mxu0 0.0
        %430 = vmatpush.msra.mxu0 0.0
        %431 = vmatpush.msra.mxu0 0.0
        %432 = vmatpush.msra.mxu0 0.0
        %433 = vmatpush.msra.mxu0 0.0
        %434 = vmatpush.msra.mxu0 0.0
        %435 = vmatpush.msra.mxu0 0.0
        %436 = vmatpush.msra.mxu0 0.0
        %437 = vmatpush.msra.mxu0 0.0
        %438 = vmatpush.msra.mxu0 0.0
        %439 = vmatpush.msra.mxu0 0.0
        %440 = vmatpush.msra.mxu0 0.0
        %441 = vmatpush.msra.mxu0 0.0
        %442 = vmatpush.msra.mxu0 0.0
        %443 = vmatpush.msra.mxu0 %v428
        %444 = vmatpush.msra.mxu0 %v427
        %445 = vmatmul.f32.gmra.mxu0 %v380
        %v446 = vpop.f32.mrf.mxu0
        %v447 = vadd.f32 0.0, %v446
        %448 = vdwg.mxu0
        %449 = vmatpush.msra.mxu0 0.0
        %450 = vmatpush.msra.mxu0 0.0
        %451 = vmatpush.msra.mxu0 0.0
        %452 = vmatpush.msra.mxu0 0.0
        %453 = vmatpush.msra.mxu0 0.0
        %454 = vmatpush.msra.mxu0 0.0
        %455 = vmatpush.msra.mxu0 0.0
        %456 = vmatpush.msra.mxu0 0.0
        %457 = vmatpush.msra.mxu0 0.0
        %458 = vmatpush.msra.mxu0 0.0
        %459 = vmatpush.msra.mxu0 0.0
        %460 = vmatpush.msra.mxu0 0.0
        %461 = vmatpush.msra.mxu0 0.0
        %462 = vmatpush.msra.mxu0 0.0
        %463 = vmatpush.msra.mxu0 %v426
        %464 = vmatpush.msra.mxu0 %v425
        %465 = vmatmul.f32.gmra.mxu0 %v403
        %v466 = vpop.f32.mrf.mxu0
        %v467 = vadd.f32 %v447, %v466
        %468 = vdwg.mxu0
        %v469 = vmax.f32 %v423, 0.0
        %v470 = vmax.f32 %v467, 0.0
        %v471 = vadd.f32 %v469, %v470
        %v472 = vld [vmem:[%s4] sm:$0xff]
        %v473 = vld [vmem:[%s4 + $0x8] sm:$0xff]
        %v474 = vld [vmem:[%s4 + $0x10] sm:$0xff]
        %v475 = vld [vmem:[%s4 + $0x18] sm:$0xff]
        %vm476 = vcmask 15360
        %v478 = vsel %vm476, %v472, 0
        %v481 = vsel %vm476, %v473, 0
        %v484 = vsel %vm476, %v474, 0
        %v487 = vsel %vm476, %v475, 0
        %vm489 = vcmask 1041408
        %v491 = vsel %vm489, %v471, 0
        %493 = vmatpush.msra.mxu0 0.0
        %494 = vmatpush.msra.mxu0 0.0
        %495 = vmatpush.msra.mxu0 0.0
        %496 = vmatpush.msra.mxu0 0.0
        %497 = vmatpush.msra.mxu0 0.0
        %498 = vmatpush.msra.mxu0 0.0
        %499 = vmatpush.msra.mxu0 0.0
        %500 = vmatpush.msra.mxu0 0.0
        %501 = vmatpush.msra.mxu0 0.0
        %502 = vmatpush.msra.mxu0 0.0
        %503 = vmatpush.msra.mxu0 0.0
        %504 = vmatpush.msra.mxu0 0.0
        %505 = vmatpush.msra.mxu0 0.0
        %506 = vmatpush.msra.mxu0 0.0
        %507 = vmatpush.msra.mxu0 0.0
        %508 = vmatpush.msra.mxu0 %v491
        %509 = vmatmul.f32.gmra.mxu0 %v478
        %v510 = vpop.f32.mrf.mxu0
        %v511 = vadd.f32 0.0, %v510
        %512 = vmatmul.f32.gmra.mxu0 %v481
        %v513 = vpop.f32.mrf.mxu0
        %v514 = vadd.f32 0.0, %v513
        %515 = vmatmul.f32.gmra.mxu0 %v484
        %v516 = vpop.f32.mrf.mxu0
        %v517 = vadd.f32 0.0, %v516
        %518 = vmatmul.f32.gmra.mxu0 %v487
        %v519 = vpop.f32.mrf.mxu0
        %v520 = vadd.f32 0.0, %v519
        %521 = vdwg.mxu0
        %v522 = vxor.u32 %v511, 2147483648
        %v523 = vxor.u32 %v514, 2147483648
        %v524 = vxor.u32 %v517, 2147483648
        %v525 = vxor.u32 %v520, 2147483648
        %v526 = vmul.f32 %v522, 1.442695
        %v527 = vpow.pop %v526
        %v528 = vmul.f32 %v523, 1.442695
        %v529 = vpow.pop %v528
        %v530 = vmul.f32 %v524, 1.442695
        %v531 = vpow.pop %v530
        %v532 = vmul.f32 %v525, 1.442695
        %v533 = vpow.pop %v532
        %v534 = vadd.f32 %v527, 1.0
        %v535 = vadd.f32 %v529, 1.0
        %v536 = vadd.f32 %v531, 1.0
        %v537 = vadd.f32 %v533, 1.0
        %v538 = vrcp.pop %v534
        %v539 = vmul.f32 %v534, %v538
        %v540 = vsub.f32 1.0, %v539
        %v541 = vmul.f32 %v538, %v540
        %v542 = vadd.f32 %v538, %v541
        %vm543 = vweird.f32 %v534
        %vm544 = vweird.f32 %v538
        %vm545 = vmor %vm543, %vm544
        %v546 = vsel %vm545, %v538, %v542
        %v547 = vand.u32 2147483647, %v534
        %vm548 = vcmp.eq.f32.partialorder %v547, 8.507059e+37
        %v549 = vand.u32 %v534, 2147483648
        %v550 = vor.u32 1.1754944e-38, %v549
        %v551 = vsel %vm548, %v550, %v546
        %v552 = vmul.f32 1.0, %v551
        %v553 = vrcp.pop %v535
        %v554 = vmul.f32 %v535, %v553
        %v555 = vsub.f32 1.0, %v554
        %v556 = vmul.f32 %v553, %v555
        %v557 = vadd.f32 %v553, %v556
        %vm558 = vweird.f32 %v535
        %vm559 = vweird.f32 %v553
        %vm560 = vmor %vm558, %vm559
        %v561 = vsel %vm560, %v553, %v557
        %v562 = vand.u32 2147483647, %v535
        %vm563 = vcmp.eq.f32.partialorder %v562, 8.507059e+37
        %v564 = vand.u32 %v535, 2147483648
        %v565 = vor.u32 1.1754944e-38, %v564
        %v566 = vsel %vm563, %v565, %v561
        %v567 = vmul.f32 1.0, %v566
        %v568 = vrcp.pop %v536
        %v569 = vmul.f32 %v536, %v568
        %v570 = vsub.f32 1.0, %v569
        %v571 = vmul.f32 %v568, %v570
        %v572 = vadd.f32 %v568, %v571
        %vm573 = vweird.f32 %v536
        %vm574 = vweird.f32 %v568
        %vm575 = vmor %vm573, %vm574
        %v576 = vsel %vm575, %v568, %v572
        %v577 = vand.u32 2147483647, %v536
        %vm578 = vcmp.eq.f32.partialorder %v577, 8.507059e+37
        %v579 = vand.u32 %v536, 2147483648
        %v580 = vor.u32 1.1754944e-38, %v579
        %v581 = vsel %vm578, %v580, %v576
        %v582 = vmul.f32 1.0, %v581
        %v583 = vrcp.pop %v537
        %v584 = vmul.f32 %v537, %v583
        %v585 = vsub.f32 1.0, %v584
        %v586 = vmul.f32 %v583, %v585
        %v587 = vadd.f32 %v583, %v586
        %vm588 = vweird.f32 %v537
        %vm589 = vweird.f32 %v583
        %vm590 = vmor %vm588, %vm589
        %v591 = vsel %vm590, %v583, %v587
        %v592 = vand.u32 2147483647, %v537
        %vm593 = vcmp.eq.f32.partialorder %v592, 8.507059e+37
        %v594 = vand.u32 %v537, 2147483648
        %v595 = vor.u32 1.1754944e-38, %v594
        %v596 = vsel %vm593, %v595, %v591
        %v597 = vmul.f32 1.0, %v596
        %vm598 = vcmask 7168
        %599 = vst.msk [vmem:[%s288] sm:$0xff] %vm598, %v552
        %600 = vst.msk [vmem:[%s288 + $0x8] sm:$0xff] %vm598, %v567
        %601 = vst.msk [vmem:[%s288 + $0x10] sm:$0xff] %vm598, %v582
        %602 = vst.msk [vmem:[%s288 + $0x18] sm:$0xff] %vm598, %v597
      $region52: #{up_forward.5} parent=39 // pred_fallthru
        _
      %p603 = scmp.lt.s32.totalorder %s20, 1
      %s604 = scalar_select %p603, %s20, 1
      %s605 = smul.addr %s604, 4
      %s606 = smul.addr %s605, 8
      %s607 = scalar_lea.vmem %s5, %s606
      // Predicated region
      $region53: #{up_forward.5} parent=39 // pred_check
        %p608 = pneg %p165
      $region54: #{up_forward.5} parent=39 // pred_check_branch
        %610 = sbr.rel (%p608) target = $region56
      $region55: #{up_forward.5} parent=39 // pred_region
        _
      $region56: #{up_forward.5} parent=39 // pred_fallthru
        _
    $region40: #{up_forward.5} parent=5 // pred_fallthru
      _
    %p611 = scmp.le.s32.totalorder 2, %s11
    // Predicated region
    $region57: #{up_forward.5} parent=5 // pred_check
      %p612 = pneg %p611
    $region58: #{up_forward.5} parent=5 // pred_check_branch
      %614 = sbr.rel (%p612) target = $region60
    $region59: #{up_forward.5} parent=5 // pred_region
      %s615 = ssub.s32 %s11, 2
      // Predicated region
      $region61: #{up_forward.5} parent=59 // pred_check
        %p616 = pneg %p171
      $region62: #{up_forward.5} parent=59 // pred_check_branch
        %618 = sbr.rel (%p616) target = $region64
      $region63: #{up_forward.5} parent=59 // pred_region
        %p619 = scmp.lt.s32.totalorder %s22, 1
        %s620 = scalar_select %p619, %s22, 1
        %s621 = smul.addr %s620, 4
        %s622 = smul.addr %s621, 8
        %s623 = scalar_lea.vmem %s5, %s622
      $region64: #{up_forward.5} parent=59 // pred_fallthru
        _
    $region60: #{up_forward.5} parent=5 // pred_fallthru
      _
  $region6: #{up_forward.5} parent=0 // loop_footer
    %s15 = sadd.s32 1, %s11
  $region7: #{up_forward.5} parent=0 // loop_footer_branch
    %10 = sbr.rel target = $region3
  $region8: #{up_forward.5} parent=0 // loop_exit
    _

// kernel: up_forward.6
$region0: #{up_forward.6}
  #allocation0 [shape = 'u32[]', space=smem, size = 0x4, offset = 0x4, fixed_abs, tag = 'smem constant byte address 0x4 - core index']
  #allocation1 [shape = 'u32[72,128]{1,0:T(1,128)}', space=vmem, size = 0x9000, scoped, tag = 'internal scratch']
  %s0 = inlined_call_operand.vmem [shape: f32[2,32,1], index: 0, kind: input, shape index: {}]
  %s1 = inlined_call_operand.vmem [shape: f32[2,16,256], index: 1, kind: input, shape index: {}]
  %s2 = inlined_call_operand.vmem [shape: bf16[2,16,256], index: 2, kind: input, shape index: {}]
  %s3 = inlined_call_operand.vmem [shape: bf16[2,32,256], index: 3, kind: output, shape index: {0}]
  %s4 = inlined_call_operand.vmem [shape: f32[2,2,256], index: 4, kind: output, shape index: {1}]
  %5 = xla_tuple %s3, %s4
  %s6 = sld [smem:[#allocation0]]
  $region53: #{up_forward.6} parent=0
    _
  %s8 = ssub.s32 1, %s6
  %s9 = scalar_select 0, %s8, %s6
  loop: start=0, step=1, limit=4
  $region2: #{up_forward.6} parent=0 // loop_pre_header
    _
  $region3: #{up_forward.6} parent=0 // loop_header
    %s11 = sphi 0, %s15
    %p12 = scmp.ge.s32.totalorder %s11, 4
    %s18 = sphi 0, %s30
    %s19 = sphi 0, %s26
    %s20 = sphi 0, %s18
    %s21 = sphi 0, %s19
    %s22 = sphi 0, %s20
    %s23 = sphi 0, %s21
    %s33 = sphi 0, %s35
    %s36 = sphi 0, %s33
    %s37 = sphi 0, %s36
    %s53 = sphi 0, %s37
    %s61 = sphi 0, %s63
    %s64 = sphi 0, %s61
    %s65 = sphi 0, %s64
    %s81 = sphi 0, %s65
    %s89 = sphi 0, %s91
    %s92 = sphi 0, %s89
    %s93 = sphi 0, %s92
    %s109 = sphi 0, %s93
    %s117 = sphi 0, %s119
    %s120 = sphi 0, %s117
    %s121 = sphi 0, %s120
    %s137 = sphi 0, %s121
    %s145 = sphi 0, %s147
    %s148 = sphi 0, %s145
    %s149 = sphi 0, %s148
    %s165 = sphi 0, %s149
  $region4: #{up_forward.6} parent=0 // loop_header_branch
    %14 = sbr.rel (%p12) target = $region8
  $region5: #{up_forward.6} parent=0 // loop_body
    %s16 = ssub.s32 %s11, 1
    %s17 = ssub.s32 %s11, 2
    %s24 = sadd.s32 1, %s19
    %p25 = scmp.ge.s32.totalorder %s24, 1
    %s26 = scalar_select %p25, 0, %s24
    %s27 = sadd.s32 1, %s18
    %s28 = scalar_select %p25, %s27, %s18
    %p29 = scmp.ge.s32.totalorder %s28, 2
    %s30 = scalar_select %p29, 0, %s28
    %s31 = ssub.s32 %s18, %s30
    %p32 = scmp.eq.s32.totalorder %s31, 0
    %s34 = sadd.s32 %s33, 1
    %s35 = scalar_select %p32, %s33, %s34
    %p38 = pneg %p32
    %p39 = scmp.eq.s32.totalorder %s11, 1
    %p40 = por %p38, %p39
    %p41 = scmp.ne.s32.totalorder %s33, %s36
    %p42 = scmp.eq.s32.totalorder %s11, 0
    %p43 = por %p41, %p42
    %p44 = scmp.ne.s32.totalorder %s33, %s36
    %p45 = scmp.eq.s32.totalorder %s16, 1
    %p46 = por %p44, %p45
    %p47 = scmp.ne.s32.totalorder %s36, %s37
    %p48 = scmp.eq.s32.totalorder %s16, 0
    %p49 = por %p47, %p48
    %p50 = scmp.ne.s32.totalorder %s36, %s37
    %p51 = scmp.eq.s32.totalorder %s17, 1
    %p52 = por %p50, %p51
    %p54 = scmp.ne.s32.totalorder %s37, %s53
    %p55 = scmp.eq.s32.totalorder %s17, 0
    %p56 = por %p54, %p55
    %s57 = ssub.s32 %s18, %s30
    %s58 = ssub.s32 %s19, %s26
    %s59 = sor.u32 %s57, %s58
    %p60 = scmp.eq.s32.totalorder %s59, 0
    %s62 = sadd.s32 %s61, 1
    %s63 = scalar_select %p60, %s61, %s62
    %p66 = pneg %p60
    %p67 = scmp.eq.s32.totalorder %s11, 1
    %p68 = por %p66, %p67
    %p69 = scmp.ne.s32.totalorder %s61, %s64
    %p70 = scmp.eq.s32.totalorder %s11, 0
    %p71 = por %p69, %p70
    %p72 = scmp.ne.s32.totalorder %s61, %s64
    %p73 = scmp.eq.s32.totalorder %s16, 1
    %p74 = por %p72, %p73
    %p75 = scmp.ne.s32.totalorder %s64, %s65
    %p76 = scmp.eq.s32.totalorder %s16, 0
    %p77 = por %p75, %p76
    %p78 = scmp.ne.s32.totalorder %s64, %s65
    %p79 = scmp.eq.s32.totalorder %s17, 1
    %p80 = por %p78, %p79
    %p82 = scmp.ne.s32.totalorder %s65, %s81
    %p83 = scmp.eq.s32.totalorder %s17, 0
    %p84 = por %p82, %p83
    %s85 = ssub.s32 %s18, %s30
    %s86 = ssub.s32 %s19, %s26
    %s87 = sor.u32 %s85, %s86
    %p88 = scmp.eq.s32.totalorder %s87, 0
    %s90 = sadd.s32 %s89, 1
    %s91 = scalar_select %p88, %s89, %s90
    %p94 = pneg %p88
    %p95 = scmp.eq.s32.totalorder %s11, 1
    %p96 = por %p94, %p95
    %p97 = scmp.ne.s32.totalorder %s89, %s92
    %p98 = scmp.eq.s32.totalorder %s11, 0
    %p99 = por %p97, %p98
    %p100 = scmp.ne.s32.totalorder %s89, %s92
    %p101 = scmp.eq.s32.totalorder %s16, 1
    %p102 = por %p100, %p101
    %p103 = scmp.ne.s32.totalorder %s92, %s93
    %p104 = scmp.eq.s32.totalorder %s16, 0
    %p105 = por %p103, %p104
    %p106 = scmp.ne.s32.totalorder %s92, %s93
    %p107 = scmp.eq.s32.totalorder %s17, 1
    %p108 = por %p106, %p107
    %p110 = scmp.ne.s32.totalorder %s93, %s109
    %p111 = scmp.eq.s32.totalorder %s17, 0
    %p112 = por %p110, %p111
    %s113 = ssub.s32 %s18, %s30
    %s114 = ssub.s32 %s19, %s26
    %s115 = sor.u32 %s113, %s114
    %p116 = scmp.eq.s32.totalorder %s115, 0
    %s118 = sadd.s32 %s117, 1
    %s119 = scalar_select %p116, %s117, %s118
    %p122 = pneg %p116
    %p123 = scmp.eq.s32.totalorder %s11, 1
    %p124 = por %p122, %p123
    %p125 = scmp.ne.s32.totalorder %s117, %s120
    %p126 = scmp.eq.s32.totalorder %s11, 0
    %p127 = por %p125, %p126
    %p128 = scmp.ne.s32.totalorder %s117, %s120
    %p129 = scmp.eq.s32.totalorder %s16, 1
    %p130 = por %p128, %p129
    %p131 = scmp.ne.s32.totalorder %s120, %s121
    %p132 = scmp.eq.s32.totalorder %s16, 0
    %p133 = por %p131, %p132
    %p134 = scmp.ne.s32.totalorder %s120, %s121
    %p135 = scmp.eq.s32.totalorder %s17, 1
    %p136 = por %p134, %p135
    %p138 = scmp.ne.s32.totalorder %s121, %s137
    %p139 = scmp.eq.s32.totalorder %s17, 0
    %p140 = por %p138, %p139
    %s141 = ssub.s32 %s18, %s30
    %s142 = ssub.s32 %s19, %s26
    %s143 = sor.u32 %s141, %s142
    %p144 = scmp.eq.s32.totalorder %s143, 0
    %s146 = sadd.s32 %s145, 1
    %s147 = scalar_select %p144, %s145, %s146
    %p150 = pneg %p144
    %p151 = scmp.eq.s32.totalorder %s11, 1
    %p152 = por %p150, %p151
    %p153 = scmp.ne.s32.totalorder %s145, %s148
    %p154 = scmp.eq.s32.totalorder %s11, 0
    %p155 = por %p153, %p154
    %p156 = scmp.ne.s32.totalorder %s145, %s148
    %p157 = scmp.eq.s32.totalorder %s16, 1
    %p158 = por %p156, %p157
    %p159 = scmp.ne.s32.totalorder %s148, %s149
    %p160 = scmp.eq.s32.totalorder %s16, 0
    %p161 = por %p159, %p160
    %p162 = scmp.ne.s32.totalorder %s148, %s149
    %p163 = scmp.eq.s32.totalorder %s17, 1
    %p164 = por %p162, %p163
    %p166 = scmp.ne.s32.totalorder %s149, %s165
    %p167 = scmp.eq.s32.totalorder %s17, 0
    %p168 = por %p166, %p167
    %p169 = scmp.le.s32.totalorder 1, %s11
    %p170 = scmp.lt.s32.totalorder %s11, 3
    %p171 = pnand %p169, %p170
    %p172 = pneg %p171
    // Predicated region
    $region9: #{up_forward.6} parent=5 // pred_check
      _
    $region10: #{up_forward.6} parent=5 // pred_check_branch
      %174 = sbr.rel (%p171) target = $region12
    $region11: #{up_forward.6} parent=5 // pred_region
      %s175 = ssub.s32 %s11, 1
    $region12: #{up_forward.6} parent=5 // pred_fallthru
      _
    %p176 = scmp.lt.s32.totalorder %s11, 2
    // Predicated region
    $region13: #{up_forward.6} parent=5 // pred_check
      %p177 = pneg %p176
    $region14: #{up_forward.6} parent=5 // pred_check_branch
      %179 = sbr.rel (%p177) target = $region16
    $region15: #{up_forward.6} parent=5 // pred_region
      // Predicated region
      $region17: #{up_forward.6} parent=15 // pred_check
        %p180 = pneg %p43
      $region18: #{up_forward.6} parent=15 // pred_check_branch
        %182 = sbr.rel (%p180) target = $region20
      $region19: #{up_forward.6} parent=15 // pred_region
        %p183 = scmp.lt.s32.totalorder %s18, 1
        %s184 = scalar_select %p183, %s18, 1
        %s185 = smul.addr %s184, 4
        %s186 = smul.addr %s185, 8
        %s187 = scalar_lea.vmem %s0, %s186
      $region20: #{up_forward.6} parent=15 // pred_fallthru
        _
      // Predicated region
      $region21: #{up_forward.6} parent=15 // pred_check
        %p188 = pneg %p71
      $region22: #{up_forward.6} parent=15 // pred_check_branch
        %190 = sbr.rel (%p188) target = $region24
      $region23: #{up_forward.6} parent=15 // pred_region
        %s191 = smul.u32 2, %s19
        %p192 = scmp.lt.s32.totalorder %s18, 1
        %s193 = scalar_select %p192, %s18, 1
        %p194 = scmp.lt.s32.totalorder %s191, 1
        %s195 = scalar_select %p194, %s191, 1
        %s196 = smul.addr %s193, 4
        %s197 = sadd.s32 %s195, %s196
        %s198 = smul.addr %s197, 8
        %s199 = scalar_lea.vmem %s1, %s198
        %s200 = smul.u32 2, %s19
      $region24: #{up_forward.6} parent=15 // pred_fallthru
        _
      // Predicated region
      $region25: #{up_forward.6} parent=15 // pred_check
        %p201 = pneg %p99
      $region26: #{up_forward.6} parent=15 // pred_check_branch
        %203 = sbr.rel (%p201) target = $region28
      $region27: #{up_forward.6} parent=15 // pred_region
        %s204 = smul.u32 2, %s19
        %p205 = scmp.lt.s32.totalorder %s18, 1
        %s206 = scalar_select %p205, %s18, 1
        %p207 = scmp.lt.s32.totalorder %s204, 1
        %s208 = scalar_select %p207, %s204, 1
        %s209 = smul.addr %s206, 4
        %s210 = sadd.s32 %s208, %s209
        %s211 = smul.addr %s210, 4
        %s212 = scalar_lea.vmem %s2, %s211
        %s213 = smul.u32 2, %s19
      $region28: #{up_forward.6} parent=15 // pred_fallthru
        _
    $region16: #{up_forward.6} parent=5 // pred_fallthru
      _
    %p214 = scmp.le.s32.totalorder 1, %s11
    %p215 = scmp.lt.s32.totalorder %s11, 3
    %p216 = pnand %p214, %p215
    %p217 = pneg %p216
    // Predicated region
    $region29: #{up_forward.6} parent=5 // pred_check
      _
    $region30: #{up_forward.6} parent=5 // pred_check_branch
      %219 = sbr.rel (%p216) target = $region32
    $region31: #{up_forward.6} parent=5 // pred_region
      %s220 = ssub.s32 %s11, 1
      %p221 = scmp.lt.s32.totalorder %s20, 1
      %s222 = scalar_select %p221, %s20, 1
      %s223 = smul.addr %s222, 4
      %s224 = smul.addr %s223, 8
      %s225 = scalar_lea.vmem %s0, %s224
      %p226 = pneg %p49
      %p227 = pneg %p46
      %s228 = smul.u32 2, %s21
      %p229 = scmp.lt.s32.totalorder %s20, 1
      %s230 = scalar_select %p229, %s20, 1
      %p231 = scmp.lt.s32.totalorder %s228, 1
      %s232 = scalar_select %p231, %s228, 1
      %s233 = smul.addr %s230, 4
      %s234 = sadd.s32 %s232, %s233
      %s235 = smul.addr %s234, 8
      %s236 = scalar_lea.vmem %s1, %s235
      %p237 = pneg %p77
      %p238 = pneg %p74
      %s239 = smul.u32 2, %s21
      %p240 = scmp.lt.s32.totalorder %s20, 1
      %s241 = scalar_select %p240, %s20, 1
      %p242 = scmp.lt.s32.totalorder %s239, 1
      %s243 = scalar_select %p242, %s239, 1
      %s244 = smul.addr %s241, 4
      %s245 = sadd.s32 %s243, %s244
      %s246 = smul.addr %s245, 4
      %s247 = scalar_lea.vmem %s2, %s246
      %p248 = pneg %p105
      %p249 = pneg %p102
      %p250 = pneg %p133
      %p251 = pneg %p130
      %s252 = smul.u32 2, %s21
      %p253 = scmp.lt.s32.totalorder %s20, 1
      %s254 = scalar_select %p253, %s20, 1
      %p255 = scmp.lt.s32.totalorder %s252, 1
      %s256 = scalar_select %p255, %s252, 1
      %s257 = smul.addr %s254, 8
      %s258 = sadd.s32 %s256, %s257
      %s259 = smul.addr %s258, 4
      %s260 = scalar_lea.vmem %s3, %s259
      %p261 = pneg %p161
      %p262 = pneg %p158
      %s263 = smul.u32 2, %s21
      %p264 = scmp.lt.s32.totalorder %s20, 1
      %s265 = scalar_select %p264, %s20, 1
      %p266 = scmp.lt.s32.totalorder %s263, 1
      %s267 = scalar_select %p266, %s263, 1
      %s268 = smul.addr %s265, 2
      %s269 = sadd.s32 %s267, %s268
      %s270 = smul.addr %s269, 2
      %s271 = scalar_lea.vmem %s4, %s270
      %p272 = scmp.lt.s32.totalorder %s20, 1
      %s273 = scalar_select %p272, %s20, 1
      %s274 = smul.addr %s273, 4
      %s275 = smul.addr %s274, 8
      %s276 = scalar_lea.vmem %s0, %s275
      %s277 = smul.u32 2, %s21
      %p278 = scmp.lt.s32.totalorder %s20, 1
      %s279 = scalar_select %p278, %s20, 1
      %p280 = scmp.lt.s32.totalorder %s277, 1
      %s281 = scalar_select %p280, %s277, 1
      %s282 = smul.addr %s279, 4
      %s283 = sadd.s32 %s281, %s282
      %s284 = smul.addr %s283, 8
      %s285 = scalar_lea.vmem %s1, %s284
      %s286 = smul.u32 2, %s21
      %s287 = smul.u32 2, %s21
      %p288 = scmp.lt.s32.totalorder %s20, 1
      %s289 = scalar_select %p288, %s20, 1
      %p290 = scmp.lt.s32.totalorder %s287, 1
      %s291 = scalar_select %p290, %s287, 1
      %s292 = smul.addr %s289, 4
      %s293 = sadd.s32 %s291, %s292
      %s294 = smul.addr %s293, 4
      %s295 = scalar_lea.vmem %s2, %s294
      %s296 = smul.u32 2, %s21
      %s297 = smul.u32 2, %s21
      %p298 = scmp.lt.s32.totalorder %s20, 1
      %s299 = scalar_select %p298, %s20, 1
      %p300 = scmp.lt.s32.totalorder %s297, 1
      %s301 = scalar_select %p300, %s297, 1
      %s302 = smul.addr %s299, 8
      %s303 = sadd.s32 %s301, %s302
      %s304 = smul.addr %s303, 4
      %s305 = scalar_lea.vmem %s3, %s304
      %s306 = smul.u32 2, %s21
      %s307 = smul.u32 2, %s21
      %p308 = scmp.lt.s32.totalorder %s20, 1
      %s309 = scalar_select %p308, %s20, 1
      %p310 = scmp.lt.s32.totalorder %s307, 1
      %s311 = scalar_select %p310, %s307, 1
      %s312 = smul.addr %s309, 2
      %s313 = sadd.s32 %s311, %s312
      %s314 = smul.addr %s313, 2
      %s315 = scalar_lea.vmem %s4, %s314
      %s316 = smul.u32 2, %s21
      %v317 = vld [vmem:[%s276] sm:$0xff]
      %v318 = vld [vmem:[%s276 + $0x8] sm:$0xff]
      %v319 = vld [vmem:[%s276 + $0x10] sm:$0xff]
      %v320 = vld [vmem:[%s276 + $0x18] sm:$0xff]
      %v321 = vld [vmem:[%s285] sm:$0xff]
      %v322 = vld [vmem:[%s285 + $0x8] sm:$0xff]
      %v323 = vld [vmem:[%s285 + $0x10] sm:$0xff]
      %v324 = vld [vmem:[%s285 + $0x18] sm:$0xff]
      %v325 = vld [vmem:[%s295] sm:$0xff]
      %v326 = vld [vmem:[%s295 + $0x8] sm:$0xff]
      %v327 = vunpack.c.l.bf16 %v325
      %v328 = vunpack.c.h.bf16 %v325
      %v329 = vunpack.c.l.bf16 %v326
      %v330 = vunpack.c.h.bf16 %v326
      %332 = vset.pattern.permute.xlu0 0
      %333 = vperm.xlu0 %332, %v317
      %v334 = vpop.permute.xlu0 %333
      %337 = vset.pattern.permute.xlu0 0
      %338 = vperm.xlu0 %337, %v318
      %v339 = vpop.permute.xlu0 %338
      %v341 = vmul.f32 %v321, %v334
      %v342 = vmul.f32 %v322, %v334
      %v343 = vmul.f32 %v323, %v339
      %v344 = vmul.f32 %v324, %v339
      %346 = vset.pattern.permute.xlu0 0
      %347 = vperm.xlu0 %346, %v319
      %v348 = vpop.permute.xlu0 %347
      %351 = vset.pattern.permute.xlu0 0
      %352 = vperm.xlu0 %351, %v320
      %v353 = vpop.permute.xlu0 %352
      %v355 = vmul.f32 %v327, %v348
      %v356 = vmul.f32 %v328, %v348
      %v357 = vmul.f32 %v329, %v353
      %v358 = vmul.f32 %v330, %v353
      %v359 = vpack.c.bf16 %v342, %v341
      %v360 = vpack.c.bf16 %v344, %v343
      %361 = vst [vmem:[%s305] sm:$0xff] %v359
      %362 = vst [vmem:[%s305 + $0x8] sm:$0xff] %v360
      %v363 = vpack.c.bf16 %v356, %v355
      %v364 = vpack.c.bf16 %v358, %v357
      %365 = vst [vmem:[%s305 + $0x10] sm:$0xff] %v363
      %366 = vst [vmem:[%s305 + $0x18] sm:$0xff] %v364
      %v367 = vadd.f32 %v341, %v343
      %v368 = vrot.slane %v367, 4
      %v369 = vadd.f32 %v367, %v368
      %v370 = vrot.slane %v369, 2
      %v371 = vadd.f32 %v369, %v370
      %v372 = vrot.slane %v371, 1
      %v373 = vadd.f32 %v371, %v372
      %v374 = vadd.f32 %v342, %v344
      %v375 = vrot.slane %v374, 4
      %v376 = vadd.f32 %v374, %v375
      %v377 = vrot.slane %v376, 2
      %v378 = vadd.f32 %v376, %v377
      %v379 = vrot.slane %v378, 1
      %v380 = vadd.f32 %v378, %v379
      %v381 = vadd.f32 %v355, %v357
      %v382 = vrot.slane %v381, 4
      %v383 = vadd.f32 %v381, %v382
      %v384 = vrot.slane %v383, 2
      %v385 = vadd.f32 %v383, %v384
      %v386 = vrot.slane %v385, 1
      %v387 = vadd.f32 %v385, %v386
      %v388 = vadd.f32 %v356, %v358
      %v389 = vrot.slane %v388, 4
      %v390 = vadd.f32 %v388, %v389
      %v391 = vrot.slane %v390, 2
      %v392 = vadd.f32 %v390, %v391
      %v393 = vrot.slane %v392, 1
      %v394 = vadd.f32 %v392, %v393
      %v395 = vadd.f32 %v373, %v387
      %v396 = vadd.f32 %v380, %v394
      %v397 = vmax.f32 %v341, %v343
      %v398 = vrot.slane %v397, 4
      %v399 = vmax.f32 %v397, %v398
      %v400 = vrot.slane %v399, 2
      %v401 = vmax.f32 %v399, %v400
      %v402 = vrot.slane %v401, 1
      %v403 = vmax.f32 %v401, %v402
      %v404 = vmax.f32 %v342, %v344
      %v405 = vrot.slane %v404, 4
      %v406 = vmax.f32 %v404, %v405
      %v407 = vrot.slane %v406, 2
      %v408 = vmax.f32 %v406, %v407
      %v409 = vrot.slane %v408, 1
      %v410 = vmax.f32 %v408, %v409
      %v411 = vmax.f32 %v355, %v357
      %v412 = vrot.slane %v411, 4
      %v413 = vmax.f32 %v411, %v412
      %v414 = vrot.slane %v413, 2
      %v415 = vmax.f32 %v413, %v414
      %v416 = vrot.slane %v415, 1
      %v417 = vmax.f32 %v415, %v416
      %v418 = vmax.f32 %v356, %v358
      %v419 = vrot.slane %v418, 4
      %v420 = vmax.f32 %v418, %v419
      %v421 = vrot.slane %v420, 2
      %v422 = vmax.f32 %v420, %v421
      %v423 = vrot.slane %v422, 1
      %v424 = vmax.f32 %v422, %v423
      %v425 = vmax.f32 %v403, %v417
      %v426 = vmax.f32 %v410, %v424
      %v427 = vmul.f32 %v395, 0.03125
      %v428 = vmul.f32 %v396, 0.03125
      %v431 = vrot.slane %v428, 7
      %vm432 = vcmask 1040384
      %v433 = vsel %vm432, %v427, %v431
      %v435 = vlaneseq
      %vm436 = vcmp.ge.s32.totalorder %v435, 0
      %vm437 = vcmp.lt.s32.totalorder %v435, 256
      %vm438 = vmand %vm436, %vm437
      %439 = vst.msk [vmem:[%s315] ss:$2 sm:$0x3] %vm438, %v433
      %v442 = vrot.slane %v426, 7
      %v443 = vsel %vm432, %v425, %v442
      %s445 = scalar_lea.vmem %s315, 1
      %446 = vst.msk [vmem:[%s445] ss:$2 sm:$0x3] %vm438, %v443
      %s447 = smul.u32 2, %s21
      %p448 = scmp.lt.s32.totalorder %s20, 1
      %s449 = scalar_select %p448, %s20, 1
      %p450 = scmp.lt.s32.totalorder %s447, 1
      %s451 = scalar_select %p450, %s447, 1
      %s452 = smul.addr %s449, 8
      %s453 = sadd.s32 %s451, %s452
      %s454 = smul.addr %s453, 4
      %s455 = scalar_lea.vmem %s3, %s454
      %s456 = smul.u32 2, %s21
      %p457 = scmp.lt.s32.totalorder %s20, 1
      %s458 = scalar_select %p457, %s20, 1
      %p459 = scmp.lt.s32.totalorder %s456, 1
      %s460 = scalar_select %p459, %s456, 1
      %s461 = smul.addr %s458, 2
      %s462 = sadd.s32 %s460, %s461
      %s463 = smul.addr %s462, 2
      %s464 = scalar_lea.vmem %s4, %s463
      // Predicated region
      $region33: #{up_forward.6} parent=31 // pred_check
        %p465 = pneg %p130
      $region34: #{up_forward.6} parent=31 // pred_check_branch
        %467 = sbr.rel (%p465) target = $region36
      $region35: #{up_forward.6} parent=31 // pred_region
        %s468 = smul.u32 2, %s21
      $region36: #{up_forward.6} parent=31 // pred_fallthru
        _
      // Predicated region
      $region37: #{up_forward.6} parent=31 // pred_check
        %p469 = pneg %p158
      $region38: #{up_forward.6} parent=31 // pred_check_branch
        %471 = sbr.rel (%p469) target = $region40
      $region39: #{up_forward.6} parent=31 // pred_region
        %s472 = smul.u32 2, %s21
      $region40: #{up_forward.6} parent=31 // pred_fallthru
        _
    $region32: #{up_forward.6} parent=5 // pred_fallthru
      _
    %p473 = scmp.le.s32.totalorder 2, %s11
    // Predicated region
    $region41: #{up_forward.6} parent=5 // pred_check
      %p474 = pneg %p473
    $region42: #{up_forward.6} parent=5 // pred_check_branch
      %476 = sbr.rel (%p474) target = $region44
    $region43: #{up_forward.6} parent=5 // pred_region
      %s477 = ssub.s32 %s11, 2
      // Predicated region
      $region45: #{up_forward.6} parent=43 // pred_check
        %p478 = pneg %p136
      $region46: #{up_forward.6} parent=43 // pred_check_branch
        %480 = sbr.rel (%p478) target = $region48
      $region47: #{up_forward.6} parent=43 // pred_region
        %s481 = smul.u32 2, %s23
        %p482 = scmp.lt.s32.totalorder %s22, 1
        %s483 = scalar_select %p482, %s22, 1
        %p484 = scmp.lt.s32.totalorder %s481, 1
        %s485 = scalar_select %p484, %s481, 1
        %s486 = smul.addr %s483, 8
        %s487 = sadd.s32 %s485, %s486
        %s488 = smul.addr %s487, 4
        %s489 = scalar_lea.vmem %s3, %s488
      $region48: #{up_forward.6} parent=43 // pred_fallthru
        _
      // Predicated region
      $region49: #{up_forward.6} parent=43 // pred_check
        %p490 = pneg %p164
      $region50: #{up_forward.6} parent=43 // pred_check_branch
        %492 = sbr.rel (%p490) target = $region52
      $region51: #{up_forward.6} parent=43 // pred_region
        %s493 = smul.u32 2, %s23
        %p494 = scmp.lt.s32.totalorder %s22, 1
        %s495 = scalar_select %p494, %s22, 1
        %p496 = scmp.lt.s32.totalorder %s493, 1
        %s497 = scalar_select %p496, %s493, 1
        %s498 = smul.addr %s495, 2
        %s499 = sadd.s32 %s497, %s498
        %s500 = smul.addr %s499, 2
        %s501 = scalar_lea.vmem %s4, %s500
      $region52: #{up_forward.6} parent=43 // pred_fallthru
        _
    $region44: #{up_forward.6} parent=5 // pred_fallthru
      _
  $region6: #{up_forward.6} parent=0 // loop_footer
    %s15 = sadd.s32 1, %s11
  $region7: #{up_forward.6} parent=0 // loop_footer_branch
    %10 = sbr.rel target = $region3
  $region8: #{up_forward.6} parent=0 // loop_exit
    _

// kernel: up_forward.7
$region0: #{up_forward.7}
  #allocation0 [shape = 'u32[]', space=smem, size = 0x4, offset = 0x4, fixed_abs, tag = 'smem constant byte address 0x4 - core index']
  #allocation1 [shape = 'u32[72,128]{1,0:T(1,128)}', space=vmem, size = 0x9000, scoped, tag = 'internal scratch']
  #allocation2 [shape = 'f32[1,256]{1,0:T(1,128)}', space=vmem, size = 0x400, scoped, tag = 'scratch operand']
  #allocation3 [shape = 'f32[2,435]{1,0:T(2,128)}', space=vmem, size = 0x1000, scoped, tag = 'scratch operand']
  #allocation4 [shape = 'bf16[32,401]{1,0:T(8,128)(2,1)}', space=vmem, size = 0x8000, scoped, tag = 'scratch operand']
  #allocation5 [shape = 'f32[1]{0:T(128)S(6)}', space=smem, size = 0x200, scoped, tag = 'scoped memory for up_forward.7']
  %s0 = inlined_call_operand.vmem [shape: s32[1,256], index: 0, kind: input, shape index: {}]
  %s1 = inlined_call_operand.vmem [shape: f32[2,2,256], index: 1, kind: input, shape index: {}]
  %s2 = inlined_call_operand.vmem [shape: bf16[2,32,256], index: 2, kind: input, shape index: {}]
  %s3 = inlined_call_operand.vmem [shape: bf16[32,144], index: 3, kind: input, shape index: {}]
  %s4 = inlined_call_operand.vmem [shape: f32[16,1], index: 4, kind: input, shape index: {}]
  %s5 = inlined_call_operand.vmem [shape: f32[98], index: 5, kind: input, shape index: {}]
  %s6 = inlined_call_operand.<no memory space> [shape: f32[1], index: 6, kind: input, shape index: {}]
  %s7 = inlined_call_operand.vmem [shape: f32[2,16,256], index: 7, kind: output, shape index: {}]
  %s8 = sld [smem:[#allocation0]]
  $region73: #{up_forward.7} parent=0
    _
  %s10 = ssub.s32 1, %s8
  %s11 = scalar_select 0, %s10, %s8
  %12 = sst [smem:[#allocation5]] %s6
  $region1: #{up_forward.7} parent=0
    #allocation6 [shape = 'u8[512]{0}', space=smem, size = 0x200, scoped, tag = 'input window, operand 5, single buffered']
    #allocation7 [shape = 's32[2]{0}', space=sflag, size = 0x8, scoped, tag = 'scoped memory for up_forward.7']
    %13 = vsyncpa [#allocation7], 0
    loop: start=0, step=1, limit=4
    $region2: #{up_forward.7} parent=1 // loop_pre_header
      _
    $region3: #{up_forward.7} parent=1 // loop_header
      %s15 = sphi 0, %s19
      %p16 = scmp.ge.s32.totalorder %s15, 4
      %s22 = sphi 0, %s34
      %s23 = sphi 0, %s30
      %s24 = sphi 0, %s22
      %s25 = sphi 0, %s23
      %s26 = sphi 0, %s24
      %s27 = sphi 0, %s25
      %s35 = sphi 0, %s35
      %s37 = sphi 0, %s35
      %s38 = sphi 0, %s37
      %s52 = sphi 0, %s38
      %s58 = sphi 0, %s60
      %s61 = sphi 0, %s58
      %s62 = sphi 0, %s61
      %s78 = sphi 0, %s62
      %s86 = sphi 0, %s88
      %s89 = sphi 0, %s86
      %s90 = sphi 0, %s89
      %s106 = sphi 0, %s90
      %s112 = sphi 0, %s114
      %s115 = sphi 0, %s112
      %s116 = sphi 0, %s115
      %s132 = sphi 0, %s116
      %s136 = sphi 0, %s136
      %s138 = sphi 0, %s136
      %s139 = sphi 0, %s138
      %s153 = sphi 0, %s139
      %s157 = sphi 0, %s157
      %s159 = sphi 0, %s157
      %s160 = sphi 0, %s159
      %s174 = sphi 0, %s160
      %s178 = sphi 0, %s178
      %s180 = sphi 0, %s178
      %s181 = sphi 0, %s180
      %s195 = sphi 0, %s181
      %s201 = sphi 0, %s203
      %s204 = sphi 0, %s201
      %s205 = sphi 0, %s204
      %s221 = sphi 0, %s205
    $region4: #{up_forward.7} parent=1 // loop_header_branch
      %18 = sbr.rel (%p16) target = $region8
    $region5: #{up_forward.7} parent=1 // loop_body
      %s20 = ssub.s32 %s15, 1
      %s21 = ssub.s32 %s15, 2
      %s28 = sadd.s32 1, %s23
      %p29 = scmp.ge.s32.totalorder %s28, 1
      %s30 = scalar_select %p29, 0, %s28
      %s31 = sadd.s32 1, %s22
      %s32 = scalar_select %p29, %s31, %s22
      %p33 = scmp.ge.s32.totalorder %s32, 2
      %s34 = scalar_select %p33, 0, %s32
      %s36 = sadd.s32 %s35, 1
      %p39 = scmp.eq.s32.totalorder %s15, 1
      %p40 = scmp.ne.s32.totalorder %s35, %s37
      %p41 = scmp.eq.s32.totalorder %s15, 0
      %p42 = por %p40, %p41
      %p43 = scmp.ne.s32.totalorder %s35, %s37
      %p44 = scmp.eq.s32.totalorder %s20, 1
      %p45 = por %p43, %p44
      %p46 = scmp.ne.s32.totalorder %s37, %s38
      %p47 = scmp.eq.s32.totalorder %s20, 0
      %p48 = por %p46, %p47
      %p49 = scmp.ne.s32.totalorder %s37, %s38
      %p50 = scmp.eq.s32.totalorder %s21, 1
      %p51 = por %p49, %p50
      %p53 = scmp.ne.s32.totalorder %s38, %s52
      %p54 = scmp.eq.s32.totalorder %s21, 0
      %p55 = por %p53, %p54
      %s56 = ssub.s32 %s22, %s34
      %p57 = scmp.eq.s32.totalorder %s56, 0
      %s59 = sadd.s32 %s58, 1
      %s60 = scalar_select %p57, %s58, %s59
      %p63 = pneg %p57
      %p64 = scmp.eq.s32.totalorder %s15, 1
      %p65 = por %p63, %p64
      %p66 = scmp.ne.s32.totalorder %s58, %s61
      %p67 = scmp.eq.s32.totalorder %s15, 0
      %p68 = por %p66, %p67
      %p69 = scmp.ne.s32.totalorder %s58, %s61
      %p70 = scmp.eq.s32.totalorder %s20, 1
      %p71 = por %p69, %p70
      %p72 = scmp.ne.s32.totalorder %s61, %s62
      %p73 = scmp.eq.s32.totalorder %s20, 0
      %p74 = por %p72, %p73
      %p75 = scmp.ne.s32.totalorder %s61, %s62
      %p76 = scmp.eq.s32.totalorder %s21, 1
      %p77 = por %p75, %p76
      %p79 = scmp.ne.s32.totalorder %s62, %s78
      %p80 = scmp.eq.s32.totalorder %s21, 0
      %p81 = por %p79, %p80
      %s82 = ssub.s32 %s22, %s34
      %s83 = ssub.s32 %s23, %s30
      %s84 = sor.u32 %s82, %s83
      %p85 = scmp.eq.s32.totalorder %s84, 0
      %s87 = sadd.s32 %s86, 1
      %s88 = scalar_select %p85, %s86, %s87
      %p91 = pneg %p85
      %p92 = scmp.eq.s32.totalorder %s15, 1
      %p93 = por %p91, %p92
      %p94 = scmp.ne.s32.totalorder %s86, %s89
      %p95 = scmp.eq.s32.totalorder %s15, 0
      %p96 = por %p94, %p95
      %p97 = scmp.ne.s32.totalorder %s86, %s89
      %p98 = scmp.eq.s32.totalorder %s20, 1
      %p99 = por %p97, %p98
      %p100 = scmp.ne.s32.totalorder %s89, %s90
      %p101 = scmp.eq.s32.totalorder %s20, 0
      %p102 = por %p100, %p101
      %p103 = scmp.ne.s32.totalorder %s89, %s90
      %p104 = scmp.eq.s32.totalorder %s21, 1
      %p105 = por %p103, %p104
      %p107 = scmp.ne.s32.totalorder %s90, %s106
      %p108 = scmp.eq.s32.totalorder %s21, 0
      %p109 = por %p107, %p108
      %s110 = ssub.s32 %s23, %s30
      %p111 = scmp.eq.s32.totalorder %s110, 0
      %s113 = sadd.s32 %s112, 1
      %s114 = scalar_select %p111, %s112, %s113
      %p117 = pneg %p111
      %p118 = scmp.eq.s32.totalorder %s15, 1
      %p119 = por %p117, %p118
      %p120 = scmp.ne.s32.totalorder %s112, %s115
      %p121 = scmp.eq.s32.totalorder %s15, 0
      %p122 = por %p120, %p121
      %p123 = scmp.ne.s32.totalorder %s112, %s115
      %p124 = scmp.eq.s32.totalorder %s20, 1
      %p125 = por %p123, %p124
      %p126 = scmp.ne.s32.totalorder %s115, %s116
      %p127 = scmp.eq.s32.totalorder %s20, 0
      %p128 = por %p126, %p127
      %p129 = scmp.ne.s32.totalorder %s115, %s116
      %p130 = scmp.eq.s32.totalorder %s21, 1
      %p131 = por %p129, %p130
      %p133 = scmp.ne.s32.totalorder %s116, %s132
      %p134 = scmp.eq.s32.totalorder %s21, 0
      %p135 = por %p133, %p134
      %s137 = sadd.s32 %s136, 1
      %p140 = scmp.eq.s32.totalorder %s15, 1
      %p141 = scmp.ne.s32.totalorder %s136, %s138
      %p142 = scmp.eq.s32.totalorder %s15, 0
      %p143 = por %p141, %p142
      %p144 = scmp.ne.s32.totalorder %s136, %s138
      %p145 = scmp.eq.s32.totalorder %s20, 1
      %p146 = por %p144, %p145
      %p147 = scmp.ne.s32.totalorder %s138, %s139
      %p148 = scmp.eq.s32.totalorder %s20, 0
      %p149 = por %p147, %p148
      %p150 = scmp.ne.s32.totalorder %s138, %s139
      %p151 = scmp.eq.s32.totalorder %s21, 1
      %p152 = por %p150, %p151
      %p154 = scmp.ne.s32.totalorder %s139, %s153
      %p155 = scmp.eq.s32.totalorder %s21, 0
      %p156 = por %p154, %p155
      %s158 = sadd.s32 %s157, 1
      %p161 = scmp.eq.s32.totalorder %s15, 1
      %p162 = scmp.ne.s32.totalorder %s157, %s159
      %p163 = scmp.eq.s32.totalorder %s15, 0
      %p164 = por %p162, %p163
      %p165 = scmp.ne.s32.totalorder %s157, %s159
      %p166 = scmp.eq.s32.totalorder %s20, 1
      %p167 = por %p165, %p166
      %p168 = scmp.ne.s32.totalorder %s159, %s160
      %p169 = scmp.eq.s32.totalorder %s20, 0
      %p170 = por %p168, %p169
      %p171 = scmp.ne.s32.totalorder %s159, %s160
      %p172 = scmp.eq.s32.totalorder %s21, 1
      %p173 = por %p171, %p172
      %p175 = scmp.ne.s32.totalorder %s160, %s174
      %p176 = scmp.eq.s32.totalorder %s21, 0
      %p177 = por %p175, %p176
      %s179 = sadd.s32 %s178, 1
      %p182 = scmp.eq.s32.totalorder %s15, 1
      %p183 = scmp.ne.s32.totalorder %s178, %s180
      %p184 = scmp.eq.s32.totalorder %s15, 0
      %p185 = por %p183, %p184
      %p186 = scmp.ne.s32.totalorder %s178, %s180
      %p187 = scmp.eq.s32.totalorder %s20, 1
      %p188 = por %p186, %p187
      %p189 = scmp.ne.s32.totalorder %s180, %s181
      %p190 = scmp.eq.s32.totalorder %s20, 0
      %p191 = por %p189, %p190
      %p192 = scmp.ne.s32.totalorder %s180, %s181
      %p193 = scmp.eq.s32.totalorder %s21, 1
      %p194 = por %p192, %p193
      %p196 = scmp.ne.s32.totalorder %s181, %s195
      %p197 = scmp.eq.s32.totalorder %s21, 0
      %p198 = por %p196, %p197
      %s199 = ssub.s32 %s22, %s34
      %p200 = scmp.eq.s32.totalorder %s199, 0
      %s202 = sadd.s32 %s201, 1
      %s203 = scalar_select %p200, %s201, %s202
      %p206 = pneg %p200
      %p207 = scmp.eq.s32.totalorder %s15, 1
      %p208 = por %p206, %p207
      %p209 = scmp.ne.s32.totalorder %s201, %s204
      %p210 = scmp.eq.s32.totalorder %s15, 0
      %p211 = por %p209, %p210
      %p212 = scmp.ne.s32.totalorder %s201, %s204
      %p213 = scmp.eq.s32.totalorder %s20, 1
      %p214 = por %p212, %p213
      %p215 = scmp.ne.s32.totalorder %s204, %s205
      %p216 = scmp.eq.s32.totalorder %s20, 0
      %p217 = por %p215, %p216
      %p218 = scmp.ne.s32.totalorder %s204, %s205
      %p219 = scmp.eq.s32.totalorder %s21, 1
      %p220 = por %p218, %p219
      %p222 = scmp.ne.s32.totalorder %s205, %s221
      %p223 = scmp.eq.s32.totalorder %s21, 0
      %p224 = por %p222, %p223
      %p225 = scmp.le.s32.totalorder 1, %s15
      %p226 = scmp.lt.s32.totalorder %s15, 3
      %p227 = pnand %p225, %p226
      %p228 = pneg %p227
      // Predicated region
      $region9: #{up_forward.7} parent=5 // pred_check
        _
      $region10: #{up_forward.7} parent=5 // pred_check_branch
        %230 = sbr.rel (%p227) target = $region12
      $region11: #{up_forward.7} parent=5 // pred_region
        %s231 = ssub.s32 %s15, 1
        // Predicated region
        $region13: #{up_forward.7} parent=11 // pred_check
          %p232 = pneg %p48
        $region14: #{up_forward.7} parent=11 // pred_check_branch
          %234 = sbr.rel (%p232) target = $region16
        $region15: #{up_forward.7} parent=11 // pred_region
          _
        $region16: #{up_forward.7} parent=11 // pred_fallthru
          _
        // Predicated region
        $region17: #{up_forward.7} parent=11 // pred_check
          %p235 = pneg %p128
        $region18: #{up_forward.7} parent=11 // pred_check_branch
          %237 = sbr.rel (%p235) target = $region20
        $region19: #{up_forward.7} parent=11 // pred_region
          %s238 = smul.u32 4, %s25
          %p239 = scmp.lt.s32.totalorder %s238, 3
          %s240 = scalar_select %p239, %s238, 3
          %s241 = smul.addr %s240, 2
          %s242 = smul.addr %s241, 4
          %s243 = scalar_lea.vmem %s3, %s242
          %s244 = smul.u32 4, %s25
        $region20: #{up_forward.7} parent=11 // pred_fallthru
          _
        // Predicated region
        $region21: #{up_forward.7} parent=11 // pred_check
          %p245 = pneg %p149
        $region22: #{up_forward.7} parent=11 // pred_check_branch
          %247 = sbr.rel (%p245) target = $region24
        $region23: #{up_forward.7} parent=11 // pred_region
          _
        $region24: #{up_forward.7} parent=11 // pred_fallthru
          _
        // Predicated region
        $region25: #{up_forward.7} parent=11 // pred_check
          %p248 = pneg %p170
        $region26: #{up_forward.7} parent=11 // pred_check_branch
          %250 = sbr.rel (%p248) target = $region28
        $region27: #{up_forward.7} parent=11 // pred_region
          %252 = vsyncadd [#allocation7], 0
          %s254 = sshll.u32 %s5, 4
          %s255 = int_to_ptr.vmem [resolvable:$true] %s254
          %257 = dma.vmem_to_smem %s255, 16, [#allocation6], [#allocation7]
        $region28: #{up_forward.7} parent=11 // pred_fallthru
          _
        // Predicated region
        $region29: #{up_forward.7} parent=11 // pred_check
          %p258 = pneg %p191
        $region30: #{up_forward.7} parent=11 // pred_check_branch
          %260 = sbr.rel (%p258) target = $region32
        $region31: #{up_forward.7} parent=11 // pred_region
          _
        $region32: #{up_forward.7} parent=11 // pred_fallthru
          _
      $region12: #{up_forward.7} parent=5 // pred_fallthru
        _
      %p261 = scmp.lt.s32.totalorder %s15, 2
      // Predicated region
      $region33: #{up_forward.7} parent=5 // pred_check
        %p262 = pneg %p261
      $region34: #{up_forward.7} parent=5 // pred_check_branch
        %264 = sbr.rel (%p262) target = $region36
      $region35: #{up_forward.7} parent=5 // pred_region
        // Predicated region
        $region37: #{up_forward.7} parent=35 // pred_check
          %p265 = pneg %p68
        $region38: #{up_forward.7} parent=35 // pred_check_branch
          %267 = sbr.rel (%p265) target = $region40
        $region39: #{up_forward.7} parent=35 // pred_region
          %p268 = scmp.lt.s32.totalorder %s22, 1
          %s269 = scalar_select %p268, %s22, 1
          %s270 = smul.addr %s269, 2
          %s271 = smul.addr %s270, 2
          %s272 = scalar_lea.vmem %s1, %s271
        $region40: #{up_forward.7} parent=35 // pred_fallthru
          _
        // Predicated region
        $region41: #{up_forward.7} parent=35 // pred_check
          %p273 = pneg %p96
        $region42: #{up_forward.7} parent=35 // pred_check_branch
          %275 = sbr.rel (%p273) target = $region44
        $region43: #{up_forward.7} parent=35 // pred_region
          %s276 = smul.u32 4, %s23
          %p277 = scmp.lt.s32.totalorder %s22, 1
          %s278 = scalar_select %p277, %s22, 1
          %p279 = scmp.lt.s32.totalorder %s276, 3
          %s280 = scalar_select %p279, %s276, 3
          %s281 = smul.addr %s280, 2
          %s282 = smul.addr %s278, 8
          %s283 = sadd.s32 %s281, %s282
          %s284 = smul.addr %s283, 4
          %s285 = scalar_lea.vmem %s2, %s284
          %s286 = smul.u32 4, %s23
        $region44: #{up_forward.7} parent=35 // pred_fallthru
          _
      $region36: #{up_forward.7} parent=5 // pred_fallthru
        _
      %p287 = scmp.le.s32.totalorder 1, %s15
      %p288 = scmp.lt.s32.totalorder %s15, 3
      %p289 = pnand %p287, %p288
      %p290 = pneg %p289
      // Predicated region
      $region45: #{up_forward.7} parent=5 // pred_check
        _
      $region46: #{up_forward.7} parent=5 // pred_check_branch
        %292 = sbr.rel (%p289) target = $region48
      $region47: #{up_forward.7} parent=5 // pred_region
        %s293 = ssub.s32 %s15, 1
        // Predicated region
        $region49: #{up_forward.7} parent=47 // pred_check
          %p294 = pneg %p170
        $region50: #{up_forward.7} parent=47 // pred_check_branch
          %296 = sbr.rel (%p294) target = $region52
        $region51: #{up_forward.7} parent=47 // pred_region
          %298 = dma.done [#allocation7], 16
        $region52: #{up_forward.7} parent=47 // pred_fallthru
          _
        %299 = sfence
        %p300 = pneg %p48
        %p301 = pneg %p45
        %p302 = scmp.lt.s32.totalorder %s24, 1
        %s303 = scalar_select %p302, %s24, 1
        %s304 = smul.addr %s303, 2
        %s305 = smul.addr %s304, 2
        %s306 = scalar_lea.vmem %s1, %s305
        %p307 = pneg %p74
        %p308 = pneg %p71
        %s309 = smul.u32 4, %s25
        %p310 = scmp.lt.s32.totalorder %s24, 1
        %s311 = scalar_select %p310, %s24, 1
        %p312 = scmp.lt.s32.totalorder %s309, 3
        %s313 = scalar_select %p312, %s309, 3
        %s314 = smul.addr %s313, 2
        %s315 = smul.addr %s311, 8
        %s316 = sadd.s32 %s314, %s315
        %s317 = smul.addr %s316, 4
        %s318 = scalar_lea.vmem %s2, %s317
        %p319 = pneg %p102
        %p320 = pneg %p99
        %s321 = smul.u32 4, %s25
        %p322 = scmp.lt.s32.totalorder %s321, 3
        %s323 = scalar_select %p322, %s321, 3
        %s324 = smul.addr %s323, 2
        %s325 = smul.addr %s324, 4
        %s326 = scalar_lea.vmem %s3, %s325
        %p327 = pneg %p128
        %p328 = pneg %p125
        %p329 = pneg %p149
        %p330 = pneg %p146
        %p331 = pneg %p170
        %p332 = pneg %p167
        %p333 = pneg %p191
        %p334 = pneg %p188
        %p335 = pneg %p217
        %p336 = pneg %p214
        %p337 = scmp.lt.s32.totalorder %s24, 1
        %s338 = scalar_select %p337, %s24, 1
        %s339 = smul.addr %s338, 4
        %s340 = smul.addr %s339, 8
        %s341 = scalar_lea.vmem %s7, %s340
        %p342 = scmp.lt.s32.totalorder %s24, 1
        %s343 = scalar_select %p342, %s24, 1
        %s344 = smul.addr %s343, 2
        %s345 = smul.addr %s344, 2
        %s346 = scalar_lea.vmem %s1, %s345
        %s347 = smul.u32 4, %s25
        %p348 = scmp.lt.s32.totalorder %s24, 1
        %s349 = scalar_select %p348, %s24, 1
        %p350 = scmp.lt.s32.totalorder %s347, 3
        %s351 = scalar_select %p350, %s347, 3
        %s352 = smul.addr %s351, 2
        %s353 = smul.addr %s349, 8
        %s354 = sadd.s32 %s352, %s353
        %s355 = smul.addr %s354, 4
        %s356 = scalar_lea.vmem %s2, %s355
        %s357 = smul.u32 4, %s25
        %s358 = smul.u32 4, %s25
        %p359 = scmp.lt.s32.totalorder %s358, 3
        %s360 = scalar_select %p359, %s358, 3
        %s361 = smul.addr %s360, 2
        %s362 = smul.addr %s361, 4
        %s363 = scalar_lea.vmem %s3, %s362
        %s364 = smul.u32 4, %s25
        %p365 = scmp.lt.s32.totalorder %s24, 1
        %s366 = scalar_select %p365, %s24, 1
        %s367 = smul.addr %s366, 4
        %s368 = smul.addr %s367, 8
        %s369 = scalar_lea.vmem %s7, %s368
        %v371 = vld [vmem:[%s0] sm:$0x3]
        %p372 = scmp.eq.s32.totalorder %s25, 0
        // Predicated region
        $region53: #{up_forward.7} parent=47 // pred_check
          %p373 = pneg %p372
        $region54: #{up_forward.7} parent=47 // pred_check_branch
          %375 = sbr.rel (%p373) target = $region56
        $region55: #{up_forward.7} parent=47 // pred_region
          %vm376 = vcmask 1041408
          %vm377 = vcmask 1043458
          %vm378 = vmor %vm377, %vm376
          %vm379 = vcmask 1045508
          %vm380 = vmor %vm379, %vm378
          %vm381 = vcmask 416774
          %vm382 = vmor %vm381, %vm380
          %383 = vst.msk [vmem:[#allocation3] sm:$0xff] %vm382, 0.0
          %384 = vst [vmem:[#allocation4] sm:$0xff] 0
          %vm385 = vcmask 1043456
          %vm386 = vcmask 138244
          %vm387 = vmor %vm386, %vm385
          %388 = vst.msk [vmem:[#allocation4 + $0x8] sm:$0xff] %vm387, 0
          %389 = vst [vmem:[#allocation4 + $0x10] sm:$0xff] 0
          %390 = vst.msk [vmem:[#allocation4 + $0x18] sm:$0xff] %vm387, 0
          %391 = vst [vmem:[#allocation4 + $0x20] sm:$0xff] 0
          %392 = vst.msk [vmem:[#allocation4 + $0x28] sm:$0xff] %vm387, 0
          %393 = vst [vmem:[#allocation4 + $0x30] sm:$0xff] 0
          %394 = vst.msk [vmem:[#allocation4 + $0x38] sm:$0xff] %vm387, 0
          %v395 = vld [vmem:[%s346] sm:$0xf]
          %396 = vst [vmem:[#allocation3 + $0x2] sm:$0xf] %v395
          %s397 = sld [smem:[#allocation6]]
          %v398 = vld [vmem:[#allocation3] ss:$2 sm:$0x7]
          %v399 = vstv %s397
          %v400 = vmul.f32 %v399, %v398
          %v401 = vadd.f32 %v400, 0.0
          %s402 = sld [smem:[#allocation6 + $0x7]]
          %v403 = vstv %s402
          %v404 = vmul.f32 %v403, %v398
          %406 = vrot.lane.b32.xlu0 %v404, 112
          %v407 = vpop.permute.xlu0 %406
          %v408 = vrot.slane %v407, 1
          %vm409 = vcmask 916480
          %v410 = vsel %vm409, %v407, %v408
          %v412 = vadd.f32 %v401, %v410
          %s413 = sld [smem:[#allocation6 + $0xe]]
          %v414 = vstv %s413
          %v415 = vmul.f32 %v414, %v398
          %417 = vrot.lane.b32.xlu0 %v415, 96
          %v418 = vpop.permute.xlu0 %417
          %v419 = vrot.slane %v418, 1
          %vm420 = vcmask 785408
          %v421 = vsel %vm420, %v418, %v419
          %v423 = vadd.f32 %v412, %v421
          %s424 = sld [smem:[#allocation6 + $0x15]]
          %v425 = vstv %s424
          %v426 = vmul.f32 %v425, %v398
          %428 = vrot.lane.b32.xlu0 %v426, 80
          %v429 = vpop.permute.xlu0 %428
          %v430 = vrot.slane %v429, 1
          %vm431 = vcmask 654336
          %v432 = vsel %vm431, %v429, %v430
          %v434 = vadd.f32 %v423, %v432
          %s435 = sld [smem:[#allocation6 + $0x1c]]
          %s436 = scalar_lea.vmem [#allocation3], 2
          %v437 = vld [vmem:[%s436] ss:$2 sm:$0x7]
          %v438 = vstv %s435
          %v439 = vmul.f32 %v438, %v437
          %441 = vrot.lane.b32.xlu0 %v439, 64
          %v442 = vpop.permute.xlu0 %441
          %v443 = vrot.slane %v442, 7
          %vm444 = vcmask 523264
          %v445 = vsel %vm444, %v443, %v442
          %v447 = vadd.f32 %v434, %v445
          %s448 = sld [smem:[#allocation6 + $0x23]]
          %v449 = vstv %s448
          %v450 = vmul.f32 %v449, %v437
          %452 = vrot.lane.b32.xlu0 %v450, 48
          %v453 = vpop.permute.xlu0 %452
          %v454 = vrot.slane %v453, 7
          %vm455 = vcmask 392192
          %v456 = vsel %vm455, %v454, %v453
          %v458 = vadd.f32 %v447, %v456
          %s459 = sld [smem:[#allocation6 + $0x2a]]
          %v460 = vstv %s459
          %v461 = vmul.f32 %v460, %v437
          %463 = vrot.lane.b32.xlu0 %v461, 32
          %v464 = vpop.permute.xlu0 %463
          %v465 = vrot.slane %v464, 7
          %vm466 = vcmask 261120
          %v467 = vsel %vm466, %v465, %v464
          %v469 = vadd.f32 %v458, %v467
          %s470 = sld [smem:[#allocation6 + $0x31]]
          %s471 = scalar_lea.vmem [#allocation3], 1
          %v472 = vld [vmem:[%s471] ss:$2 sm:$0x7]
          %v473 = vstv %s470
          %v474 = vmul.f32 %v473, %v472
          %v475 = vadd.f32 %v469, %v474
          %s476 = sld [smem:[#allocation6 + $0x38]]
          %v477 = vstv %s476
          %v478 = vmul.f32 %v477, %v472
          %480 = vrot.lane.b32.xlu0 %v478, 112
          %v481 = vpop.permute.xlu0 %480
          %v482 = vrot.slane %v481, 1
          %v483 = vsel %vm409, %v481, %v482
          %v485 = vadd.f32 %v475, %v483
          %s486 = sld [smem:[#allocation6 + $0x3f]]
          %v487 = vstv %s486
          %v488 = vmul.f32 %v487, %v472
          %490 = vrot.lane.b32.xlu0 %v488, 96
          %v491 = vpop.permute.xlu0 %490
          %v492 = vrot.slane %v491, 1
          %v493 = vsel %vm420, %v491, %v492
          %v495 = vadd.f32 %v485, %v493
          %s496 = sld [smem:[#allocation6 + $0x46]]
          %v497 = vstv %s496
          %v498 = vmul.f32 %v497, %v472
          %500 = vrot.lane.b32.xlu0 %v498, 80
          %v501 = vpop.permute.xlu0 %500
          %v502 = vrot.slane %v501, 1
          %v503 = vsel %vm431, %v501, %v502
          %v505 = vadd.f32 %v495, %v503
          %s506 = sld [smem:[#allocation6 + $0x4d]]
          %s507 = scalar_lea.vmem [#allocation3], 3
          %v508 = vld [vmem:[%s507] ss:$2 sm:$0x7]
          %v509 = vstv %s506
          %v510 = vmul.f32 %v509, %v508
          %512 = vrot.lane.b32.xlu0 %v510, 64
          %v513 = vpop.permute.xlu0 %512
          %v514 = vrot.slane %v513, 7
          %v515 = vsel %vm444, %v514, %v513
          %v517 = vadd.f32 %v505, %v515
          %s518 = sld [smem:[#allocation6 + $0x54]]
          %v519 = vstv %s518
          %v520 = vmul.f32 %v519, %v508
          %522 = vrot.lane.b32.xlu0 %v520, 48
          %v523 = vpop.permute.xlu0 %522
          %v524 = vrot.slane %v523, 7
          %v525 = vsel %vm455, %v524, %v523
          %v527 = vadd.f32 %v517, %v525
          %s528 = sld [smem:[#allocation6 + $0x5b]]
          %v529 = vstv %s528
          %v530 = vmul.f32 %v529, %v508
          %532 = vrot.lane.b32.xlu0 %v530, 32
          %v533 = vpop.permute.xlu0 %532
          %v534 = vrot.slane %v533, 7
          %v535 = vsel %vm466, %v534, %v533
          %v537 = vadd.f32 %v527, %v535
          %vm538 = vcmp.ge.s32.totalorder %v371, 3
          %vm539 = vcmp.le.s32.totalorder %v371, 15
          %vm540 = vmand %vm538, %vm539
          %542 = vrot.lane.b32.xlu0 %v537, 51
          %v543 = vpop.permute.xlu0 %542
          %v544 = vrot.slane %v543, 1
          %vm545 = vcmask 416768
          %v546 = vsel %vm545, %v543, %v544
          %v548 = vsel %vm540, %v546, 0.0
          %v549 = vadd.f32 %v548, 0.0
          %s550 = sld [smem:[#allocation6 + $0x1]]
          %v551 = vstv %s550
          %v552 = vmul.f32 %v551, %v398
          %v553 = vadd.f32 %v552, 0.0
          %s554 = sld [smem:[#allocation6 + $0x8]]
          %v555 = vstv %s554
          %v556 = vmul.f32 %v555, %v398
          %558 = vrot.lane.b32.xlu0 %v556, 112
          %v559 = vpop.permute.xlu0 %558
          %v560 = vrot.slane %v559, 1
          %v561 = vsel %vm409, %v559, %v560
          %v563 = vadd.f32 %v553, %v561
          %s564 = sld [smem:[#allocation6 + $0xf]]
          %v565 = vstv %s564
          %v566 = vmul.f32 %v565, %v398
          %568 = vrot.lane.b32.xlu0 %v566, 96
          %v569 = vpop.permute.xlu0 %568
          %v570 = vrot.slane %v569, 1
          %v571 = vsel %vm420, %v569, %v570
          %v573 = vadd.f32 %v563, %v571
          %s574 = sld [smem:[#allocation6 + $0x16]]
          %v575 = vstv %s574
          %v576 = vmul.f32 %v575, %v398
          %578 = vrot.lane.b32.xlu0 %v576, 80
          %v579 = vpop.permute.xlu0 %578
          %v580 = vrot.slane %v579, 1
          %v581 = vsel %vm431, %v579, %v580
          %v583 = vadd.f32 %v573, %v581
          %s584 = sld [smem:[#allocation6 + $0x1d]]
          %v585 = vstv %s584
          %v586 = vmul.f32 %v585, %v437
          %588 = vrot.lane.b32.xlu0 %v586, 64
          %v589 = vpop.permute.xlu0 %588
          %v590 = vrot.slane %v589, 7
          %v591 = vsel %vm444, %v590, %v589
          %v593 = vadd.f32 %v583, %v591
          %s594 = sld [smem:[#allocation6 + $0x24]]
          %v595 = vstv %s594
          %v596 = vmul.f32 %v595, %v437
          %598 = vrot.lane.b32.xlu0 %v596, 48
          %v599 = vpop.permute.xlu0 %598
          %v600 = vrot.slane %v599, 7
          %v601 = vsel %vm455, %v600, %v599
          %v603 = vadd.f32 %v593, %v601
          %s604 = sld [smem:[#allocation6 + $0x2b]]
          %v605 = vstv %s604
          %v606 = vmul.f32 %v605, %v437
          %608 = vrot.lane.b32.xlu0 %v606, 32
          %v609 = vpop.permute.xlu0 %608
          %v610 = vrot.slane %v609, 7
          %v611 = vsel %vm466, %v610, %v609
          %v613 = vadd.f32 %v603, %v611
          %s614 = sld [smem:[#allocation6 + $0x32]]
          %v615 = vstv %s614
          %v616 = vmul.f32 %v615, %v472
          %v617 = vadd.f32 %v613, %v616
          %s618 = sld [smem:[#allocation6 + $0x39]]
          %v619 = vstv %s618
          %v620 = vmul.f32 %v619, %v472
          %622 = vrot.lane.b32.xlu0 %v620, 112
          %v623 = vpop.permute.xlu0 %622
          %v624 = vrot.slane %v623, 1
          %v625 = vsel %vm409, %v623, %v624
          %v627 = vadd.f32 %v617, %v625
          %s628 = sld [smem:[#allocation6 + $0x40]]
          %v629 = vstv %s628
          %v630 = vmul.f32 %v629, %v472
          %632 = vrot.lane.b32.xlu0 %v630, 96
          %v633 = vpop.permute.xlu0 %632
          %v634 = vrot.slane %v633, 1
          %v635 = vsel %vm420, %v633, %v634
          %v637 = vadd.f32 %v627, %v635
          %s638 = sld [smem:[#allocation6 + $0x47]]
          %v639 = vstv %s638
          %v640 = vmul.f32 %v639, %v472
          %642 = vrot.lane.b32.xlu0 %v640, 80
          %v643 = vpop.permute.xlu0 %642
          %v644 = vrot.slane %v643, 1
          %v645 = vsel %vm431, %v643, %v644
          %v647 = vadd.f32 %v637, %v645
          %s648 = sld [smem:[#allocation6 + $0x4e]]
          %v649 = vstv %s648
          %v650 = vmul.f32 %v649, %v508
          %652 = vrot.lane.b32.xlu0 %v650, 64
          %v653 = vpop.permute.xlu0 %652
          %v654 = vrot.slane %v653, 7
          %v655 = vsel %vm444, %v654, %v653
          %v657 = vadd.f32 %v647, %v655
          %s658 = sld [smem:[#allocation6 + $0x55]]
          %v659 = vstv %s658
          %v660 = vmul.f32 %v659, %v508
          %662 = vrot.lane.b32.xlu0 %v660, 48
          %v663 = vpop.permute.xlu0 %662
          %v664 = vrot.slane %v663, 7
          %v665 = vsel %vm455, %v664, %v663
          %v667 = vadd.f32 %v657, %v665
          %s668 = sld [smem:[#allocation6 + $0x5c]]
          %v669 = vstv %s668
          %v670 = vmul.f32 %v669, %v508
          %672 = vrot.lane.b32.xlu0 %v670, 32
          %v673 = vpop.permute.xlu0 %672
          %v674 = vrot.slane %v673, 7
          %v675 = vsel %vm466, %v674, %v673
          %v677 = vadd.f32 %v667, %v675
          %vm678 = vcmp.ge.s32.totalorder %v371, 2
          %vm679 = vmand %vm678, %vm539
          %681 = vrot.lane.b32.xlu0 %v677, 50
          %v682 = vpop.permute.xlu0 %681
          %v683 = vrot.slane %v682, 1
          %vm684 = vcmask 408576
          %v685 = vsel %vm684, %v682, %v683
          %v687 = vsel %vm679, %v685, 0.0
          %v688 = vadd.f32 %v549, %v687
          %s689 = sld [smem:[#allocation6 + $0x2]]
          %v690 = vstv %s689
          %v691 = vmul.f32 %v690, %v398
          %v692 = vadd.f32 %v691, 0.0
          %s693 = sld [smem:[#allocation6 + $0x9]]
          %v694 = vstv %s693
          %v695 = vmul.f32 %v694, %v398
          %697 = vrot.lane.b32.xlu0 %v695, 112
          %v698 = vpop.permute.xlu0 %697
          %v699 = vrot.slane %v698, 1
          %v700 = vsel %vm409, %v698, %v699
          %v702 = vadd.f32 %v692, %v700
          %s703 = sld [smem:[#allocation6 + $0x10]]
          %v704 = vstv %s703
          %v705 = vmul.f32 %v704, %v398
          %707 = vrot.lane.b32.xlu0 %v705, 96
          %v708 = vpop.permute.xlu0 %707
          %v709 = vrot.slane %v708, 1
          %v710 = vsel %vm420, %v708, %v709
          %v712 = vadd.f32 %v702, %v710
          %s713 = sld [smem:[#allocation6 + $0x17]]
          %v714 = vstv %s713
          %v715 = vmul.f32 %v714, %v398
          %717 = vrot.lane.b32.xlu0 %v715, 80
          %v718 = vpop.permute.xlu0 %717
          %v719 = vrot.slane %v718, 1
          %v720 = vsel %vm431, %v718, %v719
          %v722 = vadd.f32 %v712, %v720
          %s723 = sld [smem:[#allocation6 + $0x1e]]
          %v724 = vstv %s723
          %v725 = vmul.f32 %v724, %v437
          %727 = vrot.lane.b32.xlu0 %v725, 64
          %v728 = vpop.permute.xlu0 %727
          %v729 = vrot.slane %v728, 7
          %v730 = vsel %vm444, %v729, %v728
          %v732 = vadd.f32 %v722, %v730
          %s733 = sld [smem:[#allocation6 + $0x25]]
          %v734 = vstv %s733
          %v735 = vmul.f32 %v734, %v437
          %737 = vrot.lane.b32.xlu0 %v735, 48
          %v738 = vpop.permute.xlu0 %737
          %v739 = vrot.slane %v738, 7
          %v740 = vsel %vm455, %v739, %v738
          %v742 = vadd.f32 %v732, %v740
          %s743 = sld [smem:[#allocation6 + $0x2c]]
          %v744 = vstv %s743
          %v745 = vmul.f32 %v744, %v437
          %747 = vrot.lane.b32.xlu0 %v745, 32
          %v748 = vpop.permute.xlu0 %747
          %v749 = vrot.slane %v748, 7
          %v750 = vsel %vm466, %v749, %v748
          %v752 = vadd.f32 %v742, %v750
          %s753 = sld [smem:[#allocation6 + $0x33]]
          %v754 = vstv %s753
          %v755 = vmul.f32 %v754, %v472
          %v756 = vadd.f32 %v752, %v755
          %s757 = sld [smem:[#allocation6 + $0x3a]]
          %v758 = vstv %s757
          %v759 = vmul.f32 %v758, %v472
          %761 = vrot.lane.b32.xlu0 %v759, 112
          %v762 = vpop.permute.xlu0 %761
          %v763 = vrot.slane %v762, 1
          %v764 = vsel %vm409, %v762, %v763
          %v766 = vadd.f32 %v756, %v764
          %s767 = sld [smem:[#allocation6 + $0x41]]
          %v768 = vstv %s767
          %v769 = vmul.f32 %v768, %v472
          %771 = vrot.lane.b32.xlu0 %v769, 96
          %v772 = vpop.permute.xlu0 %771
          %v773 = vrot.slane %v772, 1
          %v774 = vsel %vm420, %v772, %v773
          %v776 = vadd.f32 %v766, %v774
          %s777 = sld [smem:[#allocation6 + $0x48]]
          %v778 = vstv %s777
          %v779 = vmul.f32 %v778, %v472
          %781 = vrot.lane.b32.xlu0 %v779, 80
          %v782 = vpop.permute.xlu0 %781
          %v783 = vrot.slane %v782, 1
          %v784 = vsel %vm431, %v782, %v783
          %v786 = vadd.f32 %v776, %v784
          %s787 = sld [smem:[#allocation6 + $0x4f]]
          %v788 = vstv %s787
          %v789 = vmul.f32 %v788, %v508
          %791 = vrot.lane.b32.xlu0 %v789, 64
          %v792 = vpop.permute.xlu0 %791
          %v793 = vrot.slane %v792, 7
          %v794 = vsel %vm444, %v793, %v792
          %v796 = vadd.f32 %v786, %v794
          %s797 = sld [smem:[#allocation6 + $0x56]]
          %v798 = vstv %s797
          %v799 = vmul.f32 %v798, %v508
          %801 = vrot.lane.b32.xlu0 %v799, 48
          %v802 = vpop.permute.xlu0 %801
          %v803 = vrot.slane %v802, 7
          %v804 = vsel %vm455, %v803, %v802
          %v806 = vadd.f32 %v796, %v804
          %s807 = sld [smem:[#allocation6 + $0x5d]]
          %v808 = vstv %s807
          %v809 = vmul.f32 %v808, %v508
          %811 = vrot.lane.b32.xlu0 %v809, 32
          %v812 = vpop.permute.xlu0 %811
          %v813 = vrot.slane %v812, 7
          %v814 = vsel %vm466, %v813, %v812
          %v816 = vadd.f32 %v806, %v814
          %vm817 = vcmp.ge.s32.totalorder %v371, 1
          %vm818 = vmand %vm817, %vm539
          %820 = vrot.lane.b32.xlu0 %v816, 49
          %v821 = vpop.permute.xlu0 %820
          %v822 = vrot.slane %v821, 1
          %vm823 = vcmask 400384
          %v824 = vsel %vm823, %v821, %v822
          %v826 = vsel %vm818, %v824, 0.0
          %v827 = vadd.f32 %v688, %v826
          %s828 = sld [smem:[#allocation6 + $0x3]]
          %v829 = vstv %s828
          %v830 = vmul.f32 %v829, %v398
          %v831 = vadd.f32 %v830, 0.0
          %s832 = sld [smem:[#allocation6 + $0xa]]
          %v833 = vstv %s832
          %v834 = vmul.f32 %v833, %v398
          %836 = vrot.lane.b32.xlu0 %v834, 112
          %v837 = vpop.permute.xlu0 %836
          %v838 = vrot.slane %v837, 1
          %v839 = vsel %vm409, %v837, %v838
          %v841 = vadd.f32 %v831, %v839
          %s842 = sld [smem:[#allocation6 + $0x11]]
          %v843 = vstv %s842
          %v844 = vmul.f32 %v843, %v398
          %846 = vrot.lane.b32.xlu0 %v844, 96
          %v847 = vpop.permute.xlu0 %846
          %v848 = vrot.slane %v847, 1
          %v849 = vsel %vm420, %v847, %v848
          %v851 = vadd.f32 %v841, %v849
          %s852 = sld [smem:[#allocation6 + $0x18]]
          %v853 = vld [vmem:[%s436] ss:$2 sm:$0x3]
          %v854 = vstv %s852
          %v855 = vmul.f32 %v854, %v853
          %857 = vrot.lane.b32.xlu0 %v855, 80
          %v858 = vpop.permute.xlu0 %857
          %v859 = vrot.slane %v858, 7
          %v860 = vsel %vm431, %v859, %v858
          %v862 = vadd.f32 %v851, %v860
          %s863 = sld [smem:[#allocation6 + $0x1f]]
          %v864 = vstv %s863
          %v865 = vmul.f32 %v864, %v437
          %867 = vrot.lane.b32.xlu0 %v865, 64
          %v868 = vpop.permute.xlu0 %867
          %v869 = vrot.slane %v868, 7
          %v870 = vsel %vm444, %v869, %v868
          %v872 = vadd.f32 %v862, %v870
          %s873 = sld [smem:[#allocation6 + $0x26]]
          %v874 = vstv %s873
          %v875 = vmul.f32 %v874, %v437
          %877 = vrot.lane.b32.xlu0 %v875, 48
          %v878 = vpop.permute.xlu0 %877
          %v879 = vrot.slane %v878, 7
          %v880 = vsel %vm455, %v879, %v878
          %v882 = vadd.f32 %v872, %v880
          %s883 = sld [smem:[#allocation6 + $0x2d]]
          %v884 = vstv %s883
          %v885 = vmul.f32 %v884, %v437
          %887 = vrot.lane.b32.xlu0 %v885, 32
          %v888 = vpop.permute.xlu0 %887
          %v889 = vrot.slane %v888, 7
          %v890 = vsel %vm466, %v889, %v888
          %v892 = vadd.f32 %v882, %v890
          %s893 = sld [smem:[#allocation6 + $0x34]]
          %v894 = vstv %s893
          %v895 = vmul.f32 %v894, %v472
          %v896 = vadd.f32 %v892, %v895
          %s897 = sld [smem:[#allocation6 + $0x3b]]
          %v898 = vstv %s897
          %v899 = vmul.f32 %v898, %v472
          %901 = vrot.lane.b32.xlu0 %v899, 112
          %v902 = vpop.permute.xlu0 %901
          %v903 = vrot.slane %v902, 1
          %v904 = vsel %vm409, %v902, %v903
          %v906 = vadd.f32 %v896, %v904
          %s907 = sld [smem:[#allocation6 + $0x42]]
          %v908 = vstv %s907
          %v909 = vmul.f32 %v908, %v472
          %911 = vrot.lane.b32.xlu0 %v909, 96
          %v912 = vpop.permute.xlu0 %911
          %v913 = vrot.slane %v912, 1
          %v914 = vsel %vm420, %v912, %v913
          %v916 = vadd.f32 %v906, %v914
          %s917 = sld [smem:[#allocation6 + $0x49]]
          %v918 = vld [vmem:[%s507] ss:$2 sm:$0x3]
          %v919 = vstv %s917
          %v920 = vmul.f32 %v919, %v918
          %922 = vrot.lane.b32.xlu0 %v920, 80
          %v923 = vpop.permute.xlu0 %922
          %v924 = vrot.slane %v923, 7
          %v925 = vsel %vm431, %v924, %v923
          %v927 = vadd.f32 %v916, %v925
          %s928 = sld [smem:[#allocation6 + $0x50]]
          %v929 = vstv %s928
          %v930 = vmul.f32 %v929, %v508
          %932 = vrot.lane.b32.xlu0 %v930, 64
          %v933 = vpop.permute.xlu0 %932
          %v934 = vrot.slane %v933, 7
          %v935 = vsel %vm444, %v934, %v933
          %v937 = vadd.f32 %v927, %v935
          %s938 = sld [smem:[#allocation6 + $0x57]]
          %v939 = vstv %s938
          %v940 = vmul.f32 %v939, %v508
          %942 = vrot.lane.b32.xlu0 %v940, 48
          %v943 = vpop.permute.xlu0 %942
          %v944 = vrot.slane %v943, 7
          %v945 = vsel %vm455, %v944, %v943
          %v947 = vadd.f32 %v937, %v945
          %s948 = sld [smem:[#allocation6 + $0x5e]]
          %v949 = vstv %s948
          %v950 = vmul.f32 %v949, %v508
          %952 = vrot.lane.b32.xlu0 %v950, 32
          %v953 = vpop.permute.xlu0 %952
          %v954 = vrot.slane %v953, 7
          %v955 = vsel %vm466, %v954, %v953
          %v957 = vadd.f32 %v947, %v955
          %959 = vrot.lane.b32.xlu0 %v957, 48
          %v960 = vpop.permute.xlu0 %959
          %v961 = vrot.slane %v960, 1
          %v962 = vsel %vm455, %v960, %v961
          %v964 = vadd.f32 %v827, %v962
          %s965 = sld [smem:[#allocation6 + $0x4]]
          %v966 = vstv %s965
          %v967 = vmul.f32 %v966, %v398
          %v968 = vadd.f32 %v967, 0.0
          %s969 = sld [smem:[#allocation6 + $0xb]]
          %v970 = vstv %s969
          %v971 = vmul.f32 %v970, %v398
          %973 = vrot.lane.b32.xlu0 %v971, 112
          %v974 = vpop.permute.xlu0 %973
          %v975 = vrot.slane %v974, 1
          %v976 = vsel %vm409, %v974, %v975
          %v978 = vadd.f32 %v968, %v976
          %s979 = sld [smem:[#allocation6 + $0x12]]
          %v980 = vstv %s979
          %v981 = vmul.f32 %v980, %v398
          %983 = vrot.lane.b32.xlu0 %v981, 96
          %v984 = vpop.permute.xlu0 %983
          %v985 = vrot.slane %v984, 1
          %v986 = vsel %vm420, %v984, %v985
          %v988 = vadd.f32 %v978, %v986
          %s989 = sld [smem:[#allocation6 + $0x19]]
          %v990 = vstv %s989
          %v991 = vmul.f32 %v990, %v437
          %993 = vrot.lane.b32.xlu0 %v991, 80
          %v994 = vpop.permute.xlu0 %993
          %v995 = vrot.slane %v994, 7
          %v996 = vsel %vm431, %v995, %v994
          %v998 = vadd.f32 %v988, %v996
          %s999 = sld [smem:[#allocation6 + $0x20]]
          %v1000 = vstv %s999
          %v1001 = vmul.f32 %v1000, %v437
          %1003 = vrot.lane.b32.xlu0 %v1001, 64
          %v1004 = vpop.permute.xlu0 %1003
          %v1005 = vrot.slane %v1004, 7
          %v1006 = vsel %vm444, %v1005, %v1004
          %v1008 = vadd.f32 %v998, %v1006
          %s1009 = sld [smem:[#allocation6 + $0x27]]
          %v1010 = vstv %s1009
          %v1011 = vmul.f32 %v1010, %v437
          %1013 = vrot.lane.b32.xlu0 %v1011, 48
          %v1014 = vpop.permute.xlu0 %1013
          %v1015 = vrot.slane %v1014, 7
          %v1016 = vsel %vm455, %v1015, %v1014
          %v1018 = vadd.f32 %v1008, %v1016
          %s1019 = sld [smem:[#allocation6 + $0x2e]]
          %v1020 = vstv %s1019
          %v1021 = vmul.f32 %v1020, %v437
          %1023 = vrot.lane.b32.xlu0 %v1021, 32
          %v1024 = vpop.permute.xlu0 %1023
          %v1025 = vrot.slane %v1024, 7
          %v1026 = vsel %vm466, %v1025, %v1024
          %v1028 = vadd.f32 %v1018, %v1026
          %s1029 = sld [smem:[#allocation6 + $0x35]]
          %v1030 = vstv %s1029
          %v1031 = vmul.f32 %v1030, %v472
          %v1032 = vadd.f32 %v1028, %v1031
          %s1033 = sld [smem:[#allocation6 + $0x3c]]
          %v1034 = vstv %s1033
          %v1035 = vmul.f32 %v1034, %v472
          %1037 = vrot.lane.b32.xlu0 %v1035, 112
          %v1038 = vpop.permute.xlu0 %1037
          %v1039 = vrot.slane %v1038, 1
          %v1040 = vsel %vm409, %v1038, %v1039
          %v1042 = vadd.f32 %v1032, %v1040
          %s1043 = sld [smem:[#allocation6 + $0x43]]
          %v1044 = vstv %s1043
          %v1045 = vmul.f32 %v1044, %v472
          %1047 = vrot.lane.b32.xlu0 %v1045, 96
          %v1048 = vpop.permute.xlu0 %1047
          %v1049 = vrot.slane %v1048, 1
          %v1050 = vsel %vm420, %v1048, %v1049
          %v1052 = vadd.f32 %v1042, %v1050
          %s1053 = sld [smem:[#allocation6 + $0x4a]]
          %v1054 = vstv %s1053
          %v1055 = vmul.f32 %v1054, %v508
          %1057 = vrot.lane.b32.xlu0 %v1055, 80
          %v1058 = vpop.permute.xlu0 %1057
          %v1059 = vrot.slane %v1058, 7
          %v1060 = vsel %vm431, %v1059, %v1058
          %v1062 = vadd.f32 %v1052, %v1060
          %s1063 = sld [smem:[#allocation6 + $0x51]]
          %v1064 = vstv %s1063
          %v1065 = vmul.f32 %v1064, %v508
          %1067 = vrot.lane.b32.xlu0 %v1065, 64
          %v1068 = vpop.permute.xlu0 %1067
          %v1069 = vrot.slane %v1068, 7
          %v1070 = vsel %vm444, %v1069, %v1068
          %v1072 = vadd.f32 %v1062, %v1070
          %s1073 = sld [smem:[#allocation6 + $0x58]]
          %v1074 = vstv %s1073
          %v1075 = vmul.f32 %v1074, %v508
          %1077 = vrot.lane.b32.xlu0 %v1075, 48
          %v1078 = vpop.permute.xlu0 %1077
          %v1079 = vrot.slane %v1078, 7
          %v1080 = vsel %vm455, %v1079, %v1078
          %v1082 = vadd.f32 %v1072, %v1080
          %s1083 = sld [smem:[#allocation6 + $0x5f]]
          %v1084 = vstv %s1083
          %v1085 = vmul.f32 %v1084, %v508
          %1087 = vrot.lane.b32.xlu0 %v1085, 32
          %v1088 = vpop.permute.xlu0 %1087
          %v1089 = vrot.slane %v1088, 7
          %v1090 = vsel %vm466, %v1089, %v1088
          %v1092 = vadd.f32 %v1082, %v1090
          %vm1093 = vcmp.ge.s32.totalorder %v371, 0
          %vm1094 = vcmp.le.s32.totalorder %v371, 14
          %vm1095 = vmand %vm1093, %vm1094
          %1097 = vrot.lane.b32.xlu0 %v1092, 47
          %v1098 = vpop.permute.xlu0 %1097
          %v1099 = vrot.slane %v1098, 1
          %vm1100 = vcmask 384000
          %v1101 = vsel %vm1100, %v1098, %v1099
          %v1103 = vsel %vm1095, %v1101, 0.0
          %v1104 = vadd.f32 %v964, %v1103
          %s1105 = sld [smem:[#allocation6 + $0x5]]
          %v1106 = vstv %s1105
          %v1107 = vmul.f32 %v1106, %v398
          %v1108 = vadd.f32 %v1107, 0.0
          %s1109 = sld [smem:[#allocation6 + $0xc]]
          %v1110 = vstv %s1109
          %v1111 = vmul.f32 %v1110, %v398
          %1113 = vrot.lane.b32.xlu0 %v1111, 112
          %v1114 = vpop.permute.xlu0 %1113
          %v1115 = vrot.slane %v1114, 1
          %v1116 = vsel %vm409, %v1114, %v1115
          %v1118 = vadd.f32 %v1108, %v1116
          %s1119 = sld [smem:[#allocation6 + $0x13]]
          %v1120 = vstv %s1119
          %v1121 = vmul.f32 %v1120, %v398
          %1123 = vrot.lane.b32.xlu0 %v1121, 96
          %v1124 = vpop.permute.xlu0 %1123
          %v1125 = vrot.slane %v1124, 1
          %v1126 = vsel %vm420, %v1124, %v1125
          %v1128 = vadd.f32 %v1118, %v1126
          %s1129 = sld [smem:[#allocation6 + $0x1a]]
          %v1130 = vstv %s1129
          %v1131 = vmul.f32 %v1130, %v437
          %1133 = vrot.lane.b32.xlu0 %v1131, 80
          %v1134 = vpop.permute.xlu0 %1133
          %v1135 = vrot.slane %v1134, 7
          %v1136 = vsel %vm431, %v1135, %v1134
          %v1138 = vadd.f32 %v1128, %v1136
          %s1139 = sld [smem:[#allocation6 + $0x21]]
          %v1140 = vstv %s1139
          %v1141 = vmul.f32 %v1140, %v437
          %1143 = vrot.lane.b32.xlu0 %v1141, 64
          %v1144 = vpop.permute.xlu0 %1143
          %v1145 = vrot.slane %v1144, 7
          %v1146 = vsel %vm444, %v1145, %v1144
          %v1148 = vadd.f32 %v1138, %v1146
          %s1149 = sld [smem:[#allocation6 + $0x28]]
          %v1150 = vstv %s1149
          %v1151 = vmul.f32 %v1150, %v437
          %1153 = vrot.lane.b32.xlu0 %v1151, 48
          %v1154 = vpop.permute.xlu0 %1153
          %v1155 = vrot.slane %v1154, 7
          %v1156 = vsel %vm455, %v1155, %v1154
          %v1158 = vadd.f32 %v1148, %v1156
          %s1159 = sld [smem:[#allocation6 + $0x2f]]
          %v1160 = vstv %s1159
          %v1161 = vmul.f32 %v1160, %v437
          %1163 = vrot.lane.b32.xlu0 %v1161, 32
          %v1164 = vpop.permute.xlu0 %1163
          %v1165 = vrot.slane %v1164, 7
          %v1166 = vsel %vm466, %v1165, %v1164
          %v1168 = vadd.f32 %v1158, %v1166
          %s1169 = sld [smem:[#allocation6 + $0x36]]
          %v1170 = vstv %s1169
          %v1171 = vmul.f32 %v1170, %v472
          %v1172 = vadd.f32 %v1168, %v1171
          %s1173 = sld [smem:[#allocation6 + $0x3d]]
          %v1174 = vstv %s1173
          %v1175 = vmul.f32 %v1174, %v472
          %1177 = vrot.lane.b32.xlu0 %v1175, 112
          %v1178 = vpop.permute.xlu0 %1177
          %v1179 = vrot.slane %v1178, 1
          %v1180 = vsel %vm409, %v1178, %v1179
          %v1182 = vadd.f32 %v1172, %v1180
          %s1183 = sld [smem:[#allocation6 + $0x44]]
          %v1184 = vstv %s1183
          %v1185 = vmul.f32 %v1184, %v472
          %1187 = vrot.lane.b32.xlu0 %v1185, 96
          %v1188 = vpop.permute.xlu0 %1187
          %v1189 = vrot.slane %v1188, 1
          %v1190 = vsel %vm420, %v1188, %v1189
          %v1192 = vadd.f32 %v1182, %v1190
          %s1193 = sld [smem:[#allocation6 + $0x4b]]
          %v1194 = vstv %s1193
          %v1195 = vmul.f32 %v1194, %v508
          %1197 = vrot.lane.b32.xlu0 %v1195, 80
          %v1198 = vpop.permute.xlu0 %1197
          %v1199 = vrot.slane %v1198, 7
          %v1200 = vsel %vm431, %v1199, %v1198
          %v1202 = vadd.f32 %v1192, %v1200
          %s1203 = sld [smem:[#allocation6 + $0x52]]
          %v1204 = vstv %s1203
          %v1205 = vmul.f32 %v1204, %v508
          %1207 = vrot.lane.b32.xlu0 %v1205, 64
          %v1208 = vpop.permute.xlu0 %1207
          %v1209 = vrot.slane %v1208, 7
          %v1210 = vsel %vm444, %v1209, %v1208
          %v1212 = vadd.f32 %v1202, %v1210
          %s1213 = sld [smem:[#allocation6 + $0x59]]
          %v1214 = vstv %s1213
          %v1215 = vmul.f32 %v1214, %v508
          %1217 = vrot.lane.b32.xlu0 %v1215, 48
          %v1218 = vpop.permute.xlu0 %1217
          %v1219 = vrot.slane %v1218, 7
          %v1220 = vsel %vm455, %v1219, %v1218
          %v1222 = vadd.f32 %v1212, %v1220
          %s1223 = sld [smem:[#allocation6 + $0x60]]
          %v1224 = vstv %s1223
          %v1225 = vmul.f32 %v1224, %v508
          %1227 = vrot.lane.b32.xlu0 %v1225, 32
          %v1228 = vpop.permute.xlu0 %1227
          %v1229 = vrot.slane %v1228, 7
          %v1230 = vsel %vm466, %v1229, %v1228
          %v1232 = vadd.f32 %v1222, %v1230
          %vm1233 = vcmp.le.s32.totalorder %v371, 13
          %vm1234 = vmand %vm1093, %vm1233
          %1236 = vrot.lane.b32.xlu0 %v1232, 46
          %v1237 = vpop.permute.xlu0 %1236
          %v1238 = vrot.slane %v1237, 1
          %vm1239 = vcmask 375808
          %v1240 = vsel %vm1239, %v1237, %v1238
          %v1242 = vsel %vm1234, %v1240, 0.0
          %v1243 = vadd.f32 %v1104, %v1242
          %s1244 = sld [smem:[#allocation6 + $0x6]]
          %v1245 = vstv %s1244
          %v1246 = vmul.f32 %v1245, %v398
          %v1247 = vadd.f32 %v1246, 0.0
          %s1248 = sld [smem:[#allocation6 + $0xd]]
          %v1249 = vstv %s1248
          %v1250 = vmul.f32 %v1249, %v398
          %1252 = vrot.lane.b32.xlu0 %v1250, 112
          %v1253 = vpop.permute.xlu0 %1252
          %v1254 = vrot.slane %v1253, 1
          %v1255 = vsel %vm409, %v1253, %v1254
          %v1257 = vadd.f32 %v1247, %v1255
          %s1258 = sld [smem:[#allocation6 + $0x14]]
          %v1259 = vstv %s1258
          %v1260 = vmul.f32 %v1259, %v398
          %1262 = vrot.lane.b32.xlu0 %v1260, 96
          %v1263 = vpop.permute.xlu0 %1262
          %v1264 = vrot.slane %v1263, 1
          %v1265 = vsel %vm420, %v1263, %v1264
          %v1267 = vadd.f32 %v1257, %v1265
          %s1268 = sld [smem:[#allocation6 + $0x1b]]
          %v1269 = vstv %s1268
          %v1270 = vmul.f32 %v1269, %v437
          %1272 = vrot.lane.b32.xlu0 %v1270, 80
          %v1273 = vpop.permute.xlu0 %1272
          %v1274 = vrot.slane %v1273, 7
          %v1275 = vsel %vm431, %v1274, %v1273
          %v1277 = vadd.f32 %v1267, %v1275
          %s1278 = sld [smem:[#allocation6 + $0x22]]
          %v1279 = vstv %s1278
          %v1280 = vmul.f32 %v1279, %v437
          %1282 = vrot.lane.b32.xlu0 %v1280, 64
          %v1283 = vpop.permute.xlu0 %1282
          %v1284 = vrot.slane %v1283, 7
          %v1285 = vsel %vm444, %v1284, %v1283
          %v1287 = vadd.f32 %v1277, %v1285
          %s1288 = sld [smem:[#allocation6 + $0x29]]
          %v1289 = vstv %s1288
          %v1290 = vmul.f32 %v1289, %v437
          %1292 = vrot.lane.b32.xlu0 %v1290, 48
          %v1293 = vpop.permute.xlu0 %1292
          %v1294 = vrot.slane %v1293, 7
          %v1295 = vsel %vm455, %v1294, %v1293
          %v1297 = vadd.f32 %v1287, %v1295
          %s1298 = sld [smem:[#allocation6 + $0x30]]
          %v1299 = vstv %s1298
          %v1300 = vmul.f32 %v1299, %v437
          %1302 = vrot.lane.b32.xlu0 %v1300, 32
          %v1303 = vpop.permute.xlu0 %1302
          %v1304 = vrot.slane %v1303, 7
          %v1305 = vsel %vm466, %v1304, %v1303
          %v1307 = vadd.f32 %v1297, %v1305
          %s1308 = sld [smem:[#allocation6 + $0x37]]
          %v1309 = vstv %s1308
          %v1310 = vmul.f32 %v1309, %v472
          %v1311 = vadd.f32 %v1307, %v1310
          %s1312 = sld [smem:[#allocation6 + $0x3e]]
          %v1313 = vstv %s1312
          %v1314 = vmul.f32 %v1313, %v472
          %1316 = vrot.lane.b32.xlu0 %v1314, 112
          %v1317 = vpop.permute.xlu0 %1316
          %v1318 = vrot.slane %v1317, 1
          %v1319 = vsel %vm409, %v1317, %v1318
          %v1321 = vadd.f32 %v1311, %v1319
          %s1322 = sld [smem:[#allocation6 + $0x45]]
          %v1323 = vstv %s1322
          %v1324 = vmul.f32 %v1323, %v472
          %1326 = vrot.lane.b32.xlu0 %v1324, 96
          %v1327 = vpop.permute.xlu0 %1326
          %v1328 = vrot.slane %v1327, 1
          %v1329 = vsel %vm420, %v1327, %v1328
          %v1331 = vadd.f32 %v1321, %v1329
          %s1332 = sld [smem:[#allocation6 + $0x4c]]
          %v1333 = vstv %s1332
          %v1334 = vmul.f32 %v1333, %v508
          %1336 = vrot.lane.b32.xlu0 %v1334, 80
          %v1337 = vpop.permute.xlu0 %1336
          %v1338 = vrot.slane %v1337, 7
          %v1339 = vsel %vm431, %v1338, %v1337
          %v1341 = vadd.f32 %v1331, %v1339
          %s1342 = sld [smem:[#allocation6 + $0x53]]
          %v1343 = vstv %s1342
          %v1344 = vmul.f32 %v1343, %v508
          %1346 = vrot.lane.b32.xlu0 %v1344, 64
          %v1347 = vpop.permute.xlu0 %1346
          %v1348 = vrot.slane %v1347, 7
          %v1349 = vsel %vm444, %v1348, %v1347
          %v1351 = vadd.f32 %v1341, %v1349
          %s1352 = sld [smem:[#allocation6 + $0x5a]]
          %v1353 = vstv %s1352
          %v1354 = vmul.f32 %v1353, %v508
          %1356 = vrot.lane.b32.xlu0 %v1354, 48
          %v1357 = vpop.permute.xlu0 %1356
          %v1358 = vrot.slane %v1357, 7
          %v1359 = vsel %vm455, %v1358, %v1357
          %v1361 = vadd.f32 %v1351, %v1359
          %s1362 = sld [smem:[#allocation6 + $0x61]]
          %v1363 = vstv %s1362
          %v1364 = vmul.f32 %v1363, %v508
          %1366 = vrot.lane.b32.xlu0 %v1364, 32
          %v1367 = vpop.permute.xlu0 %1366
          %v1368 = vrot.slane %v1367, 7
          %v1369 = vsel %vm466, %v1368, %v1367
          %v1371 = vadd.f32 %v1361, %v1369
          %vm1372 = vcmp.le.s32.totalorder %v371, 12
          %vm1373 = vmand %vm1093, %vm1372
          %1375 = vrot.lane.b32.xlu0 %v1371, 45
          %v1376 = vpop.permute.xlu0 %1375
          %v1377 = vrot.slane %v1376, 1
          %vm1378 = vcmask 367616
          %v1379 = vsel %vm1378, %v1376, %v1377
          %v1381 = vsel %vm1373, %v1379, 0.0
          %v1382 = vadd.f32 %v1243, %v1381
          %s1383 = sld [smem:[#allocation5]]
          %v1384 = vstv %s1383
          %v1385 = vadd.f32 %v1382, %v1384
          %v1386 = vxor.u32 %v1385, 2147483648
          %v1387 = vmul.f32 %v1386, 1.442695
          %v1388 = vpow.pop %v1387
          %v1389 = vadd.f32 %v1388, 1.0
          %v1390 = vrcp.pop %v1389
          %v1391 = vmul.f32 %v1389, %v1390
          %v1392 = vsub.f32 1.0, %v1391
          %v1393 = vmul.f32 %v1390, %v1392
          %v1394 = vadd.f32 %v1390, %v1393
          %vm1395 = vweird.f32 %v1389
          %vm1396 = vweird.f32 %v1390
          %vm1397 = vmor %vm1395, %vm1396
          %v1398 = vsel %vm1397, %v1390, %v1394
          %v1399 = vand.u32 2147483647, %v1389
          %vm1400 = vcmp.eq.f32.partialorder %v1399, 8.507059e+37
          %v1401 = vand.u32 %v1389, 2147483648
          %v1402 = vor.u32 1.1754944e-38, %v1401
          %v1403 = vsel %vm1400, %v1402, %v1398
          %v1404 = vmul.f32 1.0, %v1403
          %v1405 = vlaneseq
          %vm1406 = vcmp.ge.s32.totalorder %v1405, 0
          %vm1407 = vcmp.lt.s32.totalorder %v1405, 256
          %vm1408 = vmand %vm1406, %vm1407
          %1409 = vst.msk [vmem:[#allocation2] sm:$0x3] %vm1408, %v1404
        $region56: #{up_forward.7} parent=47 // pred_fallthru
          _
        %v1410 = vld [vmem:[#allocation2] sm:$0x3]
        %v1411 = vld [vmem:[%s356] sm:$0xff]
        %v1412 = vld [vmem:[%s356 + $0x8] sm:$0xff]
        %v1413 = vld [vmem:[%s356 + $0x10] sm:$0xff]
        %v1414 = vld [vmem:[%s356 + $0x18] sm:$0xff]
        %v1415 = vunpack.c.l.bf16 %v1411
        %v1416 = vunpack.c.h.bf16 %v1411
        %v1417 = vunpack.c.l.bf16 %v1412
        %v1418 = vunpack.c.h.bf16 %v1412
        %v1419 = vunpack.c.l.bf16 %v1413
        %v1420 = vunpack.c.h.bf16 %v1413
        %v1421 = vunpack.c.l.bf16 %v1414
        %v1422 = vunpack.c.h.bf16 %v1414
        %v1424 = vperm.slane %v1410, 0
        %v1425 = vperm.slane %v1410, 1
        %v1428 = vmul.f32 %v1415, %v1424
        %v1429 = vmul.f32 %v1416, %v1425
        %v1430 = vmul.f32 %v1417, %v1424
        %v1431 = vmul.f32 %v1418, %v1425
        %v1432 = vmul.f32 %v1419, %v1424
        %v1433 = vmul.f32 %v1420, %v1425
        %v1434 = vmul.f32 %v1421, %v1424
        %v1435 = vmul.f32 %v1422, %v1425
        %v1436 = vpack.c.bf16 %v1429, %v1428
        %v1437 = vpack.c.bf16 %v1431, %v1430
        %v1438 = vpack.c.bf16 %v1433, %v1432
        %v1439 = vpack.c.bf16 %v1435, %v1434
        %1440 = vst [vmem:[#allocation4 + $0x4] sm:$0xff] %v1436
        %1441 = vst [vmem:[#allocation4 + $0x14] sm:$0xff] %v1437
        %1442 = vst [vmem:[#allocation4 + $0x24] sm:$0xff] %v1438
        %1443 = vst [vmem:[#allocation4 + $0x34] sm:$0xff] %v1439
        %v1444 = vld [vmem:[%s363] sm:$0xff]
        %v1445 = vld [vmem:[%s363 + $0x8] sm:$0xff]
        %v1446 = vld [vmem:[%s363 + $0x10] sm:$0xff]
        %v1447 = vld [vmem:[%s363 + $0x18] sm:$0xff]
        %v1448 = vld [vmem:[#allocation4] sm:$0xff]
        %v1449 = vld [vmem:[#allocation4 + $0x8] sm:$0xf]
        %v1450 = vld [vmem:[#allocation4 + $0x10] sm:$0xff]
        %v1451 = vld [vmem:[#allocation4 + $0x18] sm:$0xf]
        %v1452 = vld [vmem:[#allocation4 + $0x20] sm:$0xff]
        %v1453 = vld [vmem:[#allocation4 + $0x28] sm:$0xf]
        %v1454 = vld [vmem:[#allocation4 + $0x30] sm:$0xff]
        %v1455 = vld [vmem:[#allocation4 + $0x38] sm:$0xf]
        %v1460 = vunpack.c.l.b16 %v1444
        %v1461 = vunpack.c.l.b16 %v1445
        %v1462 = vunpack.c.l.b16 %v1446
        %v1463 = vunpack.c.l.b16 %v1447
        %v1464 = vpack.c.b16 %v1461, %v1460
        %v1465 = vpack.c.b16 %v1463, %v1462
        %1466 = vrot.lane.b32.xlu0 %v1464, 80
        %v1467 = vpop.permute.xlu0 %1466
        %1468 = vrot.lane.b32.xlu0 %v1465, 80
        %v1469 = vpop.permute.xlu0 %1468
        %1472 = vxpose.xlu0.c.b16.start [1/8] %v1467, 128
        %1473 = vxpose.xlu0.c.b16.cont [2/8] %v1469, 128
        %1474 = vxpose.xlu0.c.b16.cont [3/8] 0, 128
        %1475 = vxpose.xlu0.c.b16.cont [4/8] 0, 128
        %1476 = vxpose.xlu0.c.b16.cont [5/8] 0, 128
        %1477 = vxpose.xlu0.c.b16.cont [6/8] 0, 128
        %1478 = vxpose.xlu0.c.b16.cont [7/8] 0, 128
        %1479 = vxpose.xlu0.c.b16.end [8/8] 0, 128
        %v1480 = vpop.trf.xlu0
        %v1481 = vpop.trf.xlu0
        %v1482 = vpop.trf.xlu0
        %v1483 = vpop.trf.xlu0
        %v1484 = vpop.trf.xlu0
        %v1485 = vpop.trf.xlu0
        %v1486 = vpop.trf.xlu0
        %v1487 = vpop.trf.xlu0
        %v1496 = vunpack.c.l.b16 %v1448
        %v1497 = vunpack.c.h.b16 %v1448
        %v1498 = vunpack.c.l.b16 %v1449
        %v1499 = vunpack.c.l.b16 %v1450
        %v1500 = vunpack.c.h.b16 %v1450
        %v1501 = vunpack.c.l.b16 %v1451
        %v1502 = vunpack.c.l.b16 %v1452
        %v1503 = vunpack.c.h.b16 %v1452
        %v1504 = vunpack.c.l.b16 %v1453
        %v1505 = vunpack.c.l.b16 %v1454
        %v1506 = vunpack.c.h.b16 %v1454
        %v1507 = vunpack.c.l.b16 %v1455
        %v1508 = vpack.c.b16 %v1499, %v1496
        %v1509 = vpack.c.b16 %v1500, %v1497
        %v1510 = vpack.c.b16 %v1501, %v1498
        %v1511 = vpack.c.b16 %v1505, %v1502
        %v1512 = vpack.c.b16 %v1506, %v1503
        %v1513 = vpack.c.b16 %v1507, %v1504
        %1514 = vrot.lane.b32.xlu0 %v1508, 1
        %v1515 = vpop.permute.xlu0 %1514
        %1516 = vrot.lane.b32.xlu0 %v1509, 1
        %v1517 = vpop.permute.xlu0 %1516
        %1518 = vrot.lane.b32.xlu0 %v1510, 1
        %v1519 = vpop.permute.xlu0 %1518
        %1520 = vrot.lane.b32.xlu0 %v1511, 1
        %v1521 = vpop.permute.xlu0 %1520
        %1522 = vrot.lane.b32.xlu0 %v1512, 1
        %v1523 = vpop.permute.xlu0 %1522
        %1524 = vrot.lane.b32.xlu0 %v1513, 1
        %v1525 = vpop.permute.xlu0 %1524
        %vm1526 = vcmask 7168
        %v1527 = vsel %vm1526, %v1515, %v1517
        %v1528 = vsel %vm1526, %v1517, %v1519
        %v1529 = vsel %vm1526, %v1521, %v1523
        %v1530 = vsel %vm1526, %v1523, %v1525
        %vm1535 = vcmask 261120
        %v1537 = vsel %vm1535, %v1480, 0
        %1539 = vmatpush.bf16.msra.mxu0 0
        %1540 = vmatpush.bf16.msra.mxu0 0
        %1541 = vmatpush.bf16.msra.mxu0 0
        %1542 = vmatpush.bf16.msra.mxu0 0
        %1543 = vmatpush.bf16.msra.mxu0 0
        %1544 = vmatpush.bf16.msra.mxu0 0
        %1545 = vmatpush.bf16.msra.mxu0 %v1529
        %1546 = vmatpush.bf16.msra.mxu0 %v1527
        %1547 = vmatmul.bf16.gmra.mxu0 %v1537
        %v1548 = vpop.f32.mrf.mxu0
        %v1549 = vadd.f32 0.0, %v1548
        %v1550 = vpop.f32.mrf.mxu0
        %v1551 = vadd.f32 0.0, %v1550
        %1552 = vdwg.mxu0
        %1553 = vmatpush.bf16.msra.mxu0 0
        %1554 = vmatpush.bf16.msra.mxu0 0
        %1555 = vmatpush.bf16.msra.mxu0 0
        %1556 = vmatpush.bf16.msra.mxu0 0
        %1557 = vmatpush.bf16.msra.mxu0 0
        %1558 = vmatpush.bf16.msra.mxu0 0
        %1559 = vmatpush.bf16.msra.mxu0 %v1530
        %1560 = vmatpush.bf16.msra.mxu0 %v1528
        %1561 = vmatmul.bf16.gmra.mxu0 %v1537
        %v1562 = vpop.f32.mrf.mxu0
        %v1563 = vadd.f32 0.0, %v1562
        %v1564 = vpop.f32.mrf.mxu0
        %v1565 = vadd.f32 0.0, %v1564
        %1566 = vdwg.mxu0
        %1569 = vxpose.xlu0.c.b16.start [1/8] %v1464, 128
        %1570 = vxpose.xlu0.c.b16.cont [2/8] %v1465, 128
        %1571 = vxpose.xlu0.c.b16.cont [3/8] 0, 128
        %1572 = vxpose.xlu0.c.b16.cont [4/8] 0, 128
        %1573 = vxpose.xlu0.c.b16.cont [5/8] 0, 128
        %1574 = vxpose.xlu0.c.b16.cont [6/8] 0, 128
        %1575 = vxpose.xlu0.c.b16.cont [7/8] 0, 128
        %1576 = vxpose.xlu0.c.b16.end [8/8] 0, 128
        %v1577 = vpop.trf.xlu0
        %v1578 = vpop.trf.xlu0
        %v1579 = vpop.trf.xlu0
        %v1580 = vpop.trf.xlu0
        %v1581 = vpop.trf.xlu0
        %v1582 = vpop.trf.xlu0
        %v1583 = vpop.trf.xlu0
        %v1584 = vpop.trf.xlu0
        %1585 = vrot.lane.b32.xlu0 %v1508, 17
        %v1586 = vpop.permute.xlu0 %1585
        %1587 = vrot.lane.b32.xlu0 %v1509, 17
        %v1588 = vpop.permute.xlu0 %1587
        %1589 = vrot.lane.b32.xlu0 %v1510, 17
        %v1590 = vpop.permute.xlu0 %1589
        %1591 = vrot.lane.b32.xlu0 %v1511, 17
        %v1592 = vpop.permute.xlu0 %1591
        %1593 = vrot.lane.b32.xlu0 %v1512, 17
        %v1594 = vpop.permute.xlu0 %1593
        %1595 = vrot.lane.b32.xlu0 %v1513, 17
        %v1596 = vpop.permute.xlu0 %1595
        %vm1597 = vcmask 138240
        %v1598 = vsel %vm1597, %v1586, %v1588
        %v1599 = vsel %vm1597, %v1588, %v1590
        %v1600 = vsel %vm1597, %v1592, %v1594
        %v1601 = vsel %vm1597, %v1594, %v1596
        %v1607 = vsel %vm1535, %v1577, 0
        %1609 = vmatpush.bf16.msra.mxu0 0
        %1610 = vmatpush.bf16.msra.mxu0 0
        %1611 = vmatpush.bf16.msra.mxu0 0
        %1612 = vmatpush.bf16.msra.mxu0 0
        %1613 = vmatpush.bf16.msra.mxu0 0
        %1614 = vmatpush.bf16.msra.mxu0 0
        %1615 = vmatpush.bf16.msra.mxu0 %v1600
        %1616 = vmatpush.bf16.msra.mxu0 %v1598
        %1617 = vmatmul.bf16.gmra.mxu0 %v1607
        %v1618 = vpop.f32.mrf.mxu0
        %v1619 = vadd.f32 %v1549, %v1618
        %v1620 = vpop.f32.mrf.mxu0
        %v1621 = vadd.f32 %v1551, %v1620
        %1622 = vdwg.mxu0
        %1623 = vmatpush.bf16.msra.mxu0 0
        %1624 = vmatpush.bf16.msra.mxu0 0
        %1625 = vmatpush.bf16.msra.mxu0 0
        %1626 = vmatpush.bf16.msra.mxu0 0
        %1627 = vmatpush.bf16.msra.mxu0 0
        %1628 = vmatpush.bf16.msra.mxu0 0
        %1629 = vmatpush.bf16.msra.mxu0 %v1601
        %1630 = vmatpush.bf16.msra.mxu0 %v1599
        %1631 = vmatmul.bf16.gmra.mxu0 %v1607
        %v1632 = vpop.f32.mrf.mxu0
        %v1633 = vadd.f32 %v1563, %v1632
        %v1634 = vpop.f32.mrf.mxu0
        %v1635 = vadd.f32 %v1565, %v1634
        %1636 = vdwg.mxu0
        %v1637 = vld [vmem:[#allocation4 + $0x4] sm:$0xff]
        %v1638 = vld [vmem:[#allocation4 + $0xc] sm:$0xf]
        %v1639 = vld [vmem:[#allocation4 + $0x14] sm:$0xff]
        %v1640 = vld [vmem:[#allocation4 + $0x1c] sm:$0xf]
        %v1641 = vld [vmem:[#allocation4 + $0x24] sm:$0xff]
        %v1642 = vld [vmem:[#allocation4 + $0x2c] sm:$0xf]
        %v1643 = vld [vmem:[#allocation4 + $0x34] sm:$0xff]
        %v1644 = vld [vmem:[#allocation4 + $0x3c] sm:$0xf]
        %1645 = vrot.lane.b32.xlu0 %v1464, 32
        %v1646 = vpop.permute.xlu0 %1645
        %1647 = vrot.lane.b32.xlu0 %v1465, 32
        %v1648 = vpop.permute.xlu0 %1647
        %1651 = vxpose.xlu0.c.b16.start [1/8] %v1646, 128
        %1652 = vxpose.xlu0.c.b16.cont [2/8] %v1648, 128
        %1653 = vxpose.xlu0.c.b16.cont [3/8] 0, 128
        %1654 = vxpose.xlu0.c.b16.cont [4/8] 0, 128
        %1655 = vxpose.xlu0.c.b16.cont [5/8] 0, 128
        %1656 = vxpose.xlu0.c.b16.cont [6/8] 0, 128
        %1657 = vxpose.xlu0.c.b16.cont [7/8] 0, 128
        %1658 = vxpose.xlu0.c.b16.end [8/8] 0, 128
        %v1659 = vpop.trf.xlu0
        %v1660 = vpop.trf.xlu0
        %v1661 = vpop.trf.xlu0
        %v1662 = vpop.trf.xlu0
        %v1663 = vpop.trf.xlu0
        %v1664 = vpop.trf.xlu0
        %v1665 = vpop.trf.xlu0
        %v1666 = vpop.trf.xlu0
        %v1675 = vunpack.c.l.b16 %v1637
        %v1676 = vunpack.c.h.b16 %v1637
        %v1677 = vunpack.c.l.b16 %v1638
        %v1678 = vunpack.c.l.b16 %v1639
        %v1679 = vunpack.c.h.b16 %v1639
        %v1680 = vunpack.c.l.b16 %v1640
        %v1681 = vunpack.c.l.b16 %v1641
        %v1682 = vunpack.c.h.b16 %v1641
        %v1683 = vunpack.c.l.b16 %v1642
        %v1684 = vunpack.c.l.b16 %v1643
        %v1685 = vunpack.c.h.b16 %v1643
        %v1686 = vunpack.c.l.b16 %v1644
        %v1687 = vpack.c.b16 %v1678, %v1675
        %v1688 = vpack.c.b16 %v1679, %v1676
        %v1689 = vpack.c.b16 %v1680, %v1677
        %v1690 = vpack.c.b16 %v1684, %v1681
        %v1691 = vpack.c.b16 %v1685, %v1682
        %v1692 = vpack.c.b16 %v1686, %v1683
        %1693 = vrot.lane.b32.xlu0 %v1687, 113
        %v1694 = vpop.permute.xlu0 %1693
        %1695 = vrot.lane.b32.xlu0 %v1688, 113
        %v1696 = vpop.permute.xlu0 %1695
        %1697 = vrot.lane.b32.xlu0 %v1689, 113
        %v1698 = vpop.permute.xlu0 %1697
        %1699 = vrot.lane.b32.xlu0 %v1690, 113
        %v1700 = vpop.permute.xlu0 %1699
        %1701 = vrot.lane.b32.xlu0 %v1691, 113
        %v1702 = vpop.permute.xlu0 %1701
        %1703 = vrot.lane.b32.xlu0 %v1692, 113
        %v1704 = vpop.permute.xlu0 %1703
        %vm1705 = vcmask 924672
        %v1706 = vsel %vm1705, %v1694, %v1696
        %v1707 = vsel %vm1705, %v1696, %v1698
        %v1708 = vsel %vm1705, %v1700, %v1702
        %v1709 = vsel %vm1705, %v1702, %v1704
        %v1715 = vsel %vm1535, %v1659, 0
        %1717 = vmatpush.bf16.msra.mxu0 0
        %1718 = vmatpush.bf16.msra.mxu0 0
        %1719 = vmatpush.bf16.msra.mxu0 0
        %1720 = vmatpush.bf16.msra.mxu0 0
        %1721 = vmatpush.bf16.msra.mxu0 0
        %1722 = vmatpush.bf16.msra.mxu0 0
        %1723 = vmatpush.bf16.msra.mxu0 %v1708
        %1724 = vmatpush.bf16.msra.mxu0 %v1706
        %1725 = vmatmul.bf16.gmra.mxu0 %v1715
        %v1726 = vpop.f32.mrf.mxu0
        %v1727 = vadd.f32 0.0, %v1726
        %v1728 = vpop.f32.mrf.mxu0
        %v1729 = vadd.f32 0.0, %v1728
        %1730 = vdwg.mxu0
        %1731 = vmatpush.bf16.msra.mxu0 0
        %1732 = vmatpush.bf16.msra.mxu0 0
        %1733 = vmatpush.bf16.msra.mxu0 0
        %1734 = vmatpush.bf16.msra.mxu0 0
        %1735 = vmatpush.bf16.msra.mxu0 0
        %1736 = vmatpush.bf16.msra.mxu0 0
        %1737 = vmatpush.bf16.msra.mxu0 %v1709
        %1738 = vmatpush.bf16.msra.mxu0 %v1707
        %1739 = vmatmul.bf16.gmra.mxu0 %v1715
        %v1740 = vpop.f32.mrf.mxu0
        %v1741 = vadd.f32 0.0, %v1740
        %v1742 = vpop.f32.mrf.mxu0
        %v1743 = vadd.f32 0.0, %v1742
        %1744 = vdwg.mxu0
        %v1745 = vadd.f32 %v1619, %v1727
        %v1746 = vadd.f32 %v1633, %v1741
        %v1747 = vadd.f32 %v1621, %v1729
        %v1748 = vadd.f32 %v1635, %v1743
        %vm1749 = vcmp.ge.s32.totalorder %v371, 1
        %v1750 = vsel %vm1749, 1, 0
        %v1751 = vperm.slane %v1750, 0
        %v1752 = vperm.slane %v1750, 1
        %vm1753 = vcmp.eq.s32.totalorder %v1751, 1
        %vm1754 = vcmp.eq.s32.totalorder %v1752, 1
        %v1755 = vsel %vm1753, %v1745, 0.0
        %v1756 = vsel %vm1754, %v1746, 0.0
        %v1757 = vsel %vm1753, %v1747, 0.0
        %v1758 = vsel %vm1754, %v1748, 0.0
        %v1759 = vadd.f32 %v1755, 0.0
        %v1760 = vadd.f32 %v1756, 0.0
        %v1761 = vadd.f32 %v1757, 0.0
        %v1762 = vadd.f32 %v1758, 0.0
        %v1763 = vld [vmem:[#allocation4 + $0x4] sm:$0xff]
        %v1764 = vld [vmem:[#allocation4 + $0x14] sm:$0xff]
        %v1765 = vld [vmem:[#allocation4 + $0x24] sm:$0xff]
        %v1766 = vld [vmem:[#allocation4 + $0x34] sm:$0xff]
        %1767 = vrot.lane.b32.xlu0 %v1464, 64
        %v1768 = vpop.permute.xlu0 %1767
        %1769 = vrot.lane.b32.xlu0 %v1465, 64
        %v1770 = vpop.permute.xlu0 %1769
        %1773 = vxpose.xlu0.c.b16.start [1/8] %v1768, 128
        %1774 = vxpose.xlu0.c.b16.cont [2/8] %v1770, 128
        %1775 = vxpose.xlu0.c.b16.cont [3/8] 0, 128
        %1776 = vxpose.xlu0.c.b16.cont [4/8] 0, 128
        %1777 = vxpose.xlu0.c.b16.cont [5/8] 0, 128
        %1778 = vxpose.xlu0.c.b16.cont [6/8] 0, 128
        %1779 = vxpose.xlu0.c.b16.cont [7/8] 0, 128
        %1780 = vxpose.xlu0.c.b16.end [8/8] 0, 128
        %v1781 = vpop.trf.xlu0
        %v1782 = vpop.trf.xlu0
        %v1783 = vpop.trf.xlu0
        %v1784 = vpop.trf.xlu0
        %v1785 = vpop.trf.xlu0
        %v1786 = vpop.trf.xlu0
        %v1787 = vpop.trf.xlu0
        %v1788 = vpop.trf.xlu0
        %v1793 = vunpack.c.l.b16 %v1763
        %v1794 = vunpack.c.h.b16 %v1763
        %v1795 = vunpack.c.l.b16 %v1764
        %v1796 = vunpack.c.h.b16 %v1764
        %v1797 = vunpack.c.l.b16 %v1765
        %v1798 = vunpack.c.h.b16 %v1765
        %v1799 = vunpack.c.l.b16 %v1766
        %v1800 = vunpack.c.h.b16 %v1766
        %v1801 = vpack.c.b16 %v1795, %v1793
        %v1802 = vpack.c.b16 %v1796, %v1794
        %v1803 = vpack.c.b16 %v1799, %v1797
        %v1804 = vpack.c.b16 %v1800, %v1798
        %v1810 = vsel %vm1535, %v1781, 0
        %1812 = vmatpush.bf16.msra.mxu0 0
        %1813 = vmatpush.bf16.msra.mxu0 0
        %1814 = vmatpush.bf16.msra.mxu0 0
        %1815 = vmatpush.bf16.msra.mxu0 0
        %1816 = vmatpush.bf16.msra.mxu0 0
        %1817 = vmatpush.bf16.msra.mxu0 0
        %1818 = vmatpush.bf16.msra.mxu0 %v1803
        %1819 = vmatpush.bf16.msra.mxu0 %v1801
        %1820 = vmatmul.bf16.gmra.mxu0 %v1810
        %v1821 = vpop.f32.mrf.mxu0
        %v1822 = vadd.f32 0.0, %v1821
        %v1823 = vpop.f32.mrf.mxu0
        %v1824 = vadd.f32 0.0, %v1823
        %1825 = vdwg.mxu0
        %1826 = vmatpush.bf16.msra.mxu0 0
        %1827 = vmatpush.bf16.msra.mxu0 0
        %1828 = vmatpush.bf16.msra.mxu0 0
        %1829 = vmatpush.bf16.msra.mxu0 0
        %1830 = vmatpush.bf16.msra.mxu0 0
        %1831 = vmatpush.bf16.msra.mxu0 0
        %1832 = vmatpush.bf16.msra.mxu0 %v1804
        %1833 = vmatpush.bf16.msra.mxu0 %v1802
        %1834 = vmatmul.bf16.gmra.mxu0 %v1810
        %v1835 = vpop.f32.mrf.mxu0
        %v1836 = vadd.f32 0.0, %v1835
        %v1837 = vpop.f32.mrf.mxu0
        %v1838 = vadd.f32 0.0, %v1837
        %1839 = vdwg.mxu0
        %1840 = vrot.lane.b32.xlu0 %v1464, 112
        %v1841 = vpop.permute.xlu0 %1840
        %1842 = vrot.lane.b32.xlu0 %v1465, 112
        %v1843 = vpop.permute.xlu0 %1842
        %1846 = vxpose.xlu0.c.b16.start [1/8] %v1841, 128
        %1847 = vxpose.xlu0.c.b16.cont [2/8] %v1843, 128
        %1848 = vxpose.xlu0.c.b16.cont [3/8] 0, 128
        %1849 = vxpose.xlu0.c.b16.cont [4/8] 0, 128
        %1850 = vxpose.xlu0.c.b16.cont [5/8] 0, 128
        %1851 = vxpose.xlu0.c.b16.cont [6/8] 0, 128
        %1852 = vxpose.xlu0.c.b16.cont [7/8] 0, 128
        %1853 = vxpose.xlu0.c.b16.end [8/8] 0, 128
        %v1854 = vpop.trf.xlu0
        %v1855 = vpop.trf.xlu0
        %v1856 = vpop.trf.xlu0
        %v1857 = vpop.trf.xlu0
        %v1858 = vpop.trf.xlu0
        %v1859 = vpop.trf.xlu0
        %v1860 = vpop.trf.xlu0
        %v1861 = vpop.trf.xlu0
        %1862 = vrot.lane.b32.xlu0 %v1508, 16
        %v1863 = vpop.permute.xlu0 %1862
        %1864 = vrot.lane.b32.xlu0 %v1509, 16
        %v1865 = vpop.permute.xlu0 %1864
        %1866 = vrot.lane.b32.xlu0 %v1510, 16
        %v1867 = vpop.permute.xlu0 %1866
        %1868 = vrot.lane.b32.xlu0 %v1511, 16
        %v1869 = vpop.permute.xlu0 %1868
        %1870 = vrot.lane.b32.xlu0 %v1512, 16
        %v1871 = vpop.permute.xlu0 %1870
        %1872 = vrot.lane.b32.xlu0 %v1513, 16
        %v1873 = vpop.permute.xlu0 %1872
        %vm1874 = vcmask 130048
        %v1875 = vsel %vm1874, %v1863, %v1865
        %v1876 = vsel %vm1874, %v1865, %v1867
        %v1877 = vsel %vm1874, %v1869, %v1871
        %v1878 = vsel %vm1874, %v1871, %v1873
        %v1884 = vsel %vm1535, %v1854, 0
        %1886 = vmatpush.bf16.msra.mxu0 0
        %1887 = vmatpush.bf16.msra.mxu0 0
        %1888 = vmatpush.bf16.msra.mxu0 0
        %1889 = vmatpush.bf16.msra.mxu0 0
        %1890 = vmatpush.bf16.msra.mxu0 0
        %1891 = vmatpush.bf16.msra.mxu0 0
        %1892 = vmatpush.bf16.msra.mxu0 %v1877
        %1893 = vmatpush.bf16.msra.mxu0 %v1875
        %1894 = vmatmul.bf16.gmra.mxu0 %v1884
        %v1895 = vpop.f32.mrf.mxu0
        %v1896 = vadd.f32 %v1822, %v1895
        %v1897 = vpop.f32.mrf.mxu0
        %v1898 = vadd.f32 %v1824, %v1897
        %1899 = vdwg.mxu0
        %1900 = vmatpush.bf16.msra.mxu0 0
        %1901 = vmatpush.bf16.msra.mxu0 0
        %1902 = vmatpush.bf16.msra.mxu0 0
        %1903 = vmatpush.bf16.msra.mxu0 0
        %1904 = vmatpush.bf16.msra.mxu0 0
        %1905 = vmatpush.bf16.msra.mxu0 0
        %1906 = vmatpush.bf16.msra.mxu0 %v1878
        %1907 = vmatpush.bf16.msra.mxu0 %v1876
        %1908 = vmatmul.bf16.gmra.mxu0 %v1884
        %v1909 = vpop.f32.mrf.mxu0
        %v1910 = vadd.f32 %v1836, %v1909
        %v1911 = vpop.f32.mrf.mxu0
        %v1912 = vadd.f32 %v1838, %v1911
        %1913 = vdwg.mxu0
        %1914 = vrot.lane.b32.xlu0 %v1464, 16
        %v1915 = vpop.permute.xlu0 %1914
        %1916 = vrot.lane.b32.xlu0 %v1465, 16
        %v1917 = vpop.permute.xlu0 %1916
        %1920 = vxpose.xlu0.c.b16.start [1/8] %v1915, 128
        %1921 = vxpose.xlu0.c.b16.cont [2/8] %v1917, 128
        %1922 = vxpose.xlu0.c.b16.cont [3/8] 0, 128
        %1923 = vxpose.xlu0.c.b16.cont [4/8] 0, 128
        %1924 = vxpose.xlu0.c.b16.cont [5/8] 0, 128
        %1925 = vxpose.xlu0.c.b16.cont [6/8] 0, 128
        %1926 = vxpose.xlu0.c.b16.cont [7/8] 0, 128
        %1927 = vxpose.xlu0.c.b16.end [8/8] 0, 128
        %v1928 = vpop.trf.xlu0
        %v1929 = vpop.trf.xlu0
        %v1930 = vpop.trf.xlu0
        %v1931 = vpop.trf.xlu0
        %v1932 = vpop.trf.xlu0
        %v1933 = vpop.trf.xlu0
        %v1934 = vpop.trf.xlu0
        %v1935 = vpop.trf.xlu0
        %1936 = vrot.lane.b32.xlu0 %v1687, 112
        %v1937 = vpop.permute.xlu0 %1936
        %1938 = vrot.lane.b32.xlu0 %v1688, 112
        %v1939 = vpop.permute.xlu0 %1938
        %1940 = vrot.lane.b32.xlu0 %v1689, 112
        %v1941 = vpop.permute.xlu0 %1940
        %1942 = vrot.lane.b32.xlu0 %v1690, 112
        %v1943 = vpop.permute.xlu0 %1942
        %1944 = vrot.lane.b32.xlu0 %v1691, 112
        %v1945 = vpop.permute.xlu0 %1944
        %1946 = vrot.lane.b32.xlu0 %v1692, 112
        %v1947 = vpop.permute.xlu0 %1946
        %vm1948 = vcmask 916480
        %v1949 = vsel %vm1948, %v1937, %v1939
        %v1950 = vsel %vm1948, %v1939, %v1941
        %v1951 = vsel %vm1948, %v1943, %v1945
        %v1952 = vsel %vm1948, %v1945, %v1947
        %v1958 = vsel %vm1535, %v1928, 0
        %1960 = vmatpush.bf16.msra.mxu0 0
        %1961 = vmatpush.bf16.msra.mxu0 0
        %1962 = vmatpush.bf16.msra.mxu0 0
        %1963 = vmatpush.bf16.msra.mxu0 0
        %1964 = vmatpush.bf16.msra.mxu0 0
        %1965 = vmatpush.bf16.msra.mxu0 0
        %1966 = vmatpush.bf16.msra.mxu0 %v1951
        %1967 = vmatpush.bf16.msra.mxu0 %v1949
        %1968 = vmatmul.bf16.gmra.mxu0 %v1958
        %v1969 = vpop.f32.mrf.mxu0
        %v1970 = vadd.f32 0.0, %v1969
        %v1971 = vpop.f32.mrf.mxu0
        %v1972 = vadd.f32 0.0, %v1971
        %1973 = vdwg.mxu0
        %1974 = vmatpush.bf16.msra.mxu0 0
        %1975 = vmatpush.bf16.msra.mxu0 0
        %1976 = vmatpush.bf16.msra.mxu0 0
        %1977 = vmatpush.bf16.msra.mxu0 0
        %1978 = vmatpush.bf16.msra.mxu0 0
        %1979 = vmatpush.bf16.msra.mxu0 0
        %1980 = vmatpush.bf16.msra.mxu0 %v1952
        %1981 = vmatpush.bf16.msra.mxu0 %v1950
        %1982 = vmatmul.bf16.gmra.mxu0 %v1958
        %v1983 = vpop.f32.mrf.mxu0
        %v1984 = vadd.f32 0.0, %v1983
        %v1985 = vpop.f32.mrf.mxu0
        %v1986 = vadd.f32 0.0, %v1985
        %1987 = vdwg.mxu0
        %v1988 = vadd.f32 %v1896, %v1970
        %v1989 = vadd.f32 %v1910, %v1984
        %v1990 = vadd.f32 %v1898, %v1972
        %v1991 = vadd.f32 %v1912, %v1986
        %v1992 = vadd.f32 %v1759, %v1988
        %v1993 = vadd.f32 %v1760, %v1989
        %v1994 = vadd.f32 %v1761, %v1990
        %v1995 = vadd.f32 %v1762, %v1991
        %1996 = vrot.lane.b32.xlu0 %v1464, 48
        %v1997 = vpop.permute.xlu0 %1996
        %1998 = vrot.lane.b32.xlu0 %v1465, 48
        %v1999 = vpop.permute.xlu0 %1998
        %2002 = vxpose.xlu0.c.b16.start [1/8] %v1997, 128
        %2003 = vxpose.xlu0.c.b16.cont [2/8] %v1999, 128
        %2004 = vxpose.xlu0.c.b16.cont [3/8] 0, 128
        %2005 = vxpose.xlu0.c.b16.cont [4/8] 0, 128
        %2006 = vxpose.xlu0.c.b16.cont [5/8] 0, 128
        %2007 = vxpose.xlu0.c.b16.cont [6/8] 0, 128
        %2008 = vxpose.xlu0.c.b16.cont [7/8] 0, 128
        %2009 = vxpose.xlu0.c.b16.end [8/8] 0, 128
        %v2010 = vpop.trf.xlu0
        %v2011 = vpop.trf.xlu0
        %v2012 = vpop.trf.xlu0
        %v2013 = vpop.trf.xlu0
        %v2014 = vpop.trf.xlu0
        %v2015 = vpop.trf.xlu0
        %v2016 = vpop.trf.xlu0
        %v2017 = vpop.trf.xlu0
        %2018 = vrot.lane.b32.xlu0 %v1687, 127
        %v2019 = vpop.permute.xlu0 %2018
        %2020 = vrot.lane.b32.xlu0 %v1688, 127
        %v2021 = vpop.permute.xlu0 %2020
        %2022 = vrot.lane.b32.xlu0 %v1689, 127
        %v2023 = vpop.permute.xlu0 %2022
        %2024 = vrot.lane.b32.xlu0 %v1690, 127
        %v2025 = vpop.permute.xlu0 %2024
        %2026 = vrot.lane.b32.xlu0 %v1691, 127
        %v2027 = vpop.permute.xlu0 %2026
        %2028 = vrot.lane.b32.xlu0 %v1692, 127
        %v2029 = vpop.permute.xlu0 %2028
        %vm2030 = vcmask 1039360
        %v2031 = vsel %vm2030, %v2019, %v2021
        %v2032 = vsel %vm2030, %v2021, %v2023
        %v2033 = vsel %vm2030, %v2025, %v2027
        %v2034 = vsel %vm2030, %v2027, %v2029
        %v2040 = vsel %vm1535, %v2010, 0
        %2042 = vmatpush.bf16.msra.mxu0 0
        %2043 = vmatpush.bf16.msra.mxu0 0
        %2044 = vmatpush.bf16.msra.mxu0 0
        %2045 = vmatpush.bf16.msra.mxu0 0
        %2046 = vmatpush.bf16.msra.mxu0 0
        %2047 = vmatpush.bf16.msra.mxu0 0
        %2048 = vmatpush.bf16.msra.mxu0 %v2033
        %2049 = vmatpush.bf16.msra.mxu0 %v2031
        %2050 = vmatmul.bf16.gmra.mxu0 %v2040
        %v2051 = vpop.f32.mrf.mxu0
        %v2052 = vadd.f32 0.0, %v2051
        %v2053 = vpop.f32.mrf.mxu0
        %v2054 = vadd.f32 0.0, %v2053
        %2055 = vdwg.mxu0
        %2056 = vmatpush.bf16.msra.mxu0 0
        %2057 = vmatpush.bf16.msra.mxu0 0
        %2058 = vmatpush.bf16.msra.mxu0 0
        %2059 = vmatpush.bf16.msra.mxu0 0
        %2060 = vmatpush.bf16.msra.mxu0 0
        %2061 = vmatpush.bf16.msra.mxu0 0
        %2062 = vmatpush.bf16.msra.mxu0 %v2034
        %2063 = vmatpush.bf16.msra.mxu0 %v2032
        %2064 = vmatmul.bf16.gmra.mxu0 %v2040
        %v2065 = vpop.f32.mrf.mxu0
        %v2066 = vadd.f32 0.0, %v2065
        %v2067 = vpop.f32.mrf.mxu0
        %v2068 = vadd.f32 0.0, %v2067
        %2069 = vdwg.mxu0
        %2070 = vrot.lane.b32.xlu0 %v1464, 96
        %v2071 = vpop.permute.xlu0 %2070
        %2072 = vrot.lane.b32.xlu0 %v1465, 96
        %v2073 = vpop.permute.xlu0 %2072
        %2076 = vxpose.xlu0.c.b16.start [1/8] %v2071, 128
        %2077 = vxpose.xlu0.c.b16.cont [2/8] %v2073, 128
        %2078 = vxpose.xlu0.c.b16.cont [3/8] 0, 128
        %2079 = vxpose.xlu0.c.b16.cont [4/8] 0, 128
        %2080 = vxpose.xlu0.c.b16.cont [5/8] 0, 128
        %2081 = vxpose.xlu0.c.b16.cont [6/8] 0, 128
        %2082 = vxpose.xlu0.c.b16.cont [7/8] 0, 128
        %2083 = vxpose.xlu0.c.b16.end [8/8] 0, 128
        %v2084 = vpop.trf.xlu0
        %v2085 = vpop.trf.xlu0
        %v2086 = vpop.trf.xlu0
        %v2087 = vpop.trf.xlu0
        %v2088 = vpop.trf.xlu0
        %v2089 = vpop.trf.xlu0
        %v2090 = vpop.trf.xlu0
        %v2091 = vpop.trf.xlu0
        %2092 = vrot.lane.b32.xlu0 %v1508, 15
        %v2093 = vpop.permute.xlu0 %2092
        %2094 = vrot.lane.b32.xlu0 %v1509, 15
        %v2095 = vpop.permute.xlu0 %2094
        %2096 = vrot.lane.b32.xlu0 %v1510, 15
        %v2097 = vpop.permute.xlu0 %2096
        %2098 = vrot.lane.b32.xlu0 %v1511, 15
        %v2099 = vpop.permute.xlu0 %2098
        %2100 = vrot.lane.b32.xlu0 %v1512, 15
        %v2101 = vpop.permute.xlu0 %2100
        %2102 = vrot.lane.b32.xlu0 %v1513, 15
        %v2103 = vpop.permute.xlu0 %2102
        %vm2104 = vcmask 121856
        %v2105 = vsel %vm2104, %v2093, %v2095
        %v2106 = vsel %vm2104, %v2095, %v2097
        %v2107 = vsel %vm2104, %v2099, %v2101
        %v2108 = vsel %vm2104, %v2101, %v2103
        %v2114 = vsel %vm1535, %v2084, 0
        %2116 = vmatpush.bf16.msra.mxu0 0
        %2117 = vmatpush.bf16.msra.mxu0 0
        %2118 = vmatpush.bf16.msra.mxu0 0
        %2119 = vmatpush.bf16.msra.mxu0 0
        %2120 = vmatpush.bf16.msra.mxu0 0
        %2121 = vmatpush.bf16.msra.mxu0 0
        %2122 = vmatpush.bf16.msra.mxu0 %v2107
        %2123 = vmatpush.bf16.msra.mxu0 %v2105
        %2124 = vmatmul.bf16.gmra.mxu0 %v2114
        %v2125 = vpop.f32.mrf.mxu0
        %v2126 = vadd.f32 %v2052, %v2125
        %v2127 = vpop.f32.mrf.mxu0
        %v2128 = vadd.f32 %v2054, %v2127
        %2129 = vdwg.mxu0
        %2130 = vmatpush.bf16.msra.mxu0 0
        %2131 = vmatpush.bf16.msra.mxu0 0
        %2132 = vmatpush.bf16.msra.mxu0 0
        %2133 = vmatpush.bf16.msra.mxu0 0
        %2134 = vmatpush.bf16.msra.mxu0 0
        %2135 = vmatpush.bf16.msra.mxu0 0
        %2136 = vmatpush.bf16.msra.mxu0 %v2108
        %2137 = vmatpush.bf16.msra.mxu0 %v2106
        %2138 = vmatmul.bf16.gmra.mxu0 %v2114
        %v2139 = vpop.f32.mrf.mxu0
        %v2140 = vadd.f32 %v2066, %v2139
        %v2141 = vpop.f32.mrf.mxu0
        %v2142 = vadd.f32 %v2068, %v2141
        %2143 = vdwg.mxu0
        %v2144 = vunpack.c.h.b16 %v1444
        %v2145 = vunpack.c.h.b16 %v1445
        %v2146 = vunpack.c.h.b16 %v1446
        %v2147 = vunpack.c.h.b16 %v1447
        %v2148 = vpack.c.b16 %v2145, %v2144
        %v2149 = vpack.c.b16 %v2147, %v2146
        %2152 = vxpose.xlu0.c.b16.start [1/8] %v2148, 128
        %2153 = vxpose.xlu0.c.b16.cont [2/8] %v2149, 128
        %2154 = vxpose.xlu0.c.b16.cont [3/8] 0, 128
        %2155 = vxpose.xlu0.c.b16.cont [4/8] 0, 128
        %2156 = vxpose.xlu0.c.b16.cont [5/8] 0, 128
        %2157 = vxpose.xlu0.c.b16.cont [6/8] 0, 128
        %2158 = vxpose.xlu0.c.b16.cont [7/8] 0, 128
        %2159 = vxpose.xlu0.c.b16.end [8/8] 0, 128
        %v2160 = vpop.trf.xlu0
        %v2161 = vpop.trf.xlu0
        %v2162 = vpop.trf.xlu0
        %v2163 = vpop.trf.xlu0
        %v2164 = vpop.trf.xlu0
        %v2165 = vpop.trf.xlu0
        %v2166 = vpop.trf.xlu0
        %v2167 = vpop.trf.xlu0
        %2168 = vrot.lane.b32.xlu0 %v1687, 111
        %v2169 = vpop.permute.xlu0 %2168
        %2170 = vrot.lane.b32.xlu0 %v1688, 111
        %v2171 = vpop.permute.xlu0 %2170
        %2172 = vrot.lane.b32.xlu0 %v1689, 111
        %v2173 = vpop.permute.xlu0 %2172
        %2174 = vrot.lane.b32.xlu0 %v1690, 111
        %v2175 = vpop.permute.xlu0 %2174
        %2176 = vrot.lane.b32.xlu0 %v1691, 111
        %v2177 = vpop.permute.xlu0 %2176
        %2178 = vrot.lane.b32.xlu0 %v1692, 111
        %v2179 = vpop.permute.xlu0 %2178
        %vm2180 = vcmask 908288
        %v2181 = vsel %vm2180, %v2169, %v2171
        %v2182 = vsel %vm2180, %v2171, %v2173
        %v2183 = vsel %vm2180, %v2175, %v2177
        %v2184 = vsel %vm2180, %v2177, %v2179
        %v2190 = vsel %vm1535, %v2160, 0
        %2192 = vmatpush.bf16.msra.mxu0 0
        %2193 = vmatpush.bf16.msra.mxu0 0
        %2194 = vmatpush.bf16.msra.mxu0 0
        %2195 = vmatpush.bf16.msra.mxu0 0
        %2196 = vmatpush.bf16.msra.mxu0 0
        %2197 = vmatpush.bf16.msra.mxu0 0
        %2198 = vmatpush.bf16.msra.mxu0 %v2183
        %2199 = vmatpush.bf16.msra.mxu0 %v2181
        %2200 = vmatmul.bf16.gmra.mxu0 %v2190
        %v2201 = vpop.f32.mrf.mxu0
        %v2202 = vadd.f32 0.0, %v2201
        %v2203 = vpop.f32.mrf.mxu0
        %v2204 = vadd.f32 0.0, %v2203
        %2205 = vdwg.mxu0
        %2206 = vmatpush.bf16.msra.mxu0 0
        %2207 = vmatpush.bf16.msra.mxu0 0
        %2208 = vmatpush.bf16.msra.mxu0 0
        %2209 = vmatpush.bf16.msra.mxu0 0
        %2210 = vmatpush.bf16.msra.mxu0 0
        %2211 = vmatpush.bf16.msra.mxu0 0
        %2212 = vmatpush.bf16.msra.mxu0 %v2184
        %2213 = vmatpush.bf16.msra.mxu0 %v2182
        %2214 = vmatmul.bf16.gmra.mxu0 %v2190
        %v2215 = vpop.f32.mrf.mxu0
        %v2216 = vadd.f32 0.0, %v2215
        %v2217 = vpop.f32.mrf.mxu0
        %v2218 = vadd.f32 0.0, %v2217
        %2219 = vdwg.mxu0
        %v2220 = vadd.f32 %v2126, %v2202
        %v2221 = vadd.f32 %v2140, %v2216
        %v2222 = vadd.f32 %v2128, %v2204
        %v2223 = vadd.f32 %v2142, %v2218
        %vm2224 = vcmp.le.s32.totalorder %v371, 14
        %v2225 = vsel %vm2224, 1, 0
        %v2226 = vperm.slane %v2225, 0
        %v2227 = vperm.slane %v2225, 1
        %vm2228 = vcmp.eq.s32.totalorder %v2226, 1
        %vm2229 = vcmp.eq.s32.totalorder %v2227, 1
        %v2230 = vsel %vm2228, %v2220, 0.0
        %v2231 = vsel %vm2229, %v2221, 0.0
        %v2232 = vsel %vm2228, %v2222, 0.0
        %v2233 = vsel %vm2229, %v2223, 0.0
        %v2234 = vadd.f32 %v1992, %v2230
        %v2235 = vadd.f32 %v1993, %v2231
        %v2236 = vadd.f32 %v1994, %v2232
        %v2237 = vadd.f32 %v1995, %v2233
        // Predicated region
        $region57: #{up_forward.7} parent=47 // pred_check
          %p2238 = pneg %p372
        $region58: #{up_forward.7} parent=47 // pred_check_branch
          %2240 = sbr.rel (%p2238) target = $region60
        $region59: #{up_forward.7} parent=47 // pred_region
          %v2241 = vld [vmem:[%s4] sm:$0xff]
          %v2242 = vld [vmem:[%s4 + $0x8] sm:$0xff]
          %2244 = vset.pattern.permute.xlu0 0
          %2245 = vperm.xlu0 %2244, %v2241
          %v2246 = vpop.permute.xlu0 %2245
          %2249 = vset.pattern.permute.xlu0 0
          %2250 = vperm.xlu0 %2249, %v2242
          %v2251 = vpop.permute.xlu0 %2250
          %2253 = vst [vmem:[%s369] sm:$0xff] %v2246
          %2254 = vst [vmem:[%s369 + $0x8] sm:$0xff] %v2246
          %2255 = vst [vmem:[%s369 + $0x10] sm:$0xff] %v2251
          %2256 = vst [vmem:[%s369 + $0x18] sm:$0xff] %v2251
        $region60: #{up_forward.7} parent=47 // pred_fallthru
          _
        %v2257 = vld [vmem:[%s369] sm:$0xff]
        %v2258 = vld [vmem:[%s369 + $0x8] sm:$0xff]
        %v2259 = vld [vmem:[%s369 + $0x10] sm:$0xff]
        %v2260 = vld [vmem:[%s369 + $0x18] sm:$0xff]
        %v2261 = vadd.f32 %v2257, %v2234
        %v2262 = vadd.f32 %v2258, %v2235
        %v2263 = vadd.f32 %v2259, %v2236
        %v2264 = vadd.f32 %v2260, %v2237
        %2265 = vst [vmem:[%s369] sm:$0xff] %v2261
        %2266 = vst [vmem:[%s369 + $0x8] sm:$0xff] %v2262
        %2267 = vst [vmem:[%s369 + $0x10] sm:$0xff] %v2263
        %2268 = vst [vmem:[%s369 + $0x18] sm:$0xff] %v2264
        %p2269 = scmp.lt.s32.totalorder %s24, 1
        %s2270 = scalar_select %p2269, %s24, 1
        %s2271 = smul.addr %s2270, 4
        %s2272 = smul.addr %s2271, 8
        %s2273 = scalar_lea.vmem %s7, %s2272
        // Predicated region
        $region61: #{up_forward.7} parent=47 // pred_check
          %p2274 = pneg %p214
        $region62: #{up_forward.7} parent=47 // pred_check_branch
          %2276 = sbr.rel (%p2274) target = $region64
        $region63: #{up_forward.7} parent=47 // pred_region
          _
        $region64: #{up_forward.7} parent=47 // pred_fallthru
          _
      $region48: #{up_forward.7} parent=5 // pred_fallthru
        _
      %p2277 = scmp.le.s32.totalorder 2, %s15
      // Predicated region
      $region65: #{up_forward.7} parent=5 // pred_check
        %p2278 = pneg %p2277
      $region66: #{up_forward.7} parent=5 // pred_check_branch
        %2280 = sbr.rel (%p2278) target = $region68
      $region67: #{up_forward.7} parent=5 // pred_region
        %s2281 = ssub.s32 %s15, 2
        // Predicated region
        $region69: #{up_forward.7} parent=67 // pred_check
          %p2282 = pneg %p220
        $region70: #{up_forward.7} parent=67 // pred_check_branch
          %2284 = sbr.rel (%p2282) target = $region72
        $region71: #{up_forward.7} parent=67 // pred_region
          %p2285 = scmp.lt.s32.totalorder %s26, 1
          %s2286 = scalar_select %p2285, %s26, 1
          %s2287 = smul.addr %s2286, 4
          %s2288 = smul.addr %s2287, 8
          %s2289 = scalar_lea.vmem %s7, %s2288
        $region72: #{up_forward.7} parent=67 // pred_fallthru
          _
      $region68: #{up_forward.7} parent=5 // pred_fallthru
        _
    $region6: #{up_forward.7} parent=1 // loop_footer
      %s19 = sadd.s32 1, %s15
    $region7: #{up_forward.7} parent=1 // loop_footer_branch
      %14 = sbr.rel target = $region3
    $region8: #{up_forward.7} parent=1 // loop_exit
      _
    %2290 = vsyncpa [#allocation7], 1
    %s2291 = scalar_lea.sflag [#allocation7], 1
    %2292 = vsyncpa %s2291, 1

</llo_original>
